<compile_context>
chip_gen: v5e
topology: v5e:2x2
jax: 0.10.0
libtpu: 0.0.40
codegen_flags: <defaults>
</compile_context>

<pallas_src>
import jax
import jax.numpy as jnp
from jax.experimental import pallas as pl
from jax.experimental.pallas import tpu as pltpu


def ae_kernel(x_ref, w1_ref, b1_ref, w2_ref, b2_ref,
              w3_ref, b3_ref, w4_ref, b4_ref, out_ref):
    """Fused encoder+decoder forward on one batch tile.

    x_ref:   [TM, D]  bf16   flattened input tile
    w1/b1:   [D, H] bf16 / [1, H] f32    encoder layer 1
    w2/b2:   [H, ZP] bf16 / [1, ZP] f32  encoder layer 2 (latent, lane-padded)
    w3/b3:   [ZP, H] bf16 / [1, H] f32   decoder layer 1
    w4/b4:   [H, D] bf16 / [1, D] f32    decoder layer 2 (reconstruction)
    out_ref: [TM, D]  f32
    """
    x = x_ref[...]

    # --- encoder ---
    h1 = jnp.dot(x, w1_ref[...], preferred_element_type=jnp.float32) + b1_ref[...]
    h1 = jnp.maximum(h1, 0.0).astype(x.dtype)
    z = jnp.dot(h1, w2_ref[...], preferred_element_type=jnp.float32) + b2_ref[...]
    z = z.astype(x.dtype)

    # --- decoder ---
    h2 = jnp.dot(z, w3_ref[...], preferred_element_type=jnp.float32) + b3_ref[...]
    h2 = jnp.maximum(h2, 0.0).astype(x.dtype)
    recon = jnp.dot(h2, w4_ref[...], preferred_element_type=jnp.float32) + b4_ref[...]

    out_ref[...] = recon.astype(out_ref.dtype)


def preprocess_params(params):
    """Pad the latent dim to a full 128-lane width (exact: zeros only) and cast
    matmul operands to bf16; biases stay f32."""
    w1, b1, w2, b2, w3, b3, w4, b4 = params
    hdim = w1.shape[1]
    z = w2.shape[1]
    zp = max(128, ((z + 127) // 128) * 128)

    w2p = jnp.zeros((hdim, zp), w2.dtype).at[:, :z].set(w2)
    b2p = jnp.zeros((1, zp), b2.dtype).at[:, :z].set(b2)
    w3p = jnp.zeros((zp, hdim), w3.dtype).at[:z, :].set(w3)

    bf16 = jnp.bfloat16
    return (w1.astype(bf16), b1,
            w2p.astype(bf16), b2p,
            w3p.astype(bf16), b3,
            w4.astype(bf16), b4)


def ae_forward(x_nchw, params, *, tm=256):
    """x_nchw: [N, C, H, W] float32 -> reconstruction [N, C, H, W] float32."""
    n, c, h, w = x_nchw.shape
    d = c * h * w
    x_flat = x_nchw.reshape(n, d)

    proc = preprocess_params(params)
    w1, b1, w2, b2, w3, b3, w4, b4 = proc

    # Pad the batch up to a multiple of the batch tile (TM multiple of 8, >=128).
    n_tiles = pl.cdiv(n, tm)
    n_pad = n_tiles * tm
    x_p = jnp.zeros((n_pad, d), jnp.bfloat16).at[:n].set(x_flat.astype(jnp.bfloat16))

    def resident(arr):
        # Full-array block, constant index_map -> loaded once, stays in VMEM.
        return pl.BlockSpec(arr.shape, lambda i: (0,) * arr.ndim)

    out_flat = pl.pallas_call(
        ae_kernel,
        out_shape=jax.ShapeDtypeStruct((n_pad, d), jnp.float32),
        grid=(n_tiles,),
        in_specs=[
            pl.BlockSpec((tm, d), lambda i: (i, 0)),   # x tile (pipelined)
            resident(w1), resident(b1),
            resident(w2), resident(b2),
            resident(w3), resident(b3),
            resident(w4), resident(b4),
        ],
        out_specs=pl.BlockSpec((tm, d), lambda i: (i, 0)),
        compiler_params=pltpu.CompilerParams(
            dimension_semantics=("parallel",),   # v7x: split batch tiles over 2 TCs
            vmem_limit_bytes=16 << 20,           # working set ~4 MiB; leave headroom
        ),
    )(x_p, w1, b1, w2, b2, w3, b3, w4, b4)

    return out_flat[:n].reshape(n, c, h, w)


def init_params(key, d_in, hidden, latent):
    """Deterministic parameter init (synthetic; no checkpoint load)."""
    ks = jax.random.split(key, 8)

    def lin(kw, kb, fan_in, fan_out):
        scale = 1.0 / jnp.sqrt(jnp.float32(fan_in))
        w = jax.random.uniform(kw, (fan_in, fan_out), jnp.float32, -scale, scale)
        b = jax.random.uniform(kb, (1, fan_out), jnp.float32, -scale, scale)
        return w, b

    w1, b1 = lin(ks[0], ks[1], d_in, hidden)     # encoder L1
    w2, b2 = lin(ks[2], ks[3], hidden, latent)   # encoder L2 -> latent
    w3, b3 = lin(ks[4], ks[5], latent, hidden)   # decoder L1
    w4, b4 = lin(ks[6], ks[7], hidden, d_in)     # decoder L2 -> recon
    return (w1, b1, w2, b2, w3, b3, w4, b4)


def ae_reference_f32(x_nchw, params):
    """Plain-JAX full-f32 reference (semantic check)."""
    n = x_nchw.shape[0]
    d = x_nchw.size // n
    x = x_nchw.reshape(n, d)
    w1, b1, w2, b2, w3, b3, w4, b4 = params
    h1 = jnp.maximum(x @ w1 + b1, 0.0)
    z = h1 @ w2 + b2
    h2 = jnp.maximum(z @ w3 + b3, 0.0)
    recon = h2 @ w4 + b4
    return recon.reshape(x_nchw.shape)


def ae_reference_bf16(x_nchw, proc):
    """Plain-JAX reference with the SAME bf16 operand / f32 accumulate recipe
    as the kernel (tight correctness check of the Pallas plumbing)."""
    n = x_nchw.shape[0]
    d = x_nchw.size // n
    x = x_nchw.reshape(n, d).astype(jnp.bfloat16)
    w1, b1, w2, b2, w3, b3, w4, b4 = proc
    h1 = jnp.maximum(jnp.dot(x, w1, preferred_element_type=jnp.float32) + b1,
                     0.0).astype(jnp.bfloat16)
    z = (jnp.dot(h1, w2, preferred_element_type=jnp.float32) + b2).astype(jnp.bfloat16)
    h2 = jnp.maximum(jnp.dot(z, w3, preferred_element_type=jnp.float32) + b3,
                     0.0).astype(jnp.bfloat16)
    recon = jnp.dot(h2, w4, preferred_element_type=jnp.float32) + b4
    return recon.reshape(x_nchw.shape)


if __name__ == "__main__":
    # Small shapes consistent with the module's image-autoencoder usage.
    N, C, H, W = 2, 4, 16, 16
    D = C * H * W          # 1024 flattened features
    HIDDEN = 128
    LATENT = 8

    key = jax.random.PRNGKey(0)
    k_x, k_p = jax.random.split(key)

    x = jax.random.normal(k_x, (N, C, H, W), dtype=jnp.float32)
    params = init_params(k_p, D, HIDDEN, LATENT)

    recon = jax.block_until_ready(ae_forward(x, params))
    assert recon.shape == x.shape

    # Tight check vs a plain-JAX reference using the identical bf16/f32 recipe.
    ref_bf16 = jax.block_until_ready(ae_reference_bf16(x, preprocess_params(params)))
    err_bf16 = float(jnp.max(jnp.abs(recon - ref_bf16)))
    assert err_bf16 < 1e-2, f"mismatch vs bf16-matching reference: {err_bf16}"

    # Looser semantic sanity check vs the full-f32 reference (bf16 operands).
    ref_f32 = jax.block_until_ready(ae_reference_f32(x, params))
    err_f32 = float(jnp.max(jnp.abs(recon - ref_f32)))
    assert err_f32 < 1e-1, f"mismatch vs f32 reference: {err_f32}"

    # TODO(synk): train_step / validation_step / matplotlib visualizations are
    # host-side utilities, not translated to Pallas.

    print("KERNEL_OK")
</pallas_src>

<mosaic_0001>
module attributes {stable_mosaic.version = 11 : i64} {
  func.func @ae_kernel(%arg0: i32, %arg1: memref<256x1024xbf16, #tpu.memory_space<vmem>>, %arg2: memref<1024x128xbf16, #tpu.memory_space<vmem>>, %arg3: memref<1x128xf32, #tpu.memory_space<vmem>>, %arg4: memref<128x128xbf16, #tpu.memory_space<vmem>>, %arg5: memref<1x128xf32, #tpu.memory_space<vmem>>, %arg6: memref<128x128xbf16, #tpu.memory_space<vmem>>, %arg7: memref<1x128xf32, #tpu.memory_space<vmem>>, %arg8: memref<128x1024xbf16, #tpu.memory_space<vmem>>, %arg9: memref<1x1024xf32, #tpu.memory_space<vmem>>, %arg10: memref<256x1024xf32, #tpu.memory_space<vmem>>) attributes {dimension_semantics = [#tpu.dimension_semantics<parallel>], iteration_bounds = array<i64: 1>, scalar_prefetch = 0 : i64, scratch_operands = 0 : i64, tpu.core_type = #tpu.core_type<tc>, window_params = [{transform_indices = @transform_0, window_bounds = array<i64: 256, 1024>}, {pipeline_mode = #tpu.pipeline_mode<synchronous>, transform_indices = @transform_1, window_bounds = array<i64: 1024, 128>}, {pipeline_mode = #tpu.pipeline_mode<synchronous>, transform_indices = @transform_2, window_bounds = array<i64: 1, 128>}, {pipeline_mode = #tpu.pipeline_mode<synchronous>, transform_indices = @transform_3, window_bounds = array<i64: 128, 128>}, {pipeline_mode = #tpu.pipeline_mode<synchronous>, transform_indices = @transform_4, window_bounds = array<i64: 1, 128>}, {pipeline_mode = #tpu.pipeline_mode<synchronous>, transform_indices = @transform_5, window_bounds = array<i64: 128, 128>}, {pipeline_mode = #tpu.pipeline_mode<synchronous>, transform_indices = @transform_6, window_bounds = array<i64: 1, 128>}, {pipeline_mode = #tpu.pipeline_mode<synchronous>, transform_indices = @transform_7, window_bounds = array<i64: 128, 1024>}, {pipeline_mode = #tpu.pipeline_mode<synchronous>, transform_indices = @transform_8, window_bounds = array<i64: 1, 1024>}, {transform_indices = @transform_9, window_bounds = array<i64: 256, 1024>}]} {
    %c0 = arith.constant 0 : index
    %c0_0 = arith.constant 0 : index
    %0 = vector.load %arg1[%c0, %c0_0] : memref<256x1024xbf16, #tpu.memory_space<vmem>>, vector<256x1024xbf16>
    %c0_1 = arith.constant 0 : index
    %c0_2 = arith.constant 0 : index
    %1 = vector.load %arg2[%c0_1, %c0_2] : memref<1024x128xbf16, #tpu.memory_space<vmem>>, vector<1024x128xbf16>
    %cst = arith.constant dense<0.000000e+00> : vector<256x128xf32>
    %2 = tpu.matmul %0, %1, %cst {dimension_numbers = #tpu.dot_dimension_numbers<[1], [0], [0], [1], [0, 0, 1, 1], [], []>} : vector<256x1024xbf16>, vector<1024x128xbf16>, vector<256x128xf32> -> vector<256x128xf32>
    %c0_3 = arith.constant 0 : index
    %c0_4 = arith.constant 0 : index
    %3 = vector.load %arg3[%c0_3, %c0_4] : memref<1x128xf32, #tpu.memory_space<vmem>>, vector<1x128xf32>
    %4 = vector.broadcast %3 : vector<1x128xf32> to vector<256x128xf32>
    %5 = arith.addf %2, %4 : vector<256x128xf32>
    %cst_5 = arith.constant 0.000000e+00 : f32
    %6 = vector.broadcast %cst_5 : f32 to vector<256x128xf32>
    %7 = arith.maximumf %5, %6 : vector<256x128xf32>
    %8 = arith.truncf %7 : vector<256x128xf32> to vector<256x128xbf16>
    %c0_6 = arith.constant 0 : index
    %c0_7 = arith.constant 0 : index
    %9 = vector.load %arg4[%c0_6, %c0_7] : memref<128x128xbf16, #tpu.memory_space<vmem>>, vector<128x128xbf16>
    %cst_8 = arith.constant dense<0.000000e+00> : vector<256x128xf32>
    %10 = tpu.matmul %8, %9, %cst_8 {dimension_numbers = #tpu.dot_dimension_numbers<[1], [0], [0], [1], [0, 0, 1, 1], [], []>} : vector<256x128xbf16>, vector<128x128xbf16>, vector<256x128xf32> -> vector<256x128xf32>
    %c0_9 = arith.constant 0 : index
    %c0_10 = arith.constant 0 : index
    %11 = vector.load %arg5[%c0_9, %c0_10] : memref<1x128xf32, #tpu.memory_space<vmem>>, vector<1x128xf32>
    %12 = vector.broadcast %11 : vector<1x128xf32> to vector<256x128xf32>
    %13 = arith.addf %10, %12 : vector<256x128xf32>
    %14 = arith.truncf %13 : vector<256x128xf32> to vector<256x128xbf16>
    %c0_11 = arith.constant 0 : index
    %c0_12 = arith.constant 0 : index
    %15 = vector.load %arg6[%c0_11, %c0_12] : memref<128x128xbf16, #tpu.memory_space<vmem>>, vector<128x128xbf16>
    %cst_13 = arith.constant dense<0.000000e+00> : vector<256x128xf32>
    %16 = tpu.matmul %14, %15, %cst_13 {dimension_numbers = #tpu.dot_dimension_numbers<[1], [0], [0], [1], [0, 0, 1, 1], [], []>} : vector<256x128xbf16>, vector<128x128xbf16>, vector<256x128xf32> -> vector<256x128xf32>
    %c0_14 = arith.constant 0 : index
    %c0_15 = arith.constant 0 : index
    %17 = vector.load %arg7[%c0_14, %c0_15] : memref<1x128xf32, #tpu.memory_space<vmem>>, vector<1x128xf32>
    %18 = vector.broadcast %17 : vector<1x128xf32> to vector<256x128xf32>
    %19 = arith.addf %16, %18 : vector<256x128xf32>
    %cst_16 = arith.constant 0.000000e+00 : f32
    %20 = vector.broadcast %cst_16 : f32 to vector<256x128xf32>
    %21 = arith.maximumf %19, %20 : vector<256x128xf32>
    %22 = arith.truncf %21 : vector<256x128xf32> to vector<256x128xbf16>
    %c0_17 = arith.constant 0 : index
    %c0_18 = arith.constant 0 : index
    %23 = vector.load %arg8[%c0_17, %c0_18] : memref<128x1024xbf16, #tpu.memory_space<vmem>>, vector<128x1024xbf16>
    %cst_19 = arith.constant dense<0.000000e+00> : vector<256x1024xf32>
    %24 = tpu.matmul %22, %23, %cst_19 {dimension_numbers = #tpu.dot_dimension_numbers<[1], [0], [0], [1], [0, 0, 1, 1], [], []>} : vector<256x128xbf16>, vector<128x1024xbf16>, vector<256x1024xf32> -> vector<256x1024xf32>
    %c0_20 = arith.constant 0 : index
    %c0_21 = arith.constant 0 : index
    %25 = vector.load %arg9[%c0_20, %c0_21] : memref<1x1024xf32, #tpu.memory_space<vmem>>, vector<1x1024xf32>
    %26 = vector.broadcast %25 : vector<1x1024xf32> to vector<256x1024xf32>
    %27 = arith.addf %24, %26 : vector<256x1024xf32>
    %c0_22 = arith.constant 0 : index
    %c0_23 = arith.constant 0 : index
    %28 = vector.load %arg10[%c0_22, %c0_23] : memref<256x1024xf32, #tpu.memory_space<vmem>>, vector<256x1024xf32>
    tpu.vector_store %arg10[%c0_22, %c0_23], %27 {strides = array<i32>} : memref<256x1024xf32, #tpu.memory_space<vmem>>, vector<256x1024xf32>,
    return
  }
  func.func @transform_0(%arg0: i32) -> (i32, i32) {
    %c0_i32 = arith.constant 0 : i32
    %c0_i32_0 = arith.constant 0 : i32
    return %arg0, %c0_i32 : i32, i32
  }
  func.func @transform_1(%arg0: i32) -> (i32, i32) {
    %c0_i32 = arith.constant 0 : i32
    %c0_i32_0 = arith.constant 0 : i32
    %c0_i32_1 = arith.constant 0 : i32
    return %c0_i32, %c0_i32_0 : i32, i32
  }
  func.func @transform_2(%arg0: i32) -> (i32, i32) {
    %c0_i32 = arith.constant 0 : i32
    %c0_i32_0 = arith.constant 0 : i32
    %c0_i32_1 = arith.constant 0 : i32
    return %c0_i32, %c0_i32_0 : i32, i32
  }
  func.func @transform_3(%arg0: i32) -> (i32, i32) {
    %c0_i32 = arith.constant 0 : i32
    %c0_i32_0 = arith.constant 0 : i32
    %c0_i32_1 = arith.constant 0 : i32
    return %c0_i32, %c0_i32_0 : i32, i32
  }
  func.func @transform_4(%arg0: i32) -> (i32, i32) {
    %c0_i32 = arith.constant 0 : i32
    %c0_i32_0 = arith.constant 0 : i32
    %c0_i32_1 = arith.constant 0 : i32
    return %c0_i32, %c0_i32_0 : i32, i32
  }
  func.func @transform_5(%arg0: i32) -> (i32, i32) {
    %c0_i32 = arith.constant 0 : i32
    %c0_i32_0 = arith.constant 0 : i32
    %c0_i32_1 = arith.constant 0 : i32
    return %c0_i32, %c0_i32_0 : i32, i32
  }
  func.func @transform_6(%arg0: i32) -> (i32, i32) {
    %c0_i32 = arith.constant 0 : i32
    %c0_i32_0 = arith.constant 0 : i32
    %c0_i32_1 = arith.constant 0 : i32
    return %c0_i32, %c0_i32_0 : i32, i32
  }
  func.func @transform_7(%arg0: i32) -> (i32, i32) {
    %c0_i32 = arith.constant 0 : i32
    %c0_i32_0 = arith.constant 0 : i32
    %c0_i32_1 = arith.constant 0 : i32
    return %c0_i32, %c0_i32_0 : i32, i32
  }
  func.func @transform_8(%arg0: i32) -> (i32, i32) {
    %c0_i32 = arith.constant 0 : i32
    %c0_i32_0 = arith.constant 0 : i32
    %c0_i32_1 = arith.constant 0 : i32
    return %c0_i32, %c0_i32_0 : i32, i32
  }
  func.func @transform_9(%arg0: i32) -> (i32, i32) {
    %c0_i32 = arith.constant 0 : i32
    %c0_i32_0 = arith.constant 0 : i32
    return %arg0, %c0_i32 : i32, i32
  }
}

</mosaic_0001>

<llo_original>
// kernel: tpu_custom_call.1
$region0: #{tpu_custom_call.1}
  #allocation0 [shape = 'u32[]', space=smem, size = 0x4, offset = 0x4, fixed_abs, tag = 'smem constant byte address 0x4 - core index']
  #allocation1 [shape = 'u32[72,128]{1,0:T(1,128)}', space=vmem, size = 0x9000, scoped, tag = 'internal scratch']
  %s0 = inlined_call_operand.hbm [shape: bf16[256,1024], index: 0, kind: input, shape index: {}]
  %s1 = inlined_call_operand.hbm [shape: bf16[1024,128], index: 1, kind: input, shape index: {}]
  %s2 = inlined_call_operand.vmem [shape: f32[1,128], index: 2, kind: input, shape index: {}]
  %s3 = inlined_call_operand.hbm [shape: bf16[128,128], index: 3, kind: input, shape index: {}]
  %s4 = inlined_call_operand.vmem [shape: f32[1,128], index: 4, kind: input, shape index: {}]
  %s5 = inlined_call_operand.hbm [shape: bf16[128,128], index: 5, kind: input, shape index: {}]
  %s6 = inlined_call_operand.vmem [shape: f32[1,128], index: 6, kind: input, shape index: {}]
  %s7 = inlined_call_operand.hbm [shape: bf16[128,1024], index: 7, kind: input, shape index: {}]
  %s8 = inlined_call_operand.hbm [shape: f32[1,1024], index: 8, kind: input, shape index: {}]
  %s9 = inlined_call_operand.hbm [shape: f32[256,1024], index: 9, kind: output, shape index: {}]
  %s10 = sld [smem:[#allocation0]]
  $region70: #{tpu_custom_call.1} parent=0
    _
  %s12 = ssub.s32 1, %s10
  %s13 = scalar_select 0, %s12, %s10
  $region1: #{tpu_custom_call.1} parent=0
    #allocation2 [shape = 'u8[524288]{0}', space=vmem, size = 0x80000, scoped, tag = 'input window, operand 0, single buffered']
    #allocation3 [shape = 's32[1]{0}', space=sflag, size = 0x4, scoped, tag = 'scoped memory for tpu_custom_call.1']
    #allocation4 [shape = 's32[1]{0}', space=sflag, size = 0x4, scoped, tag = 'scoped memory for tpu_custom_call.1']
    #allocation5 [shape = 'u8[262144]{0}', space=vmem, size = 0x40000, scoped, tag = 'input window, operand 1, single buffered']
    #allocation6 [shape = 's32[1]{0}', space=sflag, size = 0x4, scoped, tag = 'scoped memory for tpu_custom_call.1']
    #allocation7 [shape = 'u8[32768]{0}', space=vmem, size = 0x8000, scoped, tag = 'input window, operand 3, single buffered']
    #allocation8 [shape = 'u8[32768]{0}', space=vmem, size = 0x8000, scoped, tag = 'input window, operand 5, single buffered']
    #allocation9 [shape = 's32[1]{0}', space=sflag, size = 0x4, scoped, tag = 'scoped memory for tpu_custom_call.1']
    #allocation10 [shape = 'u8[262144]{0}', space=vmem, size = 0x40000, scoped, tag = 'input window, operand 7, single buffered']
    #allocation11 [shape = 'u8[4096]{0}', space=vmem, size = 0x1000, scoped, tag = 'input window, operand 8, single buffered']
    #allocation12 [shape = 's32[1]{0}', space=sflag, size = 0x4, scoped, tag = 'scoped memory for tpu_custom_call.1']
    #allocation13 [shape = 'u8[1048576]{0}', space=vmem, size = 0x100000, scoped, tag = 'output window, operand 0, single buffered']
    %14 = vsyncpa [#allocation3], 0
    %15 = vsyncpa [#allocation6], 0
    %16 = vsyncpa [#allocation9], 0
    %17 = vsyncpa [#allocation12], 0
    %18 = vsyncpa [#allocation4], 0
    // Predicated region
    $region2: #{tpu_custom_call.1} parent=1 // pred_check
      _
    $region3: #{tpu_custom_call.1} parent=1 // pred_check_branch
      %20 = sbr.rel (0) target = $region5
    $region4: #{tpu_custom_call.1} parent=1 // pred_region
      %22 = vsyncadd [#allocation3], 0
      %s23 = sshll.u32 %s0, 4
      %s24 = int_to_ptr.hbm [resolvable:$true] %s23
      %s25 = sshll.u32 [#allocation2], 4
      %s26 = int_to_ptr.vmem [resolvable:$true] %s25
      %31 = dma.hbm_to_vmem [thread:$0]  %s24, 16384, %s26, [#allocation3], 512, 512, 32
    $region5: #{tpu_custom_call.1} parent=1 // pred_fallthru
      _
    // Predicated region
    $region6: #{tpu_custom_call.1} parent=1 // pred_check
      _
    $region7: #{tpu_custom_call.1} parent=1 // pred_check_branch
      %33 = sbr.rel (0) target = $region9
    $region8: #{tpu_custom_call.1} parent=1 // pred_region
      %35 = vsyncadd [#allocation6], 0
      %s36 = sshll.u32 %s1, 4
      %s37 = int_to_ptr.hbm [resolvable:$true] %s36
      %s38 = sshll.u32 [#allocation5], 4
      %s39 = int_to_ptr.vmem [resolvable:$true] %s38
      %44 = dma.hbm_to_vmem [thread:$0]  %s37, 8192, %s39, [#allocation6], 64, 64, 4
    $region9: #{tpu_custom_call.1} parent=1 // pred_fallthru
      _
    // Predicated region
    $region10: #{tpu_custom_call.1} parent=1 // pred_check
      _
    $region11: #{tpu_custom_call.1} parent=1 // pred_check_branch
      %46 = sbr.rel (0) target = $region13
    $region12: #{tpu_custom_call.1} parent=1 // pred_region
      _
    $region13: #{tpu_custom_call.1} parent=1 // pred_fallthru
      _
    // Predicated region
    $region14: #{tpu_custom_call.1} parent=1 // pred_check
      _
    $region15: #{tpu_custom_call.1} parent=1 // pred_check_branch
      %48 = sbr.rel (0) target = $region17
    $region16: #{tpu_custom_call.1} parent=1 // pred_region
      %50 = vsyncadd [#allocation6], 0
      %s51 = sshll.u32 %s3, 4
      %s52 = int_to_ptr.hbm [resolvable:$true] %s51
      %s53 = sshll.u32 [#allocation7], 4
      %s54 = int_to_ptr.vmem [resolvable:$true] %s53
      %59 = dma.hbm_to_vmem [thread:$0]  %s52, 1024, %s54, [#allocation6], 64, 64, 4
    $region17: #{tpu_custom_call.1} parent=1 // pred_fallthru
      _
    // Predicated region
    $region18: #{tpu_custom_call.1} parent=1 // pred_check
      _
    $region19: #{tpu_custom_call.1} parent=1 // pred_check_branch
      %61 = sbr.rel (0) target = $region21
    $region20: #{tpu_custom_call.1} parent=1 // pred_region
      _
    $region21: #{tpu_custom_call.1} parent=1 // pred_fallthru
      _
    // Predicated region
    $region22: #{tpu_custom_call.1} parent=1 // pred_check
      _
    $region23: #{tpu_custom_call.1} parent=1 // pred_check_branch
      %63 = sbr.rel (0) target = $region25
    $region24: #{tpu_custom_call.1} parent=1 // pred_region
      %65 = vsyncadd [#allocation9], 0
      %s66 = sshll.u32 %s5, 4
      %s67 = int_to_ptr.hbm [resolvable:$true] %s66
      %s68 = sshll.u32 [#allocation8], 4
      %s69 = int_to_ptr.vmem [resolvable:$true] %s68
      %74 = dma.hbm_to_vmem [thread:$0]  %s67, 1024, %s69, [#allocation9], 64, 64, 4
    $region25: #{tpu_custom_call.1} parent=1 // pred_fallthru
      _
    // Predicated region
    $region26: #{tpu_custom_call.1} parent=1 // pred_check
      _
    $region27: #{tpu_custom_call.1} parent=1 // pred_check_branch
      %76 = sbr.rel (0) target = $region29
    $region28: #{tpu_custom_call.1} parent=1 // pred_region
      _
    $region29: #{tpu_custom_call.1} parent=1 // pred_fallthru
      _
    // Predicated region
    $region30: #{tpu_custom_call.1} parent=1 // pred_check
      _
    $region31: #{tpu_custom_call.1} parent=1 // pred_check_branch
      %78 = sbr.rel (0) target = $region33
    $region32: #{tpu_custom_call.1} parent=1 // pred_region
      %80 = vsyncadd [#allocation9], 0
      %s81 = sshll.u32 %s7, 4
      %s82 = int_to_ptr.hbm [resolvable:$true] %s81
      %s83 = sshll.u32 [#allocation10], 4
      %s84 = int_to_ptr.vmem [resolvable:$true] %s83
      %89 = dma.hbm_to_vmem [thread:$0]  %s82, 8192, %s84, [#allocation9], 512, 512, 32
    $region33: #{tpu_custom_call.1} parent=1 // pred_fallthru
      _
    // Predicated region
    $region34: #{tpu_custom_call.1} parent=1 // pred_check
      _
    $region35: #{tpu_custom_call.1} parent=1 // pred_check_branch
      %91 = sbr.rel (0) target = $region37
    $region36: #{tpu_custom_call.1} parent=1 // pred_region
      %93 = vsyncadd [#allocation12], 0
      %s95 = sshll.u32 %s8, 4
      %s96 = int_to_ptr.hbm [resolvable:$true] %s95
      %s97 = sshll.u32 [#allocation11], 4
      %s98 = int_to_ptr.vmem [resolvable:$true] %s97
      %100 = dma.hbm_to_vmem [thread:$0]  %s96, 128, %s98, [#allocation12]
    $region37: #{tpu_custom_call.1} parent=1 // pred_fallthru
      _
    // Predicated region
    $region38: #{tpu_custom_call.1} parent=1 // pred_check
      _
    $region39: #{tpu_custom_call.1} parent=1 // pred_check_branch
      %102 = sbr.rel (0) target = $region41
    $region40: #{tpu_custom_call.1} parent=1 // pred_region
      %104 = dma.done [#allocation3], 16384
    $region41: #{tpu_custom_call.1} parent=1 // pred_fallthru
      _
    // Predicated region
    $region42: #{tpu_custom_call.1} parent=1 // pred_check
      _
    $region43: #{tpu_custom_call.1} parent=1 // pred_check_branch
      %106 = sbr.rel (0) target = $region45
    $region44: #{tpu_custom_call.1} parent=1 // pred_region
      %108 = dma.done [#allocation6], 8192
    $region45: #{tpu_custom_call.1} parent=1 // pred_fallthru
      _
    // Predicated region
    $region46: #{tpu_custom_call.1} parent=1 // pred_check
      _
    $region47: #{tpu_custom_call.1} parent=1 // pred_check_branch
      %110 = sbr.rel (0) target = $region49
    $region48: #{tpu_custom_call.1} parent=1 // pred_region
      %112 = dma.done [#allocation6], 1024
    $region49: #{tpu_custom_call.1} parent=1 // pred_fallthru
      _
    // Predicated region
    $region50: #{tpu_custom_call.1} parent=1 // pred_check
      _
    $region51: #{tpu_custom_call.1} parent=1 // pred_check_branch
      %114 = sbr.rel (0) target = $region53
    $region52: #{tpu_custom_call.1} parent=1 // pred_region
      %116 = dma.done [#allocation9], 1024
    $region53: #{tpu_custom_call.1} parent=1 // pred_fallthru
      _
    // Predicated region
    $region54: #{tpu_custom_call.1} parent=1 // pred_check
      _
    $region55: #{tpu_custom_call.1} parent=1 // pred_check_branch
      %118 = sbr.rel (0) target = $region57
    $region56: #{tpu_custom_call.1} parent=1 // pred_region
      %120 = dma.done [#allocation9], 8192
    $region57: #{tpu_custom_call.1} parent=1 // pred_fallthru
      _
    // Predicated region
    $region58: #{tpu_custom_call.1} parent=1 // pred_check
      _
    $region59: #{tpu_custom_call.1} parent=1 // pred_check_branch
      %122 = sbr.rel (0) target = $region61
    $region60: #{tpu_custom_call.1} parent=1 // pred_region
      %124 = dma.done [#allocation12], 128
    $region61: #{tpu_custom_call.1} parent=1 // pred_fallthru
      _
    %v125 = vld [vmem:[#allocation2] sm:$0xff]
    %v126 = vld [vmem:[#allocation2 + $0x8] sm:$0xff]
    %v127 = vld [vmem:[#allocation2 + $0x10] sm:$0xff]
    %v128 = vld [vmem:[#allocation2 + $0x18] sm:$0xff]
    %v129 = vld [vmem:[#allocation2 + $0x20] sm:$0xff]
    %v130 = vld [vmem:[#allocation2 + $0x28] sm:$0xff]
    %v131 = vld [vmem:[#allocation2 + $0x30] sm:$0xff]
    %v132 = vld [vmem:[#allocation2 + $0x38] sm:$0xff]
    %v133 = vld [vmem:[#allocation2 + $0x40] sm:$0xff]
    %v134 = vld [vmem:[#allocation2 + $0x48] sm:$0xff]
    %v135 = vld [vmem:[#allocation2 + $0x50] sm:$0xff]
    %v136 = vld [vmem:[#allocation2 + $0x58] sm:$0xff]
    %v137 = vld [vmem:[#allocation2 + $0x60] sm:$0xff]
    %v138 = vld [vmem:[#allocation2 + $0x68] sm:$0xff]
    %v139 = vld [vmem:[#allocation2 + $0x70] sm:$0xff]
    %v140 = vld [vmem:[#allocation2 + $0x78] sm:$0xff]
    %v141 = vld [vmem:[#allocation2 + $0x80] sm:$0xff]
    %v142 = vld [vmem:[#allocation2 + $0x88] sm:$0xff]
    %v143 = vld [vmem:[#allocation2 + $0x90] sm:$0xff]
    %v144 = vld [vmem:[#allocation2 + $0x98] sm:$0xff]
    %v145 = vld [vmem:[#allocation2 + $0xa0] sm:$0xff]
    %v146 = vld [vmem:[#allocation2 + $0xa8] sm:$0xff]
    %v147 = vld [vmem:[#allocation2 + $0xb0] sm:$0xff]
    %v148 = vld [vmem:[#allocation2 + $0xb8] sm:$0xff]
    %v149 = vld [vmem:[#allocation2 + $0xc0] sm:$0xff]
    %v150 = vld [vmem:[#allocation2 + $0xc8] sm:$0xff]
    %v151 = vld [vmem:[#allocation2 + $0xd0] sm:$0xff]
    %v152 = vld [vmem:[#allocation2 + $0xd8] sm:$0xff]
    %v153 = vld [vmem:[#allocation2 + $0xe0] sm:$0xff]
    %v154 = vld [vmem:[#allocation2 + $0xe8] sm:$0xff]
    %v155 = vld [vmem:[#allocation2 + $0xf0] sm:$0xff]
    %v156 = vld [vmem:[#allocation2 + $0xf8] sm:$0xff]
    %v157 = vld [vmem:[#allocation2 + $0x100] sm:$0xff]
    %v158 = vld [vmem:[#allocation2 + $0x108] sm:$0xff]
    %v159 = vld [vmem:[#allocation2 + $0x110] sm:$0xff]
    %v160 = vld [vmem:[#allocation2 + $0x118] sm:$0xff]
    %v161 = vld [vmem:[#allocation2 + $0x120] sm:$0xff]
    %v162 = vld [vmem:[#allocation2 + $0x128] sm:$0xff]
    %v163 = vld [vmem:[#allocation2 + $0x130] sm:$0xff]
    %v164 = vld [vmem:[#allocation2 + $0x138] sm:$0xff]
    %v165 = vld [vmem:[#allocation2 + $0x140] sm:$0xff]
    %v166 = vld [vmem:[#allocation2 + $0x148] sm:$0xff]
    %v167 = vld [vmem:[#allocation2 + $0x150] sm:$0xff]
    %v168 = vld [vmem:[#allocation2 + $0x158] sm:$0xff]
    %v169 = vld [vmem:[#allocation2 + $0x160] sm:$0xff]
    %v170 = vld [vmem:[#allocation2 + $0x168] sm:$0xff]
    %v171 = vld [vmem:[#allocation2 + $0x170] sm:$0xff]
    %v172 = vld [vmem:[#allocation2 + $0x178] sm:$0xff]
    %v173 = vld [vmem:[#allocation2 + $0x180] sm:$0xff]
    %v174 = vld [vmem:[#allocation2 + $0x188] sm:$0xff]
    %v175 = vld [vmem:[#allocation2 + $0x190] sm:$0xff]
    %v176 = vld [vmem:[#allocation2 + $0x198] sm:$0xff]
    %v177 = vld [vmem:[#allocation2 + $0x1a0] sm:$0xff]
    %v178 = vld [vmem:[#allocation2 + $0x1a8] sm:$0xff]
    %v179 = vld [vmem:[#allocation2 + $0x1b0] sm:$0xff]
    %v180 = vld [vmem:[#allocation2 + $0x1b8] sm:$0xff]
    %v181 = vld [vmem:[#allocation2 + $0x1c0] sm:$0xff]
    %v182 = vld [vmem:[#allocation2 + $0x1c8] sm:$0xff]
    %v183 = vld [vmem:[#allocation2 + $0x1d0] sm:$0xff]
    %v184 = vld [vmem:[#allocation2 + $0x1d8] sm:$0xff]
    %v185 = vld [vmem:[#allocation2 + $0x1e0] sm:$0xff]
    %v186 = vld [vmem:[#allocation2 + $0x1e8] sm:$0xff]
    %v187 = vld [vmem:[#allocation2 + $0x1f0] sm:$0xff]
    %v188 = vld [vmem:[#allocation2 + $0x1f8] sm:$0xff]
    %v189 = vld [vmem:[#allocation2 + $0x200] sm:$0xff]
    %v190 = vld [vmem:[#allocation2 + $0x208] sm:$0xff]
    %v191 = vld [vmem:[#allocation2 + $0x210] sm:$0xff]
    %v192 = vld [vmem:[#allocation2 + $0x218] sm:$0xff]
    %v193 = vld [vmem:[#allocation2 + $0x220] sm:$0xff]
    %v194 = vld [vmem:[#allocation2 + $0x228] sm:$0xff]
    %v195 = vld [vmem:[#allocation2 + $0x230] sm:$0xff]
    %v196 = vld [vmem:[#allocation2 + $0x238] sm:$0xff]
    %v197 = vld [vmem:[#allocation2 + $0x240] sm:$0xff]
    %v198 = vld [vmem:[#allocation2 + $0x248] sm:$0xff]
    %v199 = vld [vmem:[#allocation2 + $0x250] sm:$0xff]
    %v200 = vld [vmem:[#allocation2 + $0x258] sm:$0xff]
    %v201 = vld [vmem:[#allocation2 + $0x260] sm:$0xff]
    %v202 = vld [vmem:[#allocation2 + $0x268] sm:$0xff]
    %v203 = vld [vmem:[#allocation2 + $0x270] sm:$0xff]
    %v204 = vld [vmem:[#allocation2 + $0x278] sm:$0xff]
    %v205 = vld [vmem:[#allocation2 + $0x280] sm:$0xff]
    %v206 = vld [vmem:[#allocation2 + $0x288] sm:$0xff]
    %v207 = vld [vmem:[#allocation2 + $0x290] sm:$0xff]
    %v208 = vld [vmem:[#allocation2 + $0x298] sm:$0xff]
    %v209 = vld [vmem:[#allocation2 + $0x2a0] sm:$0xff]
    %v210 = vld [vmem:[#allocation2 + $0x2a8] sm:$0xff]
    %v211 = vld [vmem:[#allocation2 + $0x2b0] sm:$0xff]
    %v212 = vld [vmem:[#allocation2 + $0x2b8] sm:$0xff]
    %v213 = vld [vmem:[#allocation2 + $0x2c0] sm:$0xff]
    %v214 = vld [vmem:[#allocation2 + $0x2c8] sm:$0xff]
    %v215 = vld [vmem:[#allocation2 + $0x2d0] sm:$0xff]
    %v216 = vld [vmem:[#allocation2 + $0x2d8] sm:$0xff]
    %v217 = vld [vmem:[#allocation2 + $0x2e0] sm:$0xff]
    %v218 = vld [vmem:[#allocation2 + $0x2e8] sm:$0xff]
    %v219 = vld [vmem:[#allocation2 + $0x2f0] sm:$0xff]
    %v220 = vld [vmem:[#allocation2 + $0x2f8] sm:$0xff]
    %v221 = vld [vmem:[#allocation2 + $0x300] sm:$0xff]
    %v222 = vld [vmem:[#allocation2 + $0x308] sm:$0xff]
    %v223 = vld [vmem:[#allocation2 + $0x310] sm:$0xff]
    %v224 = vld [vmem:[#allocation2 + $0x318] sm:$0xff]
    %v225 = vld [vmem:[#allocation2 + $0x320] sm:$0xff]
    %v226 = vld [vmem:[#allocation2 + $0x328] sm:$0xff]
    %v227 = vld [vmem:[#allocation2 + $0x330] sm:$0xff]
    %v228 = vld [vmem:[#allocation2 + $0x338] sm:$0xff]
    %v229 = vld [vmem:[#allocation2 + $0x340] sm:$0xff]
    %v230 = vld [vmem:[#allocation2 + $0x348] sm:$0xff]
    %v231 = vld [vmem:[#allocation2 + $0x350] sm:$0xff]
    %v232 = vld [vmem:[#allocation2 + $0x358] sm:$0xff]
    %v233 = vld [vmem:[#allocation2 + $0x360] sm:$0xff]
    %v234 = vld [vmem:[#allocation2 + $0x368] sm:$0xff]
    %v235 = vld [vmem:[#allocation2 + $0x370] sm:$0xff]
    %v236 = vld [vmem:[#allocation2 + $0x378] sm:$0xff]
    %v237 = vld [vmem:[#allocation2 + $0x380] sm:$0xff]
    %v238 = vld [vmem:[#allocation2 + $0x388] sm:$0xff]
    %v239 = vld [vmem:[#allocation2 + $0x390] sm:$0xff]
    %v240 = vld [vmem:[#allocation2 + $0x398] sm:$0xff]
    %v241 = vld [vmem:[#allocation2 + $0x3a0] sm:$0xff]
    %v242 = vld [vmem:[#allocation2 + $0x3a8] sm:$0xff]
    %v243 = vld [vmem:[#allocation2 + $0x3b0] sm:$0xff]
    %v244 = vld [vmem:[#allocation2 + $0x3b8] sm:$0xff]
    %v245 = vld [vmem:[#allocation2 + $0x3c0] sm:$0xff]
    %v246 = vld [vmem:[#allocation2 + $0x3c8] sm:$0xff]
    %v247 = vld [vmem:[#allocation2 + $0x3d0] sm:$0xff]
    %v248 = vld [vmem:[#allocation2 + $0x3d8] sm:$0xff]
    %v249 = vld [vmem:[#allocation2 + $0x3e0] sm:$0xff]
    %v250 = vld [vmem:[#allocation2 + $0x3e8] sm:$0xff]
    %v251 = vld [vmem:[#allocation2 + $0x3f0] sm:$0xff]
    %v252 = vld [vmem:[#allocation2 + $0x3f8] sm:$0xff]
    %v253 = vld [vmem:[#allocation5] sm:$0xf]
    %v254 = vld [vmem:[#allocation5 + $0x4] sm:$0xf]
    %v255 = vld [vmem:[#allocation5 + $0x8] sm:$0xf]
    %v256 = vld [vmem:[#allocation5 + $0xc] sm:$0xf]
    %v257 = vld [vmem:[#allocation5 + $0x10] sm:$0xf]
    %v258 = vld [vmem:[#allocation5 + $0x14] sm:$0xf]
    %v259 = vld [vmem:[#allocation5 + $0x18] sm:$0xf]
    %v260 = vld [vmem:[#allocation5 + $0x1c] sm:$0xf]
    %v261 = vld [vmem:[#allocation5 + $0x20] sm:$0xf]
    %v262 = vld [vmem:[#allocation5 + $0x24] sm:$0xf]
    %v263 = vld [vmem:[#allocation5 + $0x28] sm:$0xf]
    %v264 = vld [vmem:[#allocation5 + $0x2c] sm:$0xf]
    %v265 = vld [vmem:[#allocation5 + $0x30] sm:$0xf]
    %v266 = vld [vmem:[#allocation5 + $0x34] sm:$0xf]
    %v267 = vld [vmem:[#allocation5 + $0x38] sm:$0xf]
    %v268 = vld [vmem:[#allocation5 + $0x3c] sm:$0xf]
    %v269 = vld [vmem:[#allocation5 + $0x40] sm:$0xf]
    %v270 = vld [vmem:[#allocation5 + $0x44] sm:$0xf]
    %v271 = vld [vmem:[#allocation5 + $0x48] sm:$0xf]
    %v272 = vld [vmem:[#allocation5 + $0x4c] sm:$0xf]
    %v273 = vld [vmem:[#allocation5 + $0x50] sm:$0xf]
    %v274 = vld [vmem:[#allocation5 + $0x54] sm:$0xf]
    %v275 = vld [vmem:[#allocation5 + $0x58] sm:$0xf]
    %v276 = vld [vmem:[#allocation5 + $0x5c] sm:$0xf]
    %v277 = vld [vmem:[#allocation5 + $0x60] sm:$0xf]
    %v278 = vld [vmem:[#allocation5 + $0x64] sm:$0xf]
    %v279 = vld [vmem:[#allocation5 + $0x68] sm:$0xf]
    %v280 = vld [vmem:[#allocation5 + $0x6c] sm:$0xf]
    %v281 = vld [vmem:[#allocation5 + $0x70] sm:$0xf]
    %v282 = vld [vmem:[#allocation5 + $0x74] sm:$0xf]
    %v283 = vld [vmem:[#allocation5 + $0x78] sm:$0xf]
    %v284 = vld [vmem:[#allocation5 + $0x7c] sm:$0xf]
    %v285 = vld [vmem:[#allocation5 + $0x80] sm:$0xf]
    %v286 = vld [vmem:[#allocation5 + $0x84] sm:$0xf]
    %v287 = vld [vmem:[#allocation5 + $0x88] sm:$0xf]
    %v288 = vld [vmem:[#allocation5 + $0x8c] sm:$0xf]
    %v289 = vld [vmem:[#allocation5 + $0x90] sm:$0xf]
    %v290 = vld [vmem:[#allocation5 + $0x94] sm:$0xf]
    %v291 = vld [vmem:[#allocation5 + $0x98] sm:$0xf]
    %v292 = vld [vmem:[#allocation5 + $0x9c] sm:$0xf]
    %v293 = vld [vmem:[#allocation5 + $0xa0] sm:$0xf]
    %v294 = vld [vmem:[#allocation5 + $0xa4] sm:$0xf]
    %v295 = vld [vmem:[#allocation5 + $0xa8] sm:$0xf]
    %v296 = vld [vmem:[#allocation5 + $0xac] sm:$0xf]
    %v297 = vld [vmem:[#allocation5 + $0xb0] sm:$0xf]
    %v298 = vld [vmem:[#allocation5 + $0xb4] sm:$0xf]
    %v299 = vld [vmem:[#allocation5 + $0xb8] sm:$0xf]
    %v300 = vld [vmem:[#allocation5 + $0xbc] sm:$0xf]
    %v301 = vld [vmem:[#allocation5 + $0xc0] sm:$0xf]
    %v302 = vld [vmem:[#allocation5 + $0xc4] sm:$0xf]
    %v303 = vld [vmem:[#allocation5 + $0xc8] sm:$0xf]
    %v304 = vld [vmem:[#allocation5 + $0xcc] sm:$0xf]
    %v305 = vld [vmem:[#allocation5 + $0xd0] sm:$0xf]
    %v306 = vld [vmem:[#allocation5 + $0xd4] sm:$0xf]
    %v307 = vld [vmem:[#allocation5 + $0xd8] sm:$0xf]
    %v308 = vld [vmem:[#allocation5 + $0xdc] sm:$0xf]
    %v309 = vld [vmem:[#allocation5 + $0xe0] sm:$0xf]
    %v310 = vld [vmem:[#allocation5 + $0xe4] sm:$0xf]
    %v311 = vld [vmem:[#allocation5 + $0xe8] sm:$0xf]
    %v312 = vld [vmem:[#allocation5 + $0xec] sm:$0xf]
    %v313 = vld [vmem:[#allocation5 + $0xf0] sm:$0xf]
    %v314 = vld [vmem:[#allocation5 + $0xf4] sm:$0xf]
    %v315 = vld [vmem:[#allocation5 + $0xf8] sm:$0xf]
    %v316 = vld [vmem:[#allocation5 + $0xfc] sm:$0xf]
    %v317 = vld [vmem:[#allocation5 + $0x100] sm:$0xf]
    %v318 = vld [vmem:[#allocation5 + $0x104] sm:$0xf]
    %v319 = vld [vmem:[#allocation5 + $0x108] sm:$0xf]
    %v320 = vld [vmem:[#allocation5 + $0x10c] sm:$0xf]
    %v321 = vld [vmem:[#allocation5 + $0x110] sm:$0xf]
    %v322 = vld [vmem:[#allocation5 + $0x114] sm:$0xf]
    %v323 = vld [vmem:[#allocation5 + $0x118] sm:$0xf]
    %v324 = vld [vmem:[#allocation5 + $0x11c] sm:$0xf]
    %v325 = vld [vmem:[#allocation5 + $0x120] sm:$0xf]
    %v326 = vld [vmem:[#allocation5 + $0x124] sm:$0xf]
    %v327 = vld [vmem:[#allocation5 + $0x128] sm:$0xf]
    %v328 = vld [vmem:[#allocation5 + $0x12c] sm:$0xf]
    %v329 = vld [vmem:[#allocation5 + $0x130] sm:$0xf]
    %v330 = vld [vmem:[#allocation5 + $0x134] sm:$0xf]
    %v331 = vld [vmem:[#allocation5 + $0x138] sm:$0xf]
    %v332 = vld [vmem:[#allocation5 + $0x13c] sm:$0xf]
    %v333 = vld [vmem:[#allocation5 + $0x140] sm:$0xf]
    %v334 = vld [vmem:[#allocation5 + $0x144] sm:$0xf]
    %v335 = vld [vmem:[#allocation5 + $0x148] sm:$0xf]
    %v336 = vld [vmem:[#allocation5 + $0x14c] sm:$0xf]
    %v337 = vld [vmem:[#allocation5 + $0x150] sm:$0xf]
    %v338 = vld [vmem:[#allocation5 + $0x154] sm:$0xf]
    %v339 = vld [vmem:[#allocation5 + $0x158] sm:$0xf]
    %v340 = vld [vmem:[#allocation5 + $0x15c] sm:$0xf]
    %v341 = vld [vmem:[#allocation5 + $0x160] sm:$0xf]
    %v342 = vld [vmem:[#allocation5 + $0x164] sm:$0xf]
    %v343 = vld [vmem:[#allocation5 + $0x168] sm:$0xf]
    %v344 = vld [vmem:[#allocation5 + $0x16c] sm:$0xf]
    %v345 = vld [vmem:[#allocation5 + $0x170] sm:$0xf]
    %v346 = vld [vmem:[#allocation5 + $0x174] sm:$0xf]
    %v347 = vld [vmem:[#allocation5 + $0x178] sm:$0xf]
    %v348 = vld [vmem:[#allocation5 + $0x17c] sm:$0xf]
    %v349 = vld [vmem:[#allocation5 + $0x180] sm:$0xf]
    %v350 = vld [vmem:[#allocation5 + $0x184] sm:$0xf]
    %v351 = vld [vmem:[#allocation5 + $0x188] sm:$0xf]
    %v352 = vld [vmem:[#allocation5 + $0x18c] sm:$0xf]
    %v353 = vld [vmem:[#allocation5 + $0x190] sm:$0xf]
    %v354 = vld [vmem:[#allocation5 + $0x194] sm:$0xf]
    %v355 = vld [vmem:[#allocation5 + $0x198] sm:$0xf]
    %v356 = vld [vmem:[#allocation5 + $0x19c] sm:$0xf]
    %v357 = vld [vmem:[#allocation5 + $0x1a0] sm:$0xf]
    %v358 = vld [vmem:[#allocation5 + $0x1a4] sm:$0xf]
    %v359 = vld [vmem:[#allocation5 + $0x1a8] sm:$0xf]
    %v360 = vld [vmem:[#allocation5 + $0x1ac] sm:$0xf]
    %v361 = vld [vmem:[#allocation5 + $0x1b0] sm:$0xf]
    %v362 = vld [vmem:[#allocation5 + $0x1b4] sm:$0xf]
    %v363 = vld [vmem:[#allocation5 + $0x1b8] sm:$0xf]
    %v364 = vld [vmem:[#allocation5 + $0x1bc] sm:$0xf]
    %v365 = vld [vmem:[#allocation5 + $0x1c0] sm:$0xf]
    %v366 = vld [vmem:[#allocation5 + $0x1c4] sm:$0xf]
    %v367 = vld [vmem:[#allocation5 + $0x1c8] sm:$0xf]
    %v368 = vld [vmem:[#allocation5 + $0x1cc] sm:$0xf]
    %v369 = vld [vmem:[#allocation5 + $0x1d0] sm:$0xf]
    %v370 = vld [vmem:[#allocation5 + $0x1d4] sm:$0xf]
    %v371 = vld [vmem:[#allocation5 + $0x1d8] sm:$0xf]
    %v372 = vld [vmem:[#allocation5 + $0x1dc] sm:$0xf]
    %v373 = vld [vmem:[#allocation5 + $0x1e0] sm:$0xf]
    %v374 = vld [vmem:[#allocation5 + $0x1e4] sm:$0xf]
    %v375 = vld [vmem:[#allocation5 + $0x1e8] sm:$0xf]
    %v376 = vld [vmem:[#allocation5 + $0x1ec] sm:$0xf]
    %v377 = vld [vmem:[#allocation5 + $0x1f0] sm:$0xf]
    %v378 = vld [vmem:[#allocation5 + $0x1f4] sm:$0xf]
    %v379 = vld [vmem:[#allocation5 + $0x1f8] sm:$0xf]
    %v380 = vld [vmem:[#allocation5 + $0x1fc] sm:$0xf]
    %v381 = vld [vmem:[%s2] sm:$0x1]
    %v383 = vperm.slane %v381, 0
    %v513 = vunpack.c.l.b16 %v125
    %v514 = vunpack.c.h.b16 %v125
    %v515 = vunpack.c.l.b16 %v126
    %v516 = vunpack.c.h.b16 %v126
    %v517 = vunpack.c.l.b16 %v127
    %v518 = vunpack.c.h.b16 %v127
    %v519 = vunpack.c.l.b16 %v128
    %v520 = vunpack.c.h.b16 %v128
    %v521 = vunpack.c.l.b16 %v129
    %v522 = vunpack.c.h.b16 %v129
    %v523 = vunpack.c.l.b16 %v130
    %v524 = vunpack.c.h.b16 %v130
    %v525 = vunpack.c.l.b16 %v131
    %v526 = vunpack.c.h.b16 %v131
    %v527 = vunpack.c.l.b16 %v132
    %v528 = vunpack.c.h.b16 %v132
    %v529 = vunpack.c.l.b16 %v133
    %v530 = vunpack.c.h.b16 %v133
    %v531 = vunpack.c.l.b16 %v134
    %v532 = vunpack.c.h.b16 %v134
    %v533 = vunpack.c.l.b16 %v135
    %v534 = vunpack.c.h.b16 %v135
    %v535 = vunpack.c.l.b16 %v136
    %v536 = vunpack.c.h.b16 %v136
    %v537 = vunpack.c.l.b16 %v137
    %v538 = vunpack.c.h.b16 %v137
    %v539 = vunpack.c.l.b16 %v138
    %v540 = vunpack.c.h.b16 %v138
    %v541 = vunpack.c.l.b16 %v139
    %v542 = vunpack.c.h.b16 %v139
    %v543 = vunpack.c.l.b16 %v140
    %v544 = vunpack.c.h.b16 %v140
    %v545 = vunpack.c.l.b16 %v141
    %v546 = vunpack.c.h.b16 %v141
    %v547 = vunpack.c.l.b16 %v142
    %v548 = vunpack.c.h.b16 %v142
    %v549 = vunpack.c.l.b16 %v143
    %v550 = vunpack.c.h.b16 %v143
    %v551 = vunpack.c.l.b16 %v144
    %v552 = vunpack.c.h.b16 %v144
    %v553 = vunpack.c.l.b16 %v145
    %v554 = vunpack.c.h.b16 %v145
    %v555 = vunpack.c.l.b16 %v146
    %v556 = vunpack.c.h.b16 %v146
    %v557 = vunpack.c.l.b16 %v147
    %v558 = vunpack.c.h.b16 %v147
    %v559 = vunpack.c.l.b16 %v148
    %v560 = vunpack.c.h.b16 %v148
    %v561 = vunpack.c.l.b16 %v149
    %v562 = vunpack.c.h.b16 %v149
    %v563 = vunpack.c.l.b16 %v150
    %v564 = vunpack.c.h.b16 %v150
    %v565 = vunpack.c.l.b16 %v151
    %v566 = vunpack.c.h.b16 %v151
    %v567 = vunpack.c.l.b16 %v152
    %v568 = vunpack.c.h.b16 %v152
    %v569 = vunpack.c.l.b16 %v153
    %v570 = vunpack.c.h.b16 %v153
    %v571 = vunpack.c.l.b16 %v154
    %v572 = vunpack.c.h.b16 %v154
    %v573 = vunpack.c.l.b16 %v155
    %v574 = vunpack.c.h.b16 %v155
    %v575 = vunpack.c.l.b16 %v156
    %v576 = vunpack.c.h.b16 %v156
    %v577 = vunpack.c.l.b16 %v157
    %v578 = vunpack.c.h.b16 %v157
    %v579 = vunpack.c.l.b16 %v158
    %v580 = vunpack.c.h.b16 %v158
    %v581 = vunpack.c.l.b16 %v159
    %v582 = vunpack.c.h.b16 %v159
    %v583 = vunpack.c.l.b16 %v160
    %v584 = vunpack.c.h.b16 %v160
    %v585 = vunpack.c.l.b16 %v161
    %v586 = vunpack.c.h.b16 %v161
    %v587 = vunpack.c.l.b16 %v162
    %v588 = vunpack.c.h.b16 %v162
    %v589 = vunpack.c.l.b16 %v163
    %v590 = vunpack.c.h.b16 %v163
    %v591 = vunpack.c.l.b16 %v164
    %v592 = vunpack.c.h.b16 %v164
    %v593 = vunpack.c.l.b16 %v165
    %v594 = vunpack.c.h.b16 %v165
    %v595 = vunpack.c.l.b16 %v166
    %v596 = vunpack.c.h.b16 %v166
    %v597 = vunpack.c.l.b16 %v167
    %v598 = vunpack.c.h.b16 %v167
    %v599 = vunpack.c.l.b16 %v168
    %v600 = vunpack.c.h.b16 %v168
    %v601 = vunpack.c.l.b16 %v169
    %v602 = vunpack.c.h.b16 %v169
    %v603 = vunpack.c.l.b16 %v170
    %v604 = vunpack.c.h.b16 %v170
    %v605 = vunpack.c.l.b16 %v171
    %v606 = vunpack.c.h.b16 %v171
    %v607 = vunpack.c.l.b16 %v172
    %v608 = vunpack.c.h.b16 %v172
    %v609 = vunpack.c.l.b16 %v173
    %v610 = vunpack.c.h.b16 %v173
    %v611 = vunpack.c.l.b16 %v174
    %v612 = vunpack.c.h.b16 %v174
    %v613 = vunpack.c.l.b16 %v175
    %v614 = vunpack.c.h.b16 %v175
    %v615 = vunpack.c.l.b16 %v176
    %v616 = vunpack.c.h.b16 %v176
    %v617 = vunpack.c.l.b16 %v177
    %v618 = vunpack.c.h.b16 %v177
    %v619 = vunpack.c.l.b16 %v178
    %v620 = vunpack.c.h.b16 %v178
    %v621 = vunpack.c.l.b16 %v179
    %v622 = vunpack.c.h.b16 %v179
    %v623 = vunpack.c.l.b16 %v180
    %v624 = vunpack.c.h.b16 %v180
    %v625 = vunpack.c.l.b16 %v181
    %v626 = vunpack.c.h.b16 %v181
    %v627 = vunpack.c.l.b16 %v182
    %v628 = vunpack.c.h.b16 %v182
    %v629 = vunpack.c.l.b16 %v183
    %v630 = vunpack.c.h.b16 %v183
    %v631 = vunpack.c.l.b16 %v184
    %v632 = vunpack.c.h.b16 %v184
    %v633 = vunpack.c.l.b16 %v185
    %v634 = vunpack.c.h.b16 %v185
    %v635 = vunpack.c.l.b16 %v186
    %v636 = vunpack.c.h.b16 %v186
    %v637 = vunpack.c.l.b16 %v187
    %v638 = vunpack.c.h.b16 %v187
    %v639 = vunpack.c.l.b16 %v188
    %v640 = vunpack.c.h.b16 %v188
    %v641 = vunpack.c.l.b16 %v189
    %v642 = vunpack.c.h.b16 %v189
    %v643 = vunpack.c.l.b16 %v190
    %v644 = vunpack.c.h.b16 %v190
    %v645 = vunpack.c.l.b16 %v191
    %v646 = vunpack.c.h.b16 %v191
    %v647 = vunpack.c.l.b16 %v192
    %v648 = vunpack.c.h.b16 %v192
    %v649 = vunpack.c.l.b16 %v193
    %v650 = vunpack.c.h.b16 %v193
    %v651 = vunpack.c.l.b16 %v194
    %v652 = vunpack.c.h.b16 %v194
    %v653 = vunpack.c.l.b16 %v195
    %v654 = vunpack.c.h.b16 %v195
    %v655 = vunpack.c.l.b16 %v196
    %v656 = vunpack.c.h.b16 %v196
    %v657 = vunpack.c.l.b16 %v197
    %v658 = vunpack.c.h.b16 %v197
    %v659 = vunpack.c.l.b16 %v198
    %v660 = vunpack.c.h.b16 %v198
    %v661 = vunpack.c.l.b16 %v199
    %v662 = vunpack.c.h.b16 %v199
    %v663 = vunpack.c.l.b16 %v200
    %v664 = vunpack.c.h.b16 %v200
    %v665 = vunpack.c.l.b16 %v201
    %v666 = vunpack.c.h.b16 %v201
    %v667 = vunpack.c.l.b16 %v202
    %v668 = vunpack.c.h.b16 %v202
    %v669 = vunpack.c.l.b16 %v203
    %v670 = vunpack.c.h.b16 %v203
    %v671 = vunpack.c.l.b16 %v204
    %v672 = vunpack.c.h.b16 %v204
    %v673 = vunpack.c.l.b16 %v205
    %v674 = vunpack.c.h.b16 %v205
    %v675 = vunpack.c.l.b16 %v206
    %v676 = vunpack.c.h.b16 %v206
    %v677 = vunpack.c.l.b16 %v207
    %v678 = vunpack.c.h.b16 %v207
    %v679 = vunpack.c.l.b16 %v208
    %v680 = vunpack.c.h.b16 %v208
    %v681 = vunpack.c.l.b16 %v209
    %v682 = vunpack.c.h.b16 %v209
    %v683 = vunpack.c.l.b16 %v210
    %v684 = vunpack.c.h.b16 %v210
    %v685 = vunpack.c.l.b16 %v211
    %v686 = vunpack.c.h.b16 %v211
    %v687 = vunpack.c.l.b16 %v212
    %v688 = vunpack.c.h.b16 %v212
    %v689 = vunpack.c.l.b16 %v213
    %v690 = vunpack.c.h.b16 %v213
    %v691 = vunpack.c.l.b16 %v214
    %v692 = vunpack.c.h.b16 %v214
    %v693 = vunpack.c.l.b16 %v215
    %v694 = vunpack.c.h.b16 %v215
    %v695 = vunpack.c.l.b16 %v216
    %v696 = vunpack.c.h.b16 %v216
    %v697 = vunpack.c.l.b16 %v217
    %v698 = vunpack.c.h.b16 %v217
    %v699 = vunpack.c.l.b16 %v218
    %v700 = vunpack.c.h.b16 %v218
    %v701 = vunpack.c.l.b16 %v219
    %v702 = vunpack.c.h.b16 %v219
    %v703 = vunpack.c.l.b16 %v220
    %v704 = vunpack.c.h.b16 %v220
    %v705 = vunpack.c.l.b16 %v221
    %v706 = vunpack.c.h.b16 %v221
    %v707 = vunpack.c.l.b16 %v222
    %v708 = vunpack.c.h.b16 %v222
    %v709 = vunpack.c.l.b16 %v223
    %v710 = vunpack.c.h.b16 %v223
    %v711 = vunpack.c.l.b16 %v224
    %v712 = vunpack.c.h.b16 %v224
    %v713 = vunpack.c.l.b16 %v225
    %v714 = vunpack.c.h.b16 %v225
    %v715 = vunpack.c.l.b16 %v226
    %v716 = vunpack.c.h.b16 %v226
    %v717 = vunpack.c.l.b16 %v227
    %v718 = vunpack.c.h.b16 %v227
    %v719 = vunpack.c.l.b16 %v228
    %v720 = vunpack.c.h.b16 %v228
    %v721 = vunpack.c.l.b16 %v229
    %v722 = vunpack.c.h.b16 %v229
    %v723 = vunpack.c.l.b16 %v230
    %v724 = vunpack.c.h.b16 %v230
    %v725 = vunpack.c.l.b16 %v231
    %v726 = vunpack.c.h.b16 %v231
    %v727 = vunpack.c.l.b16 %v232
    %v728 = vunpack.c.h.b16 %v232
    %v729 = vunpack.c.l.b16 %v233
    %v730 = vunpack.c.h.b16 %v233
    %v731 = vunpack.c.l.b16 %v234
    %v732 = vunpack.c.h.b16 %v234
    %v733 = vunpack.c.l.b16 %v235
    %v734 = vunpack.c.h.b16 %v235
    %v735 = vunpack.c.l.b16 %v236
    %v736 = vunpack.c.h.b16 %v236
    %v737 = vunpack.c.l.b16 %v237
    %v738 = vunpack.c.h.b16 %v237
    %v739 = vunpack.c.l.b16 %v238
    %v740 = vunpack.c.h.b16 %v238
    %v741 = vunpack.c.l.b16 %v239
    %v742 = vunpack.c.h.b16 %v239
    %v743 = vunpack.c.l.b16 %v240
    %v744 = vunpack.c.h.b16 %v240
    %v745 = vunpack.c.l.b16 %v241
    %v746 = vunpack.c.h.b16 %v241
    %v747 = vunpack.c.l.b16 %v242
    %v748 = vunpack.c.h.b16 %v242
    %v749 = vunpack.c.l.b16 %v243
    %v750 = vunpack.c.h.b16 %v243
    %v751 = vunpack.c.l.b16 %v244
    %v752 = vunpack.c.h.b16 %v244
    %v753 = vunpack.c.l.b16 %v245
    %v754 = vunpack.c.h.b16 %v245
    %v755 = vunpack.c.l.b16 %v246
    %v756 = vunpack.c.h.b16 %v246
    %v757 = vunpack.c.l.b16 %v247
    %v758 = vunpack.c.h.b16 %v247
    %v759 = vunpack.c.l.b16 %v248
    %v760 = vunpack.c.h.b16 %v248
    %v761 = vunpack.c.l.b16 %v249
    %v762 = vunpack.c.h.b16 %v249
    %v763 = vunpack.c.l.b16 %v250
    %v764 = vunpack.c.h.b16 %v250
    %v765 = vunpack.c.l.b16 %v251
    %v766 = vunpack.c.h.b16 %v251
    %v767 = vunpack.c.l.b16 %v252
    %v768 = vunpack.c.h.b16 %v252
    %v769 = vpack.c.b16 %v521, %v513
    %v770 = vpack.c.b16 %v522, %v514
    %v771 = vpack.c.b16 %v523, %v515
    %v772 = vpack.c.b16 %v524, %v516
    %v773 = vpack.c.b16 %v525, %v517
    %v774 = vpack.c.b16 %v526, %v518
    %v775 = vpack.c.b16 %v527, %v519
    %v776 = vpack.c.b16 %v528, %v520
    %v777 = vpack.c.b16 %v537, %v529
    %v778 = vpack.c.b16 %v538, %v530
    %v779 = vpack.c.b16 %v539, %v531
    %v780 = vpack.c.b16 %v540, %v532
    %v781 = vpack.c.b16 %v541, %v533
    %v782 = vpack.c.b16 %v542, %v534
    %v783 = vpack.c.b16 %v543, %v535
    %v784 = vpack.c.b16 %v544, %v536
    %v785 = vpack.c.b16 %v553, %v545
    %v786 = vpack.c.b16 %v554, %v546
    %v787 = vpack.c.b16 %v555, %v547
    %v788 = vpack.c.b16 %v556, %v548
    %v789 = vpack.c.b16 %v557, %v549
    %v790 = vpack.c.b16 %v558, %v550
    %v791 = vpack.c.b16 %v559, %v551
    %v792 = vpack.c.b16 %v560, %v552
    %v793 = vpack.c.b16 %v569, %v561
    %v794 = vpack.c.b16 %v570, %v562
    %v795 = vpack.c.b16 %v571, %v563
    %v796 = vpack.c.b16 %v572, %v564
    %v797 = vpack.c.b16 %v573, %v565
    %v798 = vpack.c.b16 %v574, %v566
    %v799 = vpack.c.b16 %v575, %v567
    %v800 = vpack.c.b16 %v576, %v568
    %v801 = vpack.c.b16 %v585, %v577
    %v802 = vpack.c.b16 %v586, %v578
    %v803 = vpack.c.b16 %v587, %v579
    %v804 = vpack.c.b16 %v588, %v580
    %v805 = vpack.c.b16 %v589, %v581
    %v806 = vpack.c.b16 %v590, %v582
    %v807 = vpack.c.b16 %v591, %v583
    %v808 = vpack.c.b16 %v592, %v584
    %v809 = vpack.c.b16 %v601, %v593
    %v810 = vpack.c.b16 %v602, %v594
    %v811 = vpack.c.b16 %v603, %v595
    %v812 = vpack.c.b16 %v604, %v596
    %v813 = vpack.c.b16 %v605, %v597
    %v814 = vpack.c.b16 %v606, %v598
    %v815 = vpack.c.b16 %v607, %v599
    %v816 = vpack.c.b16 %v608, %v600
    %v817 = vpack.c.b16 %v617, %v609
    %v818 = vpack.c.b16 %v618, %v610
    %v819 = vpack.c.b16 %v619, %v611
    %v820 = vpack.c.b16 %v620, %v612
    %v821 = vpack.c.b16 %v621, %v613
    %v822 = vpack.c.b16 %v622, %v614
    %v823 = vpack.c.b16 %v623, %v615
    %v824 = vpack.c.b16 %v624, %v616
    %v825 = vpack.c.b16 %v633, %v625
    %v826 = vpack.c.b16 %v634, %v626
    %v827 = vpack.c.b16 %v635, %v627
    %v828 = vpack.c.b16 %v636, %v628
    %v829 = vpack.c.b16 %v637, %v629
    %v830 = vpack.c.b16 %v638, %v630
    %v831 = vpack.c.b16 %v639, %v631
    %v832 = vpack.c.b16 %v640, %v632
    %v833 = vpack.c.b16 %v649, %v641
    %v834 = vpack.c.b16 %v650, %v642
    %v835 = vpack.c.b16 %v651, %v643
    %v836 = vpack.c.b16 %v652, %v644
    %v837 = vpack.c.b16 %v653, %v645
    %v838 = vpack.c.b16 %v654, %v646
    %v839 = vpack.c.b16 %v655, %v647
    %v840 = vpack.c.b16 %v656, %v648
    %v841 = vpack.c.b16 %v665, %v657
    %v842 = vpack.c.b16 %v666, %v658
    %v843 = vpack.c.b16 %v667, %v659
    %v844 = vpack.c.b16 %v668, %v660
    %v845 = vpack.c.b16 %v669, %v661
    %v846 = vpack.c.b16 %v670, %v662
    %v847 = vpack.c.b16 %v671, %v663
    %v848 = vpack.c.b16 %v672, %v664
    %v849 = vpack.c.b16 %v681, %v673
    %v850 = vpack.c.b16 %v682, %v674
    %v851 = vpack.c.b16 %v683, %v675
    %v852 = vpack.c.b16 %v684, %v676
    %v853 = vpack.c.b16 %v685, %v677
    %v854 = vpack.c.b16 %v686, %v678
    %v855 = vpack.c.b16 %v687, %v679
    %v856 = vpack.c.b16 %v688, %v680
    %v857 = vpack.c.b16 %v697, %v689
    %v858 = vpack.c.b16 %v698, %v690
    %v859 = vpack.c.b16 %v699, %v691
    %v860 = vpack.c.b16 %v700, %v692
    %v861 = vpack.c.b16 %v701, %v693
    %v862 = vpack.c.b16 %v702, %v694
    %v863 = vpack.c.b16 %v703, %v695
    %v864 = vpack.c.b16 %v704, %v696
    %v865 = vpack.c.b16 %v713, %v705
    %v866 = vpack.c.b16 %v714, %v706
    %v867 = vpack.c.b16 %v715, %v707
    %v868 = vpack.c.b16 %v716, %v708
    %v869 = vpack.c.b16 %v717, %v709
    %v870 = vpack.c.b16 %v718, %v710
    %v871 = vpack.c.b16 %v719, %v711
    %v872 = vpack.c.b16 %v720, %v712
    %v873 = vpack.c.b16 %v729, %v721
    %v874 = vpack.c.b16 %v730, %v722
    %v875 = vpack.c.b16 %v731, %v723
    %v876 = vpack.c.b16 %v732, %v724
    %v877 = vpack.c.b16 %v733, %v725
    %v878 = vpack.c.b16 %v734, %v726
    %v879 = vpack.c.b16 %v735, %v727
    %v880 = vpack.c.b16 %v736, %v728
    %v881 = vpack.c.b16 %v745, %v737
    %v882 = vpack.c.b16 %v746, %v738
    %v883 = vpack.c.b16 %v747, %v739
    %v884 = vpack.c.b16 %v748, %v740
    %v885 = vpack.c.b16 %v749, %v741
    %v886 = vpack.c.b16 %v750, %v742
    %v887 = vpack.c.b16 %v751, %v743
    %v888 = vpack.c.b16 %v752, %v744
    %v889 = vpack.c.b16 %v761, %v753
    %v890 = vpack.c.b16 %v762, %v754
    %v891 = vpack.c.b16 %v763, %v755
    %v892 = vpack.c.b16 %v764, %v756
    %v893 = vpack.c.b16 %v765, %v757
    %v894 = vpack.c.b16 %v766, %v758
    %v895 = vpack.c.b16 %v767, %v759
    %v896 = vpack.c.b16 %v768, %v760
    %v1153 = vunpack.c.l.b16 %v253
    %v1154 = vunpack.c.l.b16 %v254
    %v1155 = vunpack.c.l.b16 %v255
    %v1156 = vunpack.c.l.b16 %v256
    %v1157 = vunpack.c.l.b16 %v257
    %v1158 = vunpack.c.l.b16 %v258
    %v1159 = vunpack.c.l.b16 %v259
    %v1160 = vunpack.c.l.b16 %v260
    %v1161 = vunpack.c.l.b16 %v261
    %v1162 = vunpack.c.l.b16 %v262
    %v1163 = vunpack.c.l.b16 %v263
    %v1164 = vunpack.c.l.b16 %v264
    %v1165 = vunpack.c.l.b16 %v265
    %v1166 = vunpack.c.l.b16 %v266
    %v1167 = vunpack.c.l.b16 %v267
    %v1168 = vunpack.c.l.b16 %v268
    %v1169 = vunpack.c.l.b16 %v269
    %v1170 = vunpack.c.l.b16 %v270
    %v1171 = vunpack.c.l.b16 %v271
    %v1172 = vunpack.c.l.b16 %v272
    %v1173 = vunpack.c.l.b16 %v273
    %v1174 = vunpack.c.l.b16 %v274
    %v1175 = vunpack.c.l.b16 %v275
    %v1176 = vunpack.c.l.b16 %v276
    %v1177 = vunpack.c.l.b16 %v277
    %v1178 = vunpack.c.l.b16 %v278
    %v1179 = vunpack.c.l.b16 %v279
    %v1180 = vunpack.c.l.b16 %v280
    %v1181 = vunpack.c.l.b16 %v281
    %v1182 = vunpack.c.l.b16 %v282
    %v1183 = vunpack.c.l.b16 %v283
    %v1184 = vunpack.c.l.b16 %v284
    %v1185 = vunpack.c.l.b16 %v285
    %v1186 = vunpack.c.l.b16 %v286
    %v1187 = vunpack.c.l.b16 %v287
    %v1188 = vunpack.c.l.b16 %v288
    %v1189 = vunpack.c.l.b16 %v289
    %v1190 = vunpack.c.l.b16 %v290
    %v1191 = vunpack.c.l.b16 %v291
    %v1192 = vunpack.c.l.b16 %v292
    %v1193 = vunpack.c.l.b16 %v293
    %v1194 = vunpack.c.l.b16 %v294
    %v1195 = vunpack.c.l.b16 %v295
    %v1196 = vunpack.c.l.b16 %v296
    %v1197 = vunpack.c.l.b16 %v297
    %v1198 = vunpack.c.l.b16 %v298
    %v1199 = vunpack.c.l.b16 %v299
    %v1200 = vunpack.c.l.b16 %v300
    %v1201 = vunpack.c.l.b16 %v301
    %v1202 = vunpack.c.l.b16 %v302
    %v1203 = vunpack.c.l.b16 %v303
    %v1204 = vunpack.c.l.b16 %v304
    %v1205 = vunpack.c.l.b16 %v305
    %v1206 = vunpack.c.l.b16 %v306
    %v1207 = vunpack.c.l.b16 %v307
    %v1208 = vunpack.c.l.b16 %v308
    %v1209 = vunpack.c.l.b16 %v309
    %v1210 = vunpack.c.l.b16 %v310
    %v1211 = vunpack.c.l.b16 %v311
    %v1212 = vunpack.c.l.b16 %v312
    %v1213 = vunpack.c.l.b16 %v313
    %v1214 = vunpack.c.l.b16 %v314
    %v1215 = vunpack.c.l.b16 %v315
    %v1216 = vunpack.c.l.b16 %v316
    %v1217 = vunpack.c.l.b16 %v317
    %v1218 = vunpack.c.l.b16 %v318
    %v1219 = vunpack.c.l.b16 %v319
    %v1220 = vunpack.c.l.b16 %v320
    %v1221 = vunpack.c.l.b16 %v321
    %v1222 = vunpack.c.l.b16 %v322
    %v1223 = vunpack.c.l.b16 %v323
    %v1224 = vunpack.c.l.b16 %v324
    %v1225 = vunpack.c.l.b16 %v325
    %v1226 = vunpack.c.l.b16 %v326
    %v1227 = vunpack.c.l.b16 %v327
    %v1228 = vunpack.c.l.b16 %v328
    %v1229 = vunpack.c.l.b16 %v329
    %v1230 = vunpack.c.l.b16 %v330
    %v1231 = vunpack.c.l.b16 %v331
    %v1232 = vunpack.c.l.b16 %v332
    %v1233 = vunpack.c.l.b16 %v333
    %v1234 = vunpack.c.l.b16 %v334
    %v1235 = vunpack.c.l.b16 %v335
    %v1236 = vunpack.c.l.b16 %v336
    %v1237 = vunpack.c.l.b16 %v337
    %v1238 = vunpack.c.l.b16 %v338
    %v1239 = vunpack.c.l.b16 %v339
    %v1240 = vunpack.c.l.b16 %v340
    %v1241 = vunpack.c.l.b16 %v341
    %v1242 = vunpack.c.l.b16 %v342
    %v1243 = vunpack.c.l.b16 %v343
    %v1244 = vunpack.c.l.b16 %v344
    %v1245 = vunpack.c.l.b16 %v345
    %v1246 = vunpack.c.l.b16 %v346
    %v1247 = vunpack.c.l.b16 %v347
    %v1248 = vunpack.c.l.b16 %v348
    %v1249 = vunpack.c.l.b16 %v349
    %v1250 = vunpack.c.l.b16 %v350
    %v1251 = vunpack.c.l.b16 %v351
    %v1252 = vunpack.c.l.b16 %v352
    %v1253 = vunpack.c.l.b16 %v353
    %v1254 = vunpack.c.l.b16 %v354
    %v1255 = vunpack.c.l.b16 %v355
    %v1256 = vunpack.c.l.b16 %v356
    %v1257 = vunpack.c.l.b16 %v357
    %v1258 = vunpack.c.l.b16 %v358
    %v1259 = vunpack.c.l.b16 %v359
    %v1260 = vunpack.c.l.b16 %v360
    %v1261 = vunpack.c.l.b16 %v361
    %v1262 = vunpack.c.l.b16 %v362
    %v1263 = vunpack.c.l.b16 %v363
    %v1264 = vunpack.c.l.b16 %v364
    %v1265 = vunpack.c.l.b16 %v365
    %v1266 = vunpack.c.l.b16 %v366
    %v1267 = vunpack.c.l.b16 %v367
    %v1268 = vunpack.c.l.b16 %v368
    %v1269 = vunpack.c.l.b16 %v369
    %v1270 = vunpack.c.l.b16 %v370
    %v1271 = vunpack.c.l.b16 %v371
    %v1272 = vunpack.c.l.b16 %v372
    %v1273 = vunpack.c.l.b16 %v373
    %v1274 = vunpack.c.l.b16 %v374
    %v1275 = vunpack.c.l.b16 %v375
    %v1276 = vunpack.c.l.b16 %v376
    %v1277 = vunpack.c.l.b16 %v377
    %v1278 = vunpack.c.l.b16 %v378
    %v1279 = vunpack.c.l.b16 %v379
    %v1280 = vunpack.c.l.b16 %v380
    %v1281 = vpack.c.b16 %v1154, %v1153
    %v1282 = vpack.c.b16 %v1156, %v1155
    %v1283 = vpack.c.b16 %v1158, %v1157
    %v1284 = vpack.c.b16 %v1160, %v1159
    %v1285 = vpack.c.b16 %v1162, %v1161
    %v1286 = vpack.c.b16 %v1164, %v1163
    %v1287 = vpack.c.b16 %v1166, %v1165
    %v1288 = vpack.c.b16 %v1168, %v1167
    %v1289 = vpack.c.b16 %v1170, %v1169
    %v1290 = vpack.c.b16 %v1172, %v1171
    %v1291 = vpack.c.b16 %v1174, %v1173
    %v1292 = vpack.c.b16 %v1176, %v1175
    %v1293 = vpack.c.b16 %v1178, %v1177
    %v1294 = vpack.c.b16 %v1180, %v1179
    %v1295 = vpack.c.b16 %v1182, %v1181
    %v1296 = vpack.c.b16 %v1184, %v1183
    %v1297 = vpack.c.b16 %v1186, %v1185
    %v1298 = vpack.c.b16 %v1188, %v1187
    %v1299 = vpack.c.b16 %v1190, %v1189
    %v1300 = vpack.c.b16 %v1192, %v1191
    %v1301 = vpack.c.b16 %v1194, %v1193
    %v1302 = vpack.c.b16 %v1196, %v1195
    %v1303 = vpack.c.b16 %v1198, %v1197
    %v1304 = vpack.c.b16 %v1200, %v1199
    %v1305 = vpack.c.b16 %v1202, %v1201
    %v1306 = vpack.c.b16 %v1204, %v1203
    %v1307 = vpack.c.b16 %v1206, %v1205
    %v1308 = vpack.c.b16 %v1208, %v1207
    %v1309 = vpack.c.b16 %v1210, %v1209
    %v1310 = vpack.c.b16 %v1212, %v1211
    %v1311 = vpack.c.b16 %v1214, %v1213
    %v1312 = vpack.c.b16 %v1216, %v1215
    %v1313 = vpack.c.b16 %v1218, %v1217
    %v1314 = vpack.c.b16 %v1220, %v1219
    %v1315 = vpack.c.b16 %v1222, %v1221
    %v1316 = vpack.c.b16 %v1224, %v1223
    %v1317 = vpack.c.b16 %v1226, %v1225
    %v1318 = vpack.c.b16 %v1228, %v1227
    %v1319 = vpack.c.b16 %v1230, %v1229
    %v1320 = vpack.c.b16 %v1232, %v1231
    %v1321 = vpack.c.b16 %v1234, %v1233
    %v1322 = vpack.c.b16 %v1236, %v1235
    %v1323 = vpack.c.b16 %v1238, %v1237
    %v1324 = vpack.c.b16 %v1240, %v1239
    %v1325 = vpack.c.b16 %v1242, %v1241
    %v1326 = vpack.c.b16 %v1244, %v1243
    %v1327 = vpack.c.b16 %v1246, %v1245
    %v1328 = vpack.c.b16 %v1248, %v1247
    %v1329 = vpack.c.b16 %v1250, %v1249
    %v1330 = vpack.c.b16 %v1252, %v1251
    %v1331 = vpack.c.b16 %v1254, %v1253
    %v1332 = vpack.c.b16 %v1256, %v1255
    %v1333 = vpack.c.b16 %v1258, %v1257
    %v1334 = vpack.c.b16 %v1260, %v1259
    %v1335 = vpack.c.b16 %v1262, %v1261
    %v1336 = vpack.c.b16 %v1264, %v1263
    %v1337 = vpack.c.b16 %v1266, %v1265
    %v1338 = vpack.c.b16 %v1268, %v1267
    %v1339 = vpack.c.b16 %v1270, %v1269
    %v1340 = vpack.c.b16 %v1272, %v1271
    %v1341 = vpack.c.b16 %v1274, %v1273
    %v1342 = vpack.c.b16 %v1276, %v1275
    %v1343 = vpack.c.b16 %v1278, %v1277
    %v1344 = vpack.c.b16 %v1280, %v1279
    %1409 = vmatpush.bf16.msra.mxu0 %v1288
    %1410 = vmatpush.bf16.msra.mxu0 %v1287
    %1411 = vmatpush.bf16.msra.mxu0 %v1286
    %1412 = vmatpush.bf16.msra.mxu0 %v1285
    %1413 = vmatpush.bf16.msra.mxu0 %v1284
    %1414 = vmatpush.bf16.msra.mxu0 %v1283
    %1415 = vmatpush.bf16.msra.mxu0 %v1282
    %1416 = vmatpush.bf16.msra.mxu0 %v1281
    %1417 = vmatmul.bf16.gmra.mxu0 %v769
    %v1418 = vpop.f32.mrf.mxu0
    %v1419 = vadd.f32 %v383, %v1418
    %v1420 = vpop.f32.mrf.mxu0
    %v1421 = vadd.f32 %v383, %v1420
    %1422 = vmatmul.bf16.gmra.mxu0 %v777
    %v1423 = vpop.f32.mrf.mxu0
    %v1424 = vadd.f32 %v383, %v1423
    %v1425 = vpop.f32.mrf.mxu0
    %v1426 = vadd.f32 %v383, %v1425
    %1427 = vmatmul.bf16.gmra.mxu0 %v785
    %v1428 = vpop.f32.mrf.mxu0
    %v1429 = vadd.f32 %v383, %v1428
    %v1430 = vpop.f32.mrf.mxu0
    %v1431 = vadd.f32 %v383, %v1430
    %1432 = vmatmul.bf16.gmra.mxu0 %v793
    %v1433 = vpop.f32.mrf.mxu0
    %v1434 = vadd.f32 %v383, %v1433
    %v1435 = vpop.f32.mrf.mxu0
    %v1436 = vadd.f32 %v383, %v1435
    %1437 = vmatmul.bf16.gmra.mxu0 %v801
    %v1438 = vpop.f32.mrf.mxu0
    %v1439 = vadd.f32 %v383, %v1438
    %v1440 = vpop.f32.mrf.mxu0
    %v1441 = vadd.f32 %v383, %v1440
    %1442 = vmatmul.bf16.gmra.mxu0 %v809
    %v1443 = vpop.f32.mrf.mxu0
    %v1444 = vadd.f32 %v383, %v1443
    %v1445 = vpop.f32.mrf.mxu0
    %v1446 = vadd.f32 %v383, %v1445
    %1447 = vmatmul.bf16.gmra.mxu0 %v817
    %v1448 = vpop.f32.mrf.mxu0
    %v1449 = vadd.f32 %v383, %v1448
    %v1450 = vpop.f32.mrf.mxu0
    %v1451 = vadd.f32 %v383, %v1450
    %1452 = vmatmul.bf16.gmra.mxu0 %v825
    %v1453 = vpop.f32.mrf.mxu0
    %v1454 = vadd.f32 %v383, %v1453
    %v1455 = vpop.f32.mrf.mxu0
    %v1456 = vadd.f32 %v383, %v1455
    %1457 = vmatmul.bf16.gmra.mxu0 %v833
    %v1458 = vpop.f32.mrf.mxu0
    %v1459 = vadd.f32 %v383, %v1458
    %v1460 = vpop.f32.mrf.mxu0
    %v1461 = vadd.f32 %v383, %v1460
    %1462 = vmatmul.bf16.gmra.mxu0 %v841
    %v1463 = vpop.f32.mrf.mxu0
    %v1464 = vadd.f32 %v383, %v1463
    %v1465 = vpop.f32.mrf.mxu0
    %v1466 = vadd.f32 %v383, %v1465
    %1467 = vmatmul.bf16.gmra.mxu0 %v849
    %v1468 = vpop.f32.mrf.mxu0
    %v1469 = vadd.f32 %v383, %v1468
    %v1470 = vpop.f32.mrf.mxu0
    %v1471 = vadd.f32 %v383, %v1470
    %1472 = vmatmul.bf16.gmra.mxu0 %v857
    %v1473 = vpop.f32.mrf.mxu0
    %v1474 = vadd.f32 %v383, %v1473
    %v1475 = vpop.f32.mrf.mxu0
    %v1476 = vadd.f32 %v383, %v1475
    %1477 = vmatmul.bf16.gmra.mxu0 %v865
    %v1478 = vpop.f32.mrf.mxu0
    %v1479 = vadd.f32 %v383, %v1478
    %v1480 = vpop.f32.mrf.mxu0
    %v1481 = vadd.f32 %v383, %v1480
    %1482 = vmatmul.bf16.gmra.mxu0 %v873
    %v1483 = vpop.f32.mrf.mxu0
    %v1484 = vadd.f32 %v383, %v1483
    %v1485 = vpop.f32.mrf.mxu0
    %v1486 = vadd.f32 %v383, %v1485
    %1487 = vmatmul.bf16.gmra.mxu0 %v881
    %v1488 = vpop.f32.mrf.mxu0
    %v1489 = vadd.f32 %v383, %v1488
    %v1490 = vpop.f32.mrf.mxu0
    %v1491 = vadd.f32 %v383, %v1490
    %1492 = vmatmul.bf16.gmra.mxu0 %v889
    %v1493 = vpop.f32.mrf.mxu0
    %v1494 = vadd.f32 %v383, %v1493
    %v1495 = vpop.f32.mrf.mxu0
    %v1496 = vadd.f32 %v383, %v1495
    %1497 = vdwg.mxu0
    %1498 = vmatpush.bf16.msra.mxu0 %v1296
    %1499 = vmatpush.bf16.msra.mxu0 %v1295
    %1500 = vmatpush.bf16.msra.mxu0 %v1294
    %1501 = vmatpush.bf16.msra.mxu0 %v1293
    %1502 = vmatpush.bf16.msra.mxu0 %v1292
    %1503 = vmatpush.bf16.msra.mxu0 %v1291
    %1504 = vmatpush.bf16.msra.mxu0 %v1290
    %1505 = vmatpush.bf16.msra.mxu0 %v1289
    %1506 = vmatmul.bf16.gmra.mxu0 %v770
    %v1507 = vpop.f32.mrf.mxu0
    %v1508 = vadd.f32 %v1419, %v1507
    %v1509 = vpop.f32.mrf.mxu0
    %v1510 = vadd.f32 %v1421, %v1509
    %1511 = vmatmul.bf16.gmra.mxu0 %v778
    %v1512 = vpop.f32.mrf.mxu0
    %v1513 = vadd.f32 %v1424, %v1512
    %v1514 = vpop.f32.mrf.mxu0
    %v1515 = vadd.f32 %v1426, %v1514
    %1516 = vmatmul.bf16.gmra.mxu0 %v786
    %v1517 = vpop.f32.mrf.mxu0
    %v1518 = vadd.f32 %v1429, %v1517
    %v1519 = vpop.f32.mrf.mxu0
    %v1520 = vadd.f32 %v1431, %v1519
    %1521 = vmatmul.bf16.gmra.mxu0 %v794
    %v1522 = vpop.f32.mrf.mxu0
    %v1523 = vadd.f32 %v1434, %v1522
    %v1524 = vpop.f32.mrf.mxu0
    %v1525 = vadd.f32 %v1436, %v1524
    %1526 = vmatmul.bf16.gmra.mxu0 %v802
    %v1527 = vpop.f32.mrf.mxu0
    %v1528 = vadd.f32 %v1439, %v1527
    %v1529 = vpop.f32.mrf.mxu0
    %v1530 = vadd.f32 %v1441, %v1529
    %1531 = vmatmul.bf16.gmra.mxu0 %v810
    %v1532 = vpop.f32.mrf.mxu0
    %v1533 = vadd.f32 %v1444, %v1532
    %v1534 = vpop.f32.mrf.mxu0
    %v1535 = vadd.f32 %v1446, %v1534
    %1536 = vmatmul.bf16.gmra.mxu0 %v818
    %v1537 = vpop.f32.mrf.mxu0
    %v1538 = vadd.f32 %v1449, %v1537
    %v1539 = vpop.f32.mrf.mxu0
    %v1540 = vadd.f32 %v1451, %v1539
    %1541 = vmatmul.bf16.gmra.mxu0 %v826
    %v1542 = vpop.f32.mrf.mxu0
    %v1543 = vadd.f32 %v1454, %v1542
    %v1544 = vpop.f32.mrf.mxu0
    %v1545 = vadd.f32 %v1456, %v1544
    %1546 = vmatmul.bf16.gmra.mxu0 %v834
    %v1547 = vpop.f32.mrf.mxu0
    %v1548 = vadd.f32 %v1459, %v1547
    %v1549 = vpop.f32.mrf.mxu0
    %v1550 = vadd.f32 %v1461, %v1549
    %1551 = vmatmul.bf16.gmra.mxu0 %v842
    %v1552 = vpop.f32.mrf.mxu0
    %v1553 = vadd.f32 %v1464, %v1552
    %v1554 = vpop.f32.mrf.mxu0
    %v1555 = vadd.f32 %v1466, %v1554
    %1556 = vmatmul.bf16.gmra.mxu0 %v850
    %v1557 = vpop.f32.mrf.mxu0
    %v1558 = vadd.f32 %v1469, %v1557
    %v1559 = vpop.f32.mrf.mxu0
    %v1560 = vadd.f32 %v1471, %v1559
    %1561 = vmatmul.bf16.gmra.mxu0 %v858
    %v1562 = vpop.f32.mrf.mxu0
    %v1563 = vadd.f32 %v1474, %v1562
    %v1564 = vpop.f32.mrf.mxu0
    %v1565 = vadd.f32 %v1476, %v1564
    %1566 = vmatmul.bf16.gmra.mxu0 %v866
    %v1567 = vpop.f32.mrf.mxu0
    %v1568 = vadd.f32 %v1479, %v1567
    %v1569 = vpop.f32.mrf.mxu0
    %v1570 = vadd.f32 %v1481, %v1569
    %1571 = vmatmul.bf16.gmra.mxu0 %v874
    %v1572 = vpop.f32.mrf.mxu0
    %v1573 = vadd.f32 %v1484, %v1572
    %v1574 = vpop.f32.mrf.mxu0
    %v1575 = vadd.f32 %v1486, %v1574
    %1576 = vmatmul.bf16.gmra.mxu0 %v882
    %v1577 = vpop.f32.mrf.mxu0
    %v1578 = vadd.f32 %v1489, %v1577
    %v1579 = vpop.f32.mrf.mxu0
    %v1580 = vadd.f32 %v1491, %v1579
    %1581 = vmatmul.bf16.gmra.mxu0 %v890
    %v1582 = vpop.f32.mrf.mxu0
    %v1583 = vadd.f32 %v1494, %v1582
    %v1584 = vpop.f32.mrf.mxu0
    %v1585 = vadd.f32 %v1496, %v1584
    %1586 = vdwg.mxu0
    %1587 = vmatpush.bf16.msra.mxu0 %v1304
    %1588 = vmatpush.bf16.msra.mxu0 %v1303
    %1589 = vmatpush.bf16.msra.mxu0 %v1302
    %1590 = vmatpush.bf16.msra.mxu0 %v1301
    %1591 = vmatpush.bf16.msra.mxu0 %v1300
    %1592 = vmatpush.bf16.msra.mxu0 %v1299
    %1593 = vmatpush.bf16.msra.mxu0 %v1298
    %1594 = vmatpush.bf16.msra.mxu0 %v1297
    %1595 = vmatmul.bf16.gmra.mxu0 %v771
    %v1596 = vpop.f32.mrf.mxu0
    %v1597 = vadd.f32 %v1508, %v1596
    %v1598 = vpop.f32.mrf.mxu0
    %v1599 = vadd.f32 %v1510, %v1598
    %1600 = vmatmul.bf16.gmra.mxu0 %v779
    %v1601 = vpop.f32.mrf.mxu0
    %v1602 = vadd.f32 %v1513, %v1601
    %v1603 = vpop.f32.mrf.mxu0
    %v1604 = vadd.f32 %v1515, %v1603
    %1605 = vmatmul.bf16.gmra.mxu0 %v787
    %v1606 = vpop.f32.mrf.mxu0
    %v1607 = vadd.f32 %v1518, %v1606
    %v1608 = vpop.f32.mrf.mxu0
    %v1609 = vadd.f32 %v1520, %v1608
    %1610 = vmatmul.bf16.gmra.mxu0 %v795
    %v1611 = vpop.f32.mrf.mxu0
    %v1612 = vadd.f32 %v1523, %v1611
    %v1613 = vpop.f32.mrf.mxu0
    %v1614 = vadd.f32 %v1525, %v1613
    %1615 = vmatmul.bf16.gmra.mxu0 %v803
    %v1616 = vpop.f32.mrf.mxu0
    %v1617 = vadd.f32 %v1528, %v1616
    %v1618 = vpop.f32.mrf.mxu0
    %v1619 = vadd.f32 %v1530, %v1618
    %1620 = vmatmul.bf16.gmra.mxu0 %v811
    %v1621 = vpop.f32.mrf.mxu0
    %v1622 = vadd.f32 %v1533, %v1621
    %v1623 = vpop.f32.mrf.mxu0
    %v1624 = vadd.f32 %v1535, %v1623
    %1625 = vmatmul.bf16.gmra.mxu0 %v819
    %v1626 = vpop.f32.mrf.mxu0
    %v1627 = vadd.f32 %v1538, %v1626
    %v1628 = vpop.f32.mrf.mxu0
    %v1629 = vadd.f32 %v1540, %v1628
    %1630 = vmatmul.bf16.gmra.mxu0 %v827
    %v1631 = vpop.f32.mrf.mxu0
    %v1632 = vadd.f32 %v1543, %v1631
    %v1633 = vpop.f32.mrf.mxu0
    %v1634 = vadd.f32 %v1545, %v1633
    %1635 = vmatmul.bf16.gmra.mxu0 %v835
    %v1636 = vpop.f32.mrf.mxu0
    %v1637 = vadd.f32 %v1548, %v1636
    %v1638 = vpop.f32.mrf.mxu0
    %v1639 = vadd.f32 %v1550, %v1638
    %1640 = vmatmul.bf16.gmra.mxu0 %v843
    %v1641 = vpop.f32.mrf.mxu0
    %v1642 = vadd.f32 %v1553, %v1641
    %v1643 = vpop.f32.mrf.mxu0
    %v1644 = vadd.f32 %v1555, %v1643
    %1645 = vmatmul.bf16.gmra.mxu0 %v851
    %v1646 = vpop.f32.mrf.mxu0
    %v1647 = vadd.f32 %v1558, %v1646
    %v1648 = vpop.f32.mrf.mxu0
    %v1649 = vadd.f32 %v1560, %v1648
    %1650 = vmatmul.bf16.gmra.mxu0 %v859
    %v1651 = vpop.f32.mrf.mxu0
    %v1652 = vadd.f32 %v1563, %v1651
    %v1653 = vpop.f32.mrf.mxu0
    %v1654 = vadd.f32 %v1565, %v1653
    %1655 = vmatmul.bf16.gmra.mxu0 %v867
    %v1656 = vpop.f32.mrf.mxu0
    %v1657 = vadd.f32 %v1568, %v1656
    %v1658 = vpop.f32.mrf.mxu0
    %v1659 = vadd.f32 %v1570, %v1658
    %1660 = vmatmul.bf16.gmra.mxu0 %v875
    %v1661 = vpop.f32.mrf.mxu0
    %v1662 = vadd.f32 %v1573, %v1661
    %v1663 = vpop.f32.mrf.mxu0
    %v1664 = vadd.f32 %v1575, %v1663
    %1665 = vmatmul.bf16.gmra.mxu0 %v883
    %v1666 = vpop.f32.mrf.mxu0
    %v1667 = vadd.f32 %v1578, %v1666
    %v1668 = vpop.f32.mrf.mxu0
    %v1669 = vadd.f32 %v1580, %v1668
    %1670 = vmatmul.bf16.gmra.mxu0 %v891
    %v1671 = vpop.f32.mrf.mxu0
    %v1672 = vadd.f32 %v1583, %v1671
    %v1673 = vpop.f32.mrf.mxu0
    %v1674 = vadd.f32 %v1585, %v1673
    %1675 = vdwg.mxu0
    %1676 = vmatpush.bf16.msra.mxu0 %v1312
    %1677 = vmatpush.bf16.msra.mxu0 %v1311
    %1678 = vmatpush.bf16.msra.mxu0 %v1310
    %1679 = vmatpush.bf16.msra.mxu0 %v1309
    %1680 = vmatpush.bf16.msra.mxu0 %v1308
    %1681 = vmatpush.bf16.msra.mxu0 %v1307
    %1682 = vmatpush.bf16.msra.mxu0 %v1306
    %1683 = vmatpush.bf16.msra.mxu0 %v1305
    %1684 = vmatmul.bf16.gmra.mxu0 %v772
    %v1685 = vpop.f32.mrf.mxu0
    %v1686 = vadd.f32 %v1597, %v1685
    %v1687 = vpop.f32.mrf.mxu0
    %v1688 = vadd.f32 %v1599, %v1687
    %1689 = vmatmul.bf16.gmra.mxu0 %v780
    %v1690 = vpop.f32.mrf.mxu0
    %v1691 = vadd.f32 %v1602, %v1690
    %v1692 = vpop.f32.mrf.mxu0
    %v1693 = vadd.f32 %v1604, %v1692
    %1694 = vmatmul.bf16.gmra.mxu0 %v788
    %v1695 = vpop.f32.mrf.mxu0
    %v1696 = vadd.f32 %v1607, %v1695
    %v1697 = vpop.f32.mrf.mxu0
    %v1698 = vadd.f32 %v1609, %v1697
    %1699 = vmatmul.bf16.gmra.mxu0 %v796
    %v1700 = vpop.f32.mrf.mxu0
    %v1701 = vadd.f32 %v1612, %v1700
    %v1702 = vpop.f32.mrf.mxu0
    %v1703 = vadd.f32 %v1614, %v1702
    %1704 = vmatmul.bf16.gmra.mxu0 %v804
    %v1705 = vpop.f32.mrf.mxu0
    %v1706 = vadd.f32 %v1617, %v1705
    %v1707 = vpop.f32.mrf.mxu0
    %v1708 = vadd.f32 %v1619, %v1707
    %1709 = vmatmul.bf16.gmra.mxu0 %v812
    %v1710 = vpop.f32.mrf.mxu0
    %v1711 = vadd.f32 %v1622, %v1710
    %v1712 = vpop.f32.mrf.mxu0
    %v1713 = vadd.f32 %v1624, %v1712
    %1714 = vmatmul.bf16.gmra.mxu0 %v820
    %v1715 = vpop.f32.mrf.mxu0
    %v1716 = vadd.f32 %v1627, %v1715
    %v1717 = vpop.f32.mrf.mxu0
    %v1718 = vadd.f32 %v1629, %v1717
    %1719 = vmatmul.bf16.gmra.mxu0 %v828
    %v1720 = vpop.f32.mrf.mxu0
    %v1721 = vadd.f32 %v1632, %v1720
    %v1722 = vpop.f32.mrf.mxu0
    %v1723 = vadd.f32 %v1634, %v1722
    %1724 = vmatmul.bf16.gmra.mxu0 %v836
    %v1725 = vpop.f32.mrf.mxu0
    %v1726 = vadd.f32 %v1637, %v1725
    %v1727 = vpop.f32.mrf.mxu0
    %v1728 = vadd.f32 %v1639, %v1727
    %1729 = vmatmul.bf16.gmra.mxu0 %v844
    %v1730 = vpop.f32.mrf.mxu0
    %v1731 = vadd.f32 %v1642, %v1730
    %v1732 = vpop.f32.mrf.mxu0
    %v1733 = vadd.f32 %v1644, %v1732
    %1734 = vmatmul.bf16.gmra.mxu0 %v852
    %v1735 = vpop.f32.mrf.mxu0
    %v1736 = vadd.f32 %v1647, %v1735
    %v1737 = vpop.f32.mrf.mxu0
    %v1738 = vadd.f32 %v1649, %v1737
    %1739 = vmatmul.bf16.gmra.mxu0 %v860
    %v1740 = vpop.f32.mrf.mxu0
    %v1741 = vadd.f32 %v1652, %v1740
    %v1742 = vpop.f32.mrf.mxu0
    %v1743 = vadd.f32 %v1654, %v1742
    %1744 = vmatmul.bf16.gmra.mxu0 %v868
    %v1745 = vpop.f32.mrf.mxu0
    %v1746 = vadd.f32 %v1657, %v1745
    %v1747 = vpop.f32.mrf.mxu0
    %v1748 = vadd.f32 %v1659, %v1747
    %1749 = vmatmul.bf16.gmra.mxu0 %v876
    %v1750 = vpop.f32.mrf.mxu0
    %v1751 = vadd.f32 %v1662, %v1750
    %v1752 = vpop.f32.mrf.mxu0
    %v1753 = vadd.f32 %v1664, %v1752
    %1754 = vmatmul.bf16.gmra.mxu0 %v884
    %v1755 = vpop.f32.mrf.mxu0
    %v1756 = vadd.f32 %v1667, %v1755
    %v1757 = vpop.f32.mrf.mxu0
    %v1758 = vadd.f32 %v1669, %v1757
    %1759 = vmatmul.bf16.gmra.mxu0 %v892
    %v1760 = vpop.f32.mrf.mxu0
    %v1761 = vadd.f32 %v1672, %v1760
    %v1762 = vpop.f32.mrf.mxu0
    %v1763 = vadd.f32 %v1674, %v1762
    %1764 = vdwg.mxu0
    %1765 = vmatpush.bf16.msra.mxu0 %v1320
    %1766 = vmatpush.bf16.msra.mxu0 %v1319
    %1767 = vmatpush.bf16.msra.mxu0 %v1318
    %1768 = vmatpush.bf16.msra.mxu0 %v1317
    %1769 = vmatpush.bf16.msra.mxu0 %v1316
    %1770 = vmatpush.bf16.msra.mxu0 %v1315
    %1771 = vmatpush.bf16.msra.mxu0 %v1314
    %1772 = vmatpush.bf16.msra.mxu0 %v1313
    %1773 = vmatmul.bf16.gmra.mxu0 %v773
    %v1774 = vpop.f32.mrf.mxu0
    %v1775 = vadd.f32 %v1686, %v1774
    %v1776 = vpop.f32.mrf.mxu0
    %v1777 = vadd.f32 %v1688, %v1776
    %1778 = vmatmul.bf16.gmra.mxu0 %v781
    %v1779 = vpop.f32.mrf.mxu0
    %v1780 = vadd.f32 %v1691, %v1779
    %v1781 = vpop.f32.mrf.mxu0
    %v1782 = vadd.f32 %v1693, %v1781
    %1783 = vmatmul.bf16.gmra.mxu0 %v789
    %v1784 = vpop.f32.mrf.mxu0
    %v1785 = vadd.f32 %v1696, %v1784
    %v1786 = vpop.f32.mrf.mxu0
    %v1787 = vadd.f32 %v1698, %v1786
    %1788 = vmatmul.bf16.gmra.mxu0 %v797
    %v1789 = vpop.f32.mrf.mxu0
    %v1790 = vadd.f32 %v1701, %v1789
    %v1791 = vpop.f32.mrf.mxu0
    %v1792 = vadd.f32 %v1703, %v1791
    %1793 = vmatmul.bf16.gmra.mxu0 %v805
    %v1794 = vpop.f32.mrf.mxu0
    %v1795 = vadd.f32 %v1706, %v1794
    %v1796 = vpop.f32.mrf.mxu0
    %v1797 = vadd.f32 %v1708, %v1796
    %1798 = vmatmul.bf16.gmra.mxu0 %v813
    %v1799 = vpop.f32.mrf.mxu0
    %v1800 = vadd.f32 %v1711, %v1799
    %v1801 = vpop.f32.mrf.mxu0
    %v1802 = vadd.f32 %v1713, %v1801
    %1803 = vmatmul.bf16.gmra.mxu0 %v821
    %v1804 = vpop.f32.mrf.mxu0
    %v1805 = vadd.f32 %v1716, %v1804
    %v1806 = vpop.f32.mrf.mxu0
    %v1807 = vadd.f32 %v1718, %v1806
    %1808 = vmatmul.bf16.gmra.mxu0 %v829
    %v1809 = vpop.f32.mrf.mxu0
    %v1810 = vadd.f32 %v1721, %v1809
    %v1811 = vpop.f32.mrf.mxu0
    %v1812 = vadd.f32 %v1723, %v1811
    %1813 = vmatmul.bf16.gmra.mxu0 %v837
    %v1814 = vpop.f32.mrf.mxu0
    %v1815 = vadd.f32 %v1726, %v1814
    %v1816 = vpop.f32.mrf.mxu0
    %v1817 = vadd.f32 %v1728, %v1816
    %1818 = vmatmul.bf16.gmra.mxu0 %v845
    %v1819 = vpop.f32.mrf.mxu0
    %v1820 = vadd.f32 %v1731, %v1819
    %v1821 = vpop.f32.mrf.mxu0
    %v1822 = vadd.f32 %v1733, %v1821
    %1823 = vmatmul.bf16.gmra.mxu0 %v853
    %v1824 = vpop.f32.mrf.mxu0
    %v1825 = vadd.f32 %v1736, %v1824
    %v1826 = vpop.f32.mrf.mxu0
    %v1827 = vadd.f32 %v1738, %v1826
    %1828 = vmatmul.bf16.gmra.mxu0 %v861
    %v1829 = vpop.f32.mrf.mxu0
    %v1830 = vadd.f32 %v1741, %v1829
    %v1831 = vpop.f32.mrf.mxu0
    %v1832 = vadd.f32 %v1743, %v1831
    %1833 = vmatmul.bf16.gmra.mxu0 %v869
    %v1834 = vpop.f32.mrf.mxu0
    %v1835 = vadd.f32 %v1746, %v1834
    %v1836 = vpop.f32.mrf.mxu0
    %v1837 = vadd.f32 %v1748, %v1836
    %1838 = vmatmul.bf16.gmra.mxu0 %v877
    %v1839 = vpop.f32.mrf.mxu0
    %v1840 = vadd.f32 %v1751, %v1839
    %v1841 = vpop.f32.mrf.mxu0
    %v1842 = vadd.f32 %v1753, %v1841
    %1843 = vmatmul.bf16.gmra.mxu0 %v885
    %v1844 = vpop.f32.mrf.mxu0
    %v1845 = vadd.f32 %v1756, %v1844
    %v1846 = vpop.f32.mrf.mxu0
    %v1847 = vadd.f32 %v1758, %v1846
    %1848 = vmatmul.bf16.gmra.mxu0 %v893
    %v1849 = vpop.f32.mrf.mxu0
    %v1850 = vadd.f32 %v1761, %v1849
    %v1851 = vpop.f32.mrf.mxu0
    %v1852 = vadd.f32 %v1763, %v1851
    %1853 = vdwg.mxu0
    %1854 = vmatpush.bf16.msra.mxu0 %v1328
    %1855 = vmatpush.bf16.msra.mxu0 %v1327
    %1856 = vmatpush.bf16.msra.mxu0 %v1326
    %1857 = vmatpush.bf16.msra.mxu0 %v1325
    %1858 = vmatpush.bf16.msra.mxu0 %v1324
    %1859 = vmatpush.bf16.msra.mxu0 %v1323
    %1860 = vmatpush.bf16.msra.mxu0 %v1322
    %1861 = vmatpush.bf16.msra.mxu0 %v1321
    %1862 = vmatmul.bf16.gmra.mxu0 %v774
    %v1863 = vpop.f32.mrf.mxu0
    %v1864 = vadd.f32 %v1775, %v1863
    %v1865 = vpop.f32.mrf.mxu0
    %v1866 = vadd.f32 %v1777, %v1865
    %1867 = vmatmul.bf16.gmra.mxu0 %v782
    %v1868 = vpop.f32.mrf.mxu0
    %v1869 = vadd.f32 %v1780, %v1868
    %v1870 = vpop.f32.mrf.mxu0
    %v1871 = vadd.f32 %v1782, %v1870
    %1872 = vmatmul.bf16.gmra.mxu0 %v790
    %v1873 = vpop.f32.mrf.mxu0
    %v1874 = vadd.f32 %v1785, %v1873
    %v1875 = vpop.f32.mrf.mxu0
    %v1876 = vadd.f32 %v1787, %v1875
    %1877 = vmatmul.bf16.gmra.mxu0 %v798
    %v1878 = vpop.f32.mrf.mxu0
    %v1879 = vadd.f32 %v1790, %v1878
    %v1880 = vpop.f32.mrf.mxu0
    %v1881 = vadd.f32 %v1792, %v1880
    %1882 = vmatmul.bf16.gmra.mxu0 %v806
    %v1883 = vpop.f32.mrf.mxu0
    %v1884 = vadd.f32 %v1795, %v1883
    %v1885 = vpop.f32.mrf.mxu0
    %v1886 = vadd.f32 %v1797, %v1885
    %1887 = vmatmul.bf16.gmra.mxu0 %v814
    %v1888 = vpop.f32.mrf.mxu0
    %v1889 = vadd.f32 %v1800, %v1888
    %v1890 = vpop.f32.mrf.mxu0
    %v1891 = vadd.f32 %v1802, %v1890
    %1892 = vmatmul.bf16.gmra.mxu0 %v822
    %v1893 = vpop.f32.mrf.mxu0
    %v1894 = vadd.f32 %v1805, %v1893
    %v1895 = vpop.f32.mrf.mxu0
    %v1896 = vadd.f32 %v1807, %v1895
    %1897 = vmatmul.bf16.gmra.mxu0 %v830
    %v1898 = vpop.f32.mrf.mxu0
    %v1899 = vadd.f32 %v1810, %v1898
    %v1900 = vpop.f32.mrf.mxu0
    %v1901 = vadd.f32 %v1812, %v1900
    %1902 = vmatmul.bf16.gmra.mxu0 %v838
    %v1903 = vpop.f32.mrf.mxu0
    %v1904 = vadd.f32 %v1815, %v1903
    %v1905 = vpop.f32.mrf.mxu0
    %v1906 = vadd.f32 %v1817, %v1905
    %1907 = vmatmul.bf16.gmra.mxu0 %v846
    %v1908 = vpop.f32.mrf.mxu0
    %v1909 = vadd.f32 %v1820, %v1908
    %v1910 = vpop.f32.mrf.mxu0
    %v1911 = vadd.f32 %v1822, %v1910
    %1912 = vmatmul.bf16.gmra.mxu0 %v854
    %v1913 = vpop.f32.mrf.mxu0
    %v1914 = vadd.f32 %v1825, %v1913
    %v1915 = vpop.f32.mrf.mxu0
    %v1916 = vadd.f32 %v1827, %v1915
    %1917 = vmatmul.bf16.gmra.mxu0 %v862
    %v1918 = vpop.f32.mrf.mxu0
    %v1919 = vadd.f32 %v1830, %v1918
    %v1920 = vpop.f32.mrf.mxu0
    %v1921 = vadd.f32 %v1832, %v1920
    %1922 = vmatmul.bf16.gmra.mxu0 %v870
    %v1923 = vpop.f32.mrf.mxu0
    %v1924 = vadd.f32 %v1835, %v1923
    %v1925 = vpop.f32.mrf.mxu0
    %v1926 = vadd.f32 %v1837, %v1925
    %1927 = vmatmul.bf16.gmra.mxu0 %v878
    %v1928 = vpop.f32.mrf.mxu0
    %v1929 = vadd.f32 %v1840, %v1928
    %v1930 = vpop.f32.mrf.mxu0
    %v1931 = vadd.f32 %v1842, %v1930
    %1932 = vmatmul.bf16.gmra.mxu0 %v886
    %v1933 = vpop.f32.mrf.mxu0
    %v1934 = vadd.f32 %v1845, %v1933
    %v1935 = vpop.f32.mrf.mxu0
    %v1936 = vadd.f32 %v1847, %v1935
    %1937 = vmatmul.bf16.gmra.mxu0 %v894
    %v1938 = vpop.f32.mrf.mxu0
    %v1939 = vadd.f32 %v1850, %v1938
    %v1940 = vpop.f32.mrf.mxu0
    %v1941 = vadd.f32 %v1852, %v1940
    %1942 = vdwg.mxu0
    %1943 = vmatpush.bf16.msra.mxu0 %v1336
    %1944 = vmatpush.bf16.msra.mxu0 %v1335
    %1945 = vmatpush.bf16.msra.mxu0 %v1334
    %1946 = vmatpush.bf16.msra.mxu0 %v1333
    %1947 = vmatpush.bf16.msra.mxu0 %v1332
    %1948 = vmatpush.bf16.msra.mxu0 %v1331
    %1949 = vmatpush.bf16.msra.mxu0 %v1330
    %1950 = vmatpush.bf16.msra.mxu0 %v1329
    %1951 = vmatmul.bf16.gmra.mxu0 %v775
    %v1952 = vpop.f32.mrf.mxu0
    %v1953 = vadd.f32 %v1864, %v1952
    %v1954 = vpop.f32.mrf.mxu0
    %v1955 = vadd.f32 %v1866, %v1954
    %1956 = vmatmul.bf16.gmra.mxu0 %v783
    %v1957 = vpop.f32.mrf.mxu0
    %v1958 = vadd.f32 %v1869, %v1957
    %v1959 = vpop.f32.mrf.mxu0
    %v1960 = vadd.f32 %v1871, %v1959
    %1961 = vmatmul.bf16.gmra.mxu0 %v791
    %v1962 = vpop.f32.mrf.mxu0
    %v1963 = vadd.f32 %v1874, %v1962
    %v1964 = vpop.f32.mrf.mxu0
    %v1965 = vadd.f32 %v1876, %v1964
    %1966 = vmatmul.bf16.gmra.mxu0 %v799
    %v1967 = vpop.f32.mrf.mxu0
    %v1968 = vadd.f32 %v1879, %v1967
    %v1969 = vpop.f32.mrf.mxu0
    %v1970 = vadd.f32 %v1881, %v1969
    %1971 = vmatmul.bf16.gmra.mxu0 %v807
    %v1972 = vpop.f32.mrf.mxu0
    %v1973 = vadd.f32 %v1884, %v1972
    %v1974 = vpop.f32.mrf.mxu0
    %v1975 = vadd.f32 %v1886, %v1974
    %1976 = vmatmul.bf16.gmra.mxu0 %v815
    %v1977 = vpop.f32.mrf.mxu0
    %v1978 = vadd.f32 %v1889, %v1977
    %v1979 = vpop.f32.mrf.mxu0
    %v1980 = vadd.f32 %v1891, %v1979
    %1981 = vmatmul.bf16.gmra.mxu0 %v823
    %v1982 = vpop.f32.mrf.mxu0
    %v1983 = vadd.f32 %v1894, %v1982
    %v1984 = vpop.f32.mrf.mxu0
    %v1985 = vadd.f32 %v1896, %v1984
    %1986 = vmatmul.bf16.gmra.mxu0 %v831
    %v1987 = vpop.f32.mrf.mxu0
    %v1988 = vadd.f32 %v1899, %v1987
    %v1989 = vpop.f32.mrf.mxu0
    %v1990 = vadd.f32 %v1901, %v1989
    %1991 = vmatmul.bf16.gmra.mxu0 %v839
    %v1992 = vpop.f32.mrf.mxu0
    %v1993 = vadd.f32 %v1904, %v1992
    %v1994 = vpop.f32.mrf.mxu0
    %v1995 = vadd.f32 %v1906, %v1994
    %1996 = vmatmul.bf16.gmra.mxu0 %v847
    %v1997 = vpop.f32.mrf.mxu0
    %v1998 = vadd.f32 %v1909, %v1997
    %v1999 = vpop.f32.mrf.mxu0
    %v2000 = vadd.f32 %v1911, %v1999
    %2001 = vmatmul.bf16.gmra.mxu0 %v855
    %v2002 = vpop.f32.mrf.mxu0
    %v2003 = vadd.f32 %v1914, %v2002
    %v2004 = vpop.f32.mrf.mxu0
    %v2005 = vadd.f32 %v1916, %v2004
    %2006 = vmatmul.bf16.gmra.mxu0 %v863
    %v2007 = vpop.f32.mrf.mxu0
    %v2008 = vadd.f32 %v1919, %v2007
    %v2009 = vpop.f32.mrf.mxu0
    %v2010 = vadd.f32 %v1921, %v2009
    %2011 = vmatmul.bf16.gmra.mxu0 %v871
    %v2012 = vpop.f32.mrf.mxu0
    %v2013 = vadd.f32 %v1924, %v2012
    %v2014 = vpop.f32.mrf.mxu0
    %v2015 = vadd.f32 %v1926, %v2014
    %2016 = vmatmul.bf16.gmra.mxu0 %v879
    %v2017 = vpop.f32.mrf.mxu0
    %v2018 = vadd.f32 %v1929, %v2017
    %v2019 = vpop.f32.mrf.mxu0
    %v2020 = vadd.f32 %v1931, %v2019
    %2021 = vmatmul.bf16.gmra.mxu0 %v887
    %v2022 = vpop.f32.mrf.mxu0
    %v2023 = vadd.f32 %v1934, %v2022
    %v2024 = vpop.f32.mrf.mxu0
    %v2025 = vadd.f32 %v1936, %v2024
    %2026 = vmatmul.bf16.gmra.mxu0 %v895
    %v2027 = vpop.f32.mrf.mxu0
    %v2028 = vadd.f32 %v1939, %v2027
    %v2029 = vpop.f32.mrf.mxu0
    %v2030 = vadd.f32 %v1941, %v2029
    %2031 = vdwg.mxu0
    %2032 = vmatpush.bf16.msra.mxu0 %v1344
    %2033 = vmatpush.bf16.msra.mxu0 %v1343
    %2034 = vmatpush.bf16.msra.mxu0 %v1342
    %2035 = vmatpush.bf16.msra.mxu0 %v1341
    %2036 = vmatpush.bf16.msra.mxu0 %v1340
    %2037 = vmatpush.bf16.msra.mxu0 %v1339
    %2038 = vmatpush.bf16.msra.mxu0 %v1338
    %2039 = vmatpush.bf16.msra.mxu0 %v1337
    %2040 = vmatmul.bf16.gmra.mxu0 %v776
    %v2041 = vpop.f32.mrf.mxu0
    %v2042 = vadd.f32 %v1953, %v2041
    %v2043 = vpop.f32.mrf.mxu0
    %v2044 = vadd.f32 %v1955, %v2043
    %2045 = vmatmul.bf16.gmra.mxu0 %v784
    %v2046 = vpop.f32.mrf.mxu0
    %v2047 = vadd.f32 %v1958, %v2046
    %v2048 = vpop.f32.mrf.mxu0
    %v2049 = vadd.f32 %v1960, %v2048
    %2050 = vmatmul.bf16.gmra.mxu0 %v792
    %v2051 = vpop.f32.mrf.mxu0
    %v2052 = vadd.f32 %v1963, %v2051
    %v2053 = vpop.f32.mrf.mxu0
    %v2054 = vadd.f32 %v1965, %v2053
    %2055 = vmatmul.bf16.gmra.mxu0 %v800
    %v2056 = vpop.f32.mrf.mxu0
    %v2057 = vadd.f32 %v1968, %v2056
    %v2058 = vpop.f32.mrf.mxu0
    %v2059 = vadd.f32 %v1970, %v2058
    %2060 = vmatmul.bf16.gmra.mxu0 %v808
    %v2061 = vpop.f32.mrf.mxu0
    %v2062 = vadd.f32 %v1973, %v2061
    %v2063 = vpop.f32.mrf.mxu0
    %v2064 = vadd.f32 %v1975, %v2063
    %2065 = vmatmul.bf16.gmra.mxu0 %v816
    %v2066 = vpop.f32.mrf.mxu0
    %v2067 = vadd.f32 %v1978, %v2066
    %v2068 = vpop.f32.mrf.mxu0
    %v2069 = vadd.f32 %v1980, %v2068
    %2070 = vmatmul.bf16.gmra.mxu0 %v824
    %v2071 = vpop.f32.mrf.mxu0
    %v2072 = vadd.f32 %v1983, %v2071
    %v2073 = vpop.f32.mrf.mxu0
    %v2074 = vadd.f32 %v1985, %v2073
    %2075 = vmatmul.bf16.gmra.mxu0 %v832
    %v2076 = vpop.f32.mrf.mxu0
    %v2077 = vadd.f32 %v1988, %v2076
    %v2078 = vpop.f32.mrf.mxu0
    %v2079 = vadd.f32 %v1990, %v2078
    %2080 = vmatmul.bf16.gmra.mxu0 %v840
    %v2081 = vpop.f32.mrf.mxu0
    %v2082 = vadd.f32 %v1993, %v2081
    %v2083 = vpop.f32.mrf.mxu0
    %v2084 = vadd.f32 %v1995, %v2083
    %2085 = vmatmul.bf16.gmra.mxu0 %v848
    %v2086 = vpop.f32.mrf.mxu0
    %v2087 = vadd.f32 %v1998, %v2086
    %v2088 = vpop.f32.mrf.mxu0
    %v2089 = vadd.f32 %v2000, %v2088
    %2090 = vmatmul.bf16.gmra.mxu0 %v856
    %v2091 = vpop.f32.mrf.mxu0
    %v2092 = vadd.f32 %v2003, %v2091
    %v2093 = vpop.f32.mrf.mxu0
    %v2094 = vadd.f32 %v2005, %v2093
    %2095 = vmatmul.bf16.gmra.mxu0 %v864
    %v2096 = vpop.f32.mrf.mxu0
    %v2097 = vadd.f32 %v2008, %v2096
    %v2098 = vpop.f32.mrf.mxu0
    %v2099 = vadd.f32 %v2010, %v2098
    %2100 = vmatmul.bf16.gmra.mxu0 %v872
    %v2101 = vpop.f32.mrf.mxu0
    %v2102 = vadd.f32 %v2013, %v2101
    %v2103 = vpop.f32.mrf.mxu0
    %v2104 = vadd.f32 %v2015, %v2103
    %2105 = vmatmul.bf16.gmra.mxu0 %v880
    %v2106 = vpop.f32.mrf.mxu0
    %v2107 = vadd.f32 %v2018, %v2106
    %v2108 = vpop.f32.mrf.mxu0
    %v2109 = vadd.f32 %v2020, %v2108
    %2110 = vmatmul.bf16.gmra.mxu0 %v888
    %v2111 = vpop.f32.mrf.mxu0
    %v2112 = vadd.f32 %v2023, %v2111
    %v2113 = vpop.f32.mrf.mxu0
    %v2114 = vadd.f32 %v2025, %v2113
    %2115 = vmatmul.bf16.gmra.mxu0 %v896
    %v2116 = vpop.f32.mrf.mxu0
    %v2117 = vadd.f32 %v2028, %v2116
    %v2118 = vpop.f32.mrf.mxu0
    %v2119 = vadd.f32 %v2030, %v2118
    %2120 = vdwg.mxu0
    %v2121 = vmax.f32 %v2042, 0.0
    %v2122 = vmax.f32 %v2044, 0.0
    %v2123 = vmax.f32 %v2047, 0.0
    %v2124 = vmax.f32 %v2049, 0.0
    %v2125 = vmax.f32 %v2052, 0.0
    %v2126 = vmax.f32 %v2054, 0.0
    %v2127 = vmax.f32 %v2057, 0.0
    %v2128 = vmax.f32 %v2059, 0.0
    %v2129 = vmax.f32 %v2062, 0.0
    %v2130 = vmax.f32 %v2064, 0.0
    %v2131 = vmax.f32 %v2067, 0.0
    %v2132 = vmax.f32 %v2069, 0.0
    %v2133 = vmax.f32 %v2072, 0.0
    %v2134 = vmax.f32 %v2074, 0.0
    %v2135 = vmax.f32 %v2077, 0.0
    %v2136 = vmax.f32 %v2079, 0.0
    %v2137 = vmax.f32 %v2082, 0.0
    %v2138 = vmax.f32 %v2084, 0.0
    %v2139 = vmax.f32 %v2087, 0.0
    %v2140 = vmax.f32 %v2089, 0.0
    %v2141 = vmax.f32 %v2092, 0.0
    %v2142 = vmax.f32 %v2094, 0.0
    %v2143 = vmax.f32 %v2097, 0.0
    %v2144 = vmax.f32 %v2099, 0.0
    %v2145 = vmax.f32 %v2102, 0.0
    %v2146 = vmax.f32 %v2104, 0.0
    %v2147 = vmax.f32 %v2107, 0.0
    %v2148 = vmax.f32 %v2109, 0.0
    %v2149 = vmax.f32 %v2112, 0.0
    %v2150 = vmax.f32 %v2114, 0.0
    %v2151 = vmax.f32 %v2117, 0.0
    %v2152 = vmax.f32 %v2119, 0.0
    %v2153 = vpack.c.bf16 %v2122, %v2121
    %v2154 = vpack.c.bf16 %v2124, %v2123
    %v2155 = vpack.c.bf16 %v2126, %v2125
    %v2156 = vpack.c.bf16 %v2128, %v2127
    %v2157 = vpack.c.bf16 %v2130, %v2129
    %v2158 = vpack.c.bf16 %v2132, %v2131
    %v2159 = vpack.c.bf16 %v2134, %v2133
    %v2160 = vpack.c.bf16 %v2136, %v2135
    %v2161 = vpack.c.bf16 %v2138, %v2137
    %v2162 = vpack.c.bf16 %v2140, %v2139
    %v2163 = vpack.c.bf16 %v2142, %v2141
    %v2164 = vpack.c.bf16 %v2144, %v2143
    %v2165 = vpack.c.bf16 %v2146, %v2145
    %v2166 = vpack.c.bf16 %v2148, %v2147
    %v2167 = vpack.c.bf16 %v2150, %v2149
    %v2168 = vpack.c.bf16 %v2152, %v2151
    %v2169 = vld [vmem:[#allocation7] sm:$0xf]
    %v2170 = vld [vmem:[#allocation7 + $0x4] sm:$0xf]
    %v2171 = vld [vmem:[#allocation7 + $0x8] sm:$0xf]
    %v2172 = vld [vmem:[#allocation7 + $0xc] sm:$0xf]
    %v2173 = vld [vmem:[#allocation7 + $0x10] sm:$0xf]
    %v2174 = vld [vmem:[#allocation7 + $0x14] sm:$0xf]
    %v2175 = vld [vmem:[#allocation7 + $0x18] sm:$0xf]
    %v2176 = vld [vmem:[#allocation7 + $0x1c] sm:$0xf]
    %v2177 = vld [vmem:[#allocation7 + $0x20] sm:$0xf]
    %v2178 = vld [vmem:[#allocation7 + $0x24] sm:$0xf]
    %v2179 = vld [vmem:[#allocation7 + $0x28] sm:$0xf]
    %v2180 = vld [vmem:[#allocation7 + $0x2c] sm:$0xf]
    %v2181 = vld [vmem:[#allocation7 + $0x30] sm:$0xf]
    %v2182 = vld [vmem:[#allocation7 + $0x34] sm:$0xf]
    %v2183 = vld [vmem:[#allocation7 + $0x38] sm:$0xf]
    %v2184 = vld [vmem:[#allocation7 + $0x3c] sm:$0xf]
    %v2185 = vld [vmem:[%s4] sm:$0x1]
    %v2187 = vperm.slane %v2185, 0
    %v2205 = vunpack.c.l.b16 %v2169
    %v2206 = vunpack.c.l.b16 %v2170
    %v2207 = vunpack.c.l.b16 %v2171
    %v2208 = vunpack.c.l.b16 %v2172
    %v2209 = vunpack.c.l.b16 %v2173
    %v2210 = vunpack.c.l.b16 %v2174
    %v2211 = vunpack.c.l.b16 %v2175
    %v2212 = vunpack.c.l.b16 %v2176
    %v2213 = vunpack.c.l.b16 %v2177
    %v2214 = vunpack.c.l.b16 %v2178
    %v2215 = vunpack.c.l.b16 %v2179
    %v2216 = vunpack.c.l.b16 %v2180
    %v2217 = vunpack.c.l.b16 %v2181
    %v2218 = vunpack.c.l.b16 %v2182
    %v2219 = vunpack.c.l.b16 %v2183
    %v2220 = vunpack.c.l.b16 %v2184
    %v2221 = vpack.c.b16 %v2206, %v2205
    %v2222 = vpack.c.b16 %v2208, %v2207
    %v2223 = vpack.c.b16 %v2210, %v2209
    %v2224 = vpack.c.b16 %v2212, %v2211
    %v2225 = vpack.c.b16 %v2214, %v2213
    %v2226 = vpack.c.b16 %v2216, %v2215
    %v2227 = vpack.c.b16 %v2218, %v2217
    %v2228 = vpack.c.b16 %v2220, %v2219
    %2237 = vmatpush.bf16.msra.mxu0 %v2228
    %2238 = vmatpush.bf16.msra.mxu0 %v2227
    %2239 = vmatpush.bf16.msra.mxu0 %v2226
    %2240 = vmatpush.bf16.msra.mxu0 %v2225
    %2241 = vmatpush.bf16.msra.mxu0 %v2224
    %2242 = vmatpush.bf16.msra.mxu0 %v2223
    %2243 = vmatpush.bf16.msra.mxu0 %v2222
    %2244 = vmatpush.bf16.msra.mxu0 %v2221
    %2245 = vmatmul.bf16.gmra.mxu0 %v2153
    %v2246 = vpop.f32.mrf.mxu0
    %v2247 = vadd.f32 %v2187, %v2246
    %v2248 = vpop.f32.mrf.mxu0
    %v2249 = vadd.f32 %v2187, %v2248
    %2250 = vmatmul.bf16.gmra.mxu0 %v2154
    %v2251 = vpop.f32.mrf.mxu0
    %v2252 = vadd.f32 %v2187, %v2251
    %v2253 = vpop.f32.mrf.mxu0
    %v2254 = vadd.f32 %v2187, %v2253
    %2255 = vmatmul.bf16.gmra.mxu0 %v2155
    %v2256 = vpop.f32.mrf.mxu0
    %v2257 = vadd.f32 %v2187, %v2256
    %v2258 = vpop.f32.mrf.mxu0
    %v2259 = vadd.f32 %v2187, %v2258
    %2260 = vmatmul.bf16.gmra.mxu0 %v2156
    %v2261 = vpop.f32.mrf.mxu0
    %v2262 = vadd.f32 %v2187, %v2261
    %v2263 = vpop.f32.mrf.mxu0
    %v2264 = vadd.f32 %v2187, %v2263
    %2265 = vmatmul.bf16.gmra.mxu0 %v2157
    %v2266 = vpop.f32.mrf.mxu0
    %v2267 = vadd.f32 %v2187, %v2266
    %v2268 = vpop.f32.mrf.mxu0
    %v2269 = vadd.f32 %v2187, %v2268
    %2270 = vmatmul.bf16.gmra.mxu0 %v2158
    %v2271 = vpop.f32.mrf.mxu0
    %v2272 = vadd.f32 %v2187, %v2271
    %v2273 = vpop.f32.mrf.mxu0
    %v2274 = vadd.f32 %v2187, %v2273
    %2275 = vmatmul.bf16.gmra.mxu0 %v2159
    %v2276 = vpop.f32.mrf.mxu0
    %v2277 = vadd.f32 %v2187, %v2276
    %v2278 = vpop.f32.mrf.mxu0
    %v2279 = vadd.f32 %v2187, %v2278
    %2280 = vmatmul.bf16.gmra.mxu0 %v2160
    %v2281 = vpop.f32.mrf.mxu0
    %v2282 = vadd.f32 %v2187, %v2281
    %v2283 = vpop.f32.mrf.mxu0
    %v2284 = vadd.f32 %v2187, %v2283
    %2285 = vmatmul.bf16.gmra.mxu0 %v2161
    %v2286 = vpop.f32.mrf.mxu0
    %v2287 = vadd.f32 %v2187, %v2286
    %v2288 = vpop.f32.mrf.mxu0
    %v2289 = vadd.f32 %v2187, %v2288
    %2290 = vmatmul.bf16.gmra.mxu0 %v2162
    %v2291 = vpop.f32.mrf.mxu0
    %v2292 = vadd.f32 %v2187, %v2291
    %v2293 = vpop.f32.mrf.mxu0
    %v2294 = vadd.f32 %v2187, %v2293
    %2295 = vmatmul.bf16.gmra.mxu0 %v2163
    %v2296 = vpop.f32.mrf.mxu0
    %v2297 = vadd.f32 %v2187, %v2296
    %v2298 = vpop.f32.mrf.mxu0
    %v2299 = vadd.f32 %v2187, %v2298
    %2300 = vmatmul.bf16.gmra.mxu0 %v2164
    %v2301 = vpop.f32.mrf.mxu0
    %v2302 = vadd.f32 %v2187, %v2301
    %v2303 = vpop.f32.mrf.mxu0
    %v2304 = vadd.f32 %v2187, %v2303
    %2305 = vmatmul.bf16.gmra.mxu0 %v2165
    %v2306 = vpop.f32.mrf.mxu0
    %v2307 = vadd.f32 %v2187, %v2306
    %v2308 = vpop.f32.mrf.mxu0
    %v2309 = vadd.f32 %v2187, %v2308
    %2310 = vmatmul.bf16.gmra.mxu0 %v2166
    %v2311 = vpop.f32.mrf.mxu0
    %v2312 = vadd.f32 %v2187, %v2311
    %v2313 = vpop.f32.mrf.mxu0
    %v2314 = vadd.f32 %v2187, %v2313
    %2315 = vmatmul.bf16.gmra.mxu0 %v2167
    %v2316 = vpop.f32.mrf.mxu0
    %v2317 = vadd.f32 %v2187, %v2316
    %v2318 = vpop.f32.mrf.mxu0
    %v2319 = vadd.f32 %v2187, %v2318
    %2320 = vmatmul.bf16.gmra.mxu0 %v2168
    %v2321 = vpop.f32.mrf.mxu0
    %v2322 = vadd.f32 %v2187, %v2321
    %v2323 = vpop.f32.mrf.mxu0
    %v2324 = vadd.f32 %v2187, %v2323
    %2325 = vdwg.mxu0
    %v2326 = vpack.c.bf16 %v2249, %v2247
    %v2327 = vpack.c.bf16 %v2254, %v2252
    %v2328 = vpack.c.bf16 %v2259, %v2257
    %v2329 = vpack.c.bf16 %v2264, %v2262
    %v2330 = vpack.c.bf16 %v2269, %v2267
    %v2331 = vpack.c.bf16 %v2274, %v2272
    %v2332 = vpack.c.bf16 %v2279, %v2277
    %v2333 = vpack.c.bf16 %v2284, %v2282
    %v2334 = vpack.c.bf16 %v2289, %v2287
    %v2335 = vpack.c.bf16 %v2294, %v2292
    %v2336 = vpack.c.bf16 %v2299, %v2297
    %v2337 = vpack.c.bf16 %v2304, %v2302
    %v2338 = vpack.c.bf16 %v2309, %v2307
    %v2339 = vpack.c.bf16 %v2314, %v2312
    %v2340 = vpack.c.bf16 %v2319, %v2317
    %v2341 = vpack.c.bf16 %v2324, %v2322
    %v2342 = vld [vmem:[#allocation8] sm:$0xf]
    %v2343 = vld [vmem:[#allocation8 + $0x4] sm:$0xf]
    %v2344 = vld [vmem:[#allocation8 + $0x8] sm:$0xf]
    %v2345 = vld [vmem:[#allocation8 + $0xc] sm:$0xf]
    %v2346 = vld [vmem:[#allocation8 + $0x10] sm:$0xf]
    %v2347 = vld [vmem:[#allocation8 + $0x14] sm:$0xf]
    %v2348 = vld [vmem:[#allocation8 + $0x18] sm:$0xf]
    %v2349 = vld [vmem:[#allocation8 + $0x1c] sm:$0xf]
    %v2350 = vld [vmem:[#allocation8 + $0x20] sm:$0xf]
    %v2351 = vld [vmem:[#allocation8 + $0x24] sm:$0xf]
    %v2352 = vld [vmem:[#allocation8 + $0x28] sm:$0xf]
    %v2353 = vld [vmem:[#allocation8 + $0x2c] sm:$0xf]
    %v2354 = vld [vmem:[#allocation8 + $0x30] sm:$0xf]
    %v2355 = vld [vmem:[#allocation8 + $0x34] sm:$0xf]
    %v2356 = vld [vmem:[#allocation8 + $0x38] sm:$0xf]
    %v2357 = vld [vmem:[#allocation8 + $0x3c] sm:$0xf]
    %v2358 = vld [vmem:[%s6] sm:$0x1]
    %v2360 = vperm.slane %v2358, 0
    %v2378 = vunpack.c.l.b16 %v2342
    %v2379 = vunpack.c.l.b16 %v2343
    %v2380 = vunpack.c.l.b16 %v2344
    %v2381 = vunpack.c.l.b16 %v2345
    %v2382 = vunpack.c.l.b16 %v2346
    %v2383 = vunpack.c.l.b16 %v2347
    %v2384 = vunpack.c.l.b16 %v2348
    %v2385 = vunpack.c.l.b16 %v2349
    %v2386 = vunpack.c.l.b16 %v2350
    %v2387 = vunpack.c.l.b16 %v2351
    %v2388 = vunpack.c.l.b16 %v2352
    %v2389 = vunpack.c.l.b16 %v2353
    %v2390 = vunpack.c.l.b16 %v2354
    %v2391 = vunpack.c.l.b16 %v2355
    %v2392 = vunpack.c.l.b16 %v2356
    %v2393 = vunpack.c.l.b16 %v2357
    %v2394 = vpack.c.b16 %v2379, %v2378
    %v2395 = vpack.c.b16 %v2381, %v2380
    %v2396 = vpack.c.b16 %v2383, %v2382
    %v2397 = vpack.c.b16 %v2385, %v2384
    %v2398 = vpack.c.b16 %v2387, %v2386
    %v2399 = vpack.c.b16 %v2389, %v2388
    %v2400 = vpack.c.b16 %v2391, %v2390
    %v2401 = vpack.c.b16 %v2393, %v2392
    %2410 = vmatpush.bf16.msra.mxu0 %v2401
    %2411 = vmatpush.bf16.msra.mxu0 %v2400
    %2412 = vmatpush.bf16.msra.mxu0 %v2399
    %2413 = vmatpush.bf16.msra.mxu0 %v2398
    %2414 = vmatpush.bf16.msra.mxu0 %v2397
    %2415 = vmatpush.bf16.msra.mxu0 %v2396
    %2416 = vmatpush.bf16.msra.mxu0 %v2395
    %2417 = vmatpush.bf16.msra.mxu0 %v2394
    %2418 = vmatmul.bf16.gmra.mxu0 %v2326
    %v2419 = vpop.f32.mrf.mxu0
    %v2420 = vadd.f32 %v2360, %v2419
    %v2421 = vpop.f32.mrf.mxu0
    %v2422 = vadd.f32 %v2360, %v2421
    %2423 = vmatmul.bf16.gmra.mxu0 %v2327
    %v2424 = vpop.f32.mrf.mxu0
    %v2425 = vadd.f32 %v2360, %v2424
    %v2426 = vpop.f32.mrf.mxu0
    %v2427 = vadd.f32 %v2360, %v2426
    %2428 = vmatmul.bf16.gmra.mxu0 %v2328
    %v2429 = vpop.f32.mrf.mxu0
    %v2430 = vadd.f32 %v2360, %v2429
    %v2431 = vpop.f32.mrf.mxu0
    %v2432 = vadd.f32 %v2360, %v2431
    %2433 = vmatmul.bf16.gmra.mxu0 %v2329
    %v2434 = vpop.f32.mrf.mxu0
    %v2435 = vadd.f32 %v2360, %v2434
    %v2436 = vpop.f32.mrf.mxu0
    %v2437 = vadd.f32 %v2360, %v2436
    %2438 = vmatmul.bf16.gmra.mxu0 %v2330
    %v2439 = vpop.f32.mrf.mxu0
    %v2440 = vadd.f32 %v2360, %v2439
    %v2441 = vpop.f32.mrf.mxu0
    %v2442 = vadd.f32 %v2360, %v2441
    %2443 = vmatmul.bf16.gmra.mxu0 %v2331
    %v2444 = vpop.f32.mrf.mxu0
    %v2445 = vadd.f32 %v2360, %v2444
    %v2446 = vpop.f32.mrf.mxu0
    %v2447 = vadd.f32 %v2360, %v2446
    %2448 = vmatmul.bf16.gmra.mxu0 %v2332
    %v2449 = vpop.f32.mrf.mxu0
    %v2450 = vadd.f32 %v2360, %v2449
    %v2451 = vpop.f32.mrf.mxu0
    %v2452 = vadd.f32 %v2360, %v2451
    %2453 = vmatmul.bf16.gmra.mxu0 %v2333
    %v2454 = vpop.f32.mrf.mxu0
    %v2455 = vadd.f32 %v2360, %v2454
    %v2456 = vpop.f32.mrf.mxu0
    %v2457 = vadd.f32 %v2360, %v2456
    %2458 = vmatmul.bf16.gmra.mxu0 %v2334
    %v2459 = vpop.f32.mrf.mxu0
    %v2460 = vadd.f32 %v2360, %v2459
    %v2461 = vpop.f32.mrf.mxu0
    %v2462 = vadd.f32 %v2360, %v2461
    %2463 = vmatmul.bf16.gmra.mxu0 %v2335
    %v2464 = vpop.f32.mrf.mxu0
    %v2465 = vadd.f32 %v2360, %v2464
    %v2466 = vpop.f32.mrf.mxu0
    %v2467 = vadd.f32 %v2360, %v2466
    %2468 = vmatmul.bf16.gmra.mxu0 %v2336
    %v2469 = vpop.f32.mrf.mxu0
    %v2470 = vadd.f32 %v2360, %v2469
    %v2471 = vpop.f32.mrf.mxu0
    %v2472 = vadd.f32 %v2360, %v2471
    %2473 = vmatmul.bf16.gmra.mxu0 %v2337
    %v2474 = vpop.f32.mrf.mxu0
    %v2475 = vadd.f32 %v2360, %v2474
    %v2476 = vpop.f32.mrf.mxu0
    %v2477 = vadd.f32 %v2360, %v2476
    %2478 = vmatmul.bf16.gmra.mxu0 %v2338
    %v2479 = vpop.f32.mrf.mxu0
    %v2480 = vadd.f32 %v2360, %v2479
    %v2481 = vpop.f32.mrf.mxu0
    %v2482 = vadd.f32 %v2360, %v2481
    %2483 = vmatmul.bf16.gmra.mxu0 %v2339
    %v2484 = vpop.f32.mrf.mxu0
    %v2485 = vadd.f32 %v2360, %v2484
    %v2486 = vpop.f32.mrf.mxu0
    %v2487 = vadd.f32 %v2360, %v2486
    %2488 = vmatmul.bf16.gmra.mxu0 %v2340
    %v2489 = vpop.f32.mrf.mxu0
    %v2490 = vadd.f32 %v2360, %v2489
    %v2491 = vpop.f32.mrf.mxu0
    %v2492 = vadd.f32 %v2360, %v2491
    %2493 = vmatmul.bf16.gmra.mxu0 %v2341
    %v2494 = vpop.f32.mrf.mxu0
    %v2495 = vadd.f32 %v2360, %v2494
    %v2496 = vpop.f32.mrf.mxu0
    %v2497 = vadd.f32 %v2360, %v2496
    %2498 = vdwg.mxu0
    %v2499 = vmax.f32 %v2420, 0.0
    %v2500 = vmax.f32 %v2422, 0.0
    %v2501 = vmax.f32 %v2425, 0.0
    %v2502 = vmax.f32 %v2427, 0.0
    %v2503 = vmax.f32 %v2430, 0.0
    %v2504 = vmax.f32 %v2432, 0.0
    %v2505 = vmax.f32 %v2435, 0.0
    %v2506 = vmax.f32 %v2437, 0.0
    %v2507 = vmax.f32 %v2440, 0.0
    %v2508 = vmax.f32 %v2442, 0.0
    %v2509 = vmax.f32 %v2445, 0.0
    %v2510 = vmax.f32 %v2447, 0.0
    %v2511 = vmax.f32 %v2450, 0.0
    %v2512 = vmax.f32 %v2452, 0.0
    %v2513 = vmax.f32 %v2455, 0.0
    %v2514 = vmax.f32 %v2457, 0.0
    %v2515 = vmax.f32 %v2460, 0.0
    %v2516 = vmax.f32 %v2462, 0.0
    %v2517 = vmax.f32 %v2465, 0.0
    %v2518 = vmax.f32 %v2467, 0.0
    %v2519 = vmax.f32 %v2470, 0.0
    %v2520 = vmax.f32 %v2472, 0.0
    %v2521 = vmax.f32 %v2475, 0.0
    %v2522 = vmax.f32 %v2477, 0.0
    %v2523 = vmax.f32 %v2480, 0.0
    %v2524 = vmax.f32 %v2482, 0.0
    %v2525 = vmax.f32 %v2485, 0.0
    %v2526 = vmax.f32 %v2487, 0.0
    %v2527 = vmax.f32 %v2490, 0.0
    %v2528 = vmax.f32 %v2492, 0.0
    %v2529 = vmax.f32 %v2495, 0.0
    %v2530 = vmax.f32 %v2497, 0.0
    %v2531 = vpack.c.bf16 %v2500, %v2499
    %v2532 = vpack.c.bf16 %v2502, %v2501
    %v2533 = vpack.c.bf16 %v2504, %v2503
    %v2534 = vpack.c.bf16 %v2506, %v2505
    %v2535 = vpack.c.bf16 %v2508, %v2507
    %v2536 = vpack.c.bf16 %v2510, %v2509
    %v2537 = vpack.c.bf16 %v2512, %v2511
    %v2538 = vpack.c.bf16 %v2514, %v2513
    %v2539 = vpack.c.bf16 %v2516, %v2515
    %v2540 = vpack.c.bf16 %v2518, %v2517
    %v2541 = vpack.c.bf16 %v2520, %v2519
    %v2542 = vpack.c.bf16 %v2522, %v2521
    %v2543 = vpack.c.bf16 %v2524, %v2523
    %v2544 = vpack.c.bf16 %v2526, %v2525
    %v2545 = vpack.c.bf16 %v2528, %v2527
    %v2546 = vpack.c.bf16 %v2530, %v2529
    %v2547 = vld [vmem:[#allocation10] sm:$0xff]
    %v2548 = vld [vmem:[#allocation10 + $0x8] sm:$0xff]
    %v2549 = vld [vmem:[#allocation10 + $0x10] sm:$0xff]
    %v2550 = vld [vmem:[#allocation10 + $0x18] sm:$0xff]
    %v2551 = vld [vmem:[#allocation10 + $0x20] sm:$0xff]
    %v2552 = vld [vmem:[#allocation10 + $0x28] sm:$0xff]
    %v2553 = vld [vmem:[#allocation10 + $0x30] sm:$0xff]
    %v2554 = vld [vmem:[#allocation10 + $0x38] sm:$0xff]
    %v2555 = vld [vmem:[#allocation10 + $0x40] sm:$0xff]
    %v2556 = vld [vmem:[#allocation10 + $0x48] sm:$0xff]
    %v2557 = vld [vmem:[#allocation10 + $0x50] sm:$0xff]
    %v2558 = vld [vmem:[#allocation10 + $0x58] sm:$0xff]
    %v2559 = vld [vmem:[#allocation10 + $0x60] sm:$0xff]
    %v2560 = vld [vmem:[#allocation10 + $0x68] sm:$0xff]
    %v2561 = vld [vmem:[#allocation10 + $0x70] sm:$0xff]
    %v2562 = vld [vmem:[#allocation10 + $0x78] sm:$0xff]
    %v2563 = vld [vmem:[#allocation10 + $0x80] sm:$0xff]
    %v2564 = vld [vmem:[#allocation10 + $0x88] sm:$0xff]
    %v2565 = vld [vmem:[#allocation10 + $0x90] sm:$0xff]
    %v2566 = vld [vmem:[#allocation10 + $0x98] sm:$0xff]
    %v2567 = vld [vmem:[#allocation10 + $0xa0] sm:$0xff]
    %v2568 = vld [vmem:[#allocation10 + $0xa8] sm:$0xff]
    %v2569 = vld [vmem:[#allocation10 + $0xb0] sm:$0xff]
    %v2570 = vld [vmem:[#allocation10 + $0xb8] sm:$0xff]
    %v2571 = vld [vmem:[#allocation10 + $0xc0] sm:$0xff]
    %v2572 = vld [vmem:[#allocation10 + $0xc8] sm:$0xff]
    %v2573 = vld [vmem:[#allocation10 + $0xd0] sm:$0xff]
    %v2574 = vld [vmem:[#allocation10 + $0xd8] sm:$0xff]
    %v2575 = vld [vmem:[#allocation10 + $0xe0] sm:$0xff]
    %v2576 = vld [vmem:[#allocation10 + $0xe8] sm:$0xff]
    %v2577 = vld [vmem:[#allocation10 + $0xf0] sm:$0xff]
    %v2578 = vld [vmem:[#allocation10 + $0xf8] sm:$0xff]
    %v2579 = vld [vmem:[#allocation10 + $0x100] sm:$0xff]
    %v2580 = vld [vmem:[#allocation10 + $0x108] sm:$0xff]
    %v2581 = vld [vmem:[#allocation10 + $0x110] sm:$0xff]
    %v2582 = vld [vmem:[#allocation10 + $0x118] sm:$0xff]
    %v2583 = vld [vmem:[#allocation10 + $0x120] sm:$0xff]
    %v2584 = vld [vmem:[#allocation10 + $0x128] sm:$0xff]
    %v2585 = vld [vmem:[#allocation10 + $0x130] sm:$0xff]
    %v2586 = vld [vmem:[#allocation10 + $0x138] sm:$0xff]
    %v2587 = vld [vmem:[#allocation10 + $0x140] sm:$0xff]
    %v2588 = vld [vmem:[#allocation10 + $0x148] sm:$0xff]
    %v2589 = vld [vmem:[#allocation10 + $0x150] sm:$0xff]
    %v2590 = vld [vmem:[#allocation10 + $0x158] sm:$0xff]
    %v2591 = vld [vmem:[#allocation10 + $0x160] sm:$0xff]
    %v2592 = vld [vmem:[#allocation10 + $0x168] sm:$0xff]
    %v2593 = vld [vmem:[#allocation10 + $0x170] sm:$0xff]
    %v2594 = vld [vmem:[#allocation10 + $0x178] sm:$0xff]
    %v2595 = vld [vmem:[#allocation10 + $0x180] sm:$0xff]
    %v2596 = vld [vmem:[#allocation10 + $0x188] sm:$0xff]
    %v2597 = vld [vmem:[#allocation10 + $0x190] sm:$0xff]
    %v2598 = vld [vmem:[#allocation10 + $0x198] sm:$0xff]
    %v2599 = vld [vmem:[#allocation10 + $0x1a0] sm:$0xff]
    %v2600 = vld [vmem:[#allocation10 + $0x1a8] sm:$0xff]
    %v2601 = vld [vmem:[#allocation10 + $0x1b0] sm:$0xff]
    %v2602 = vld [vmem:[#allocation10 + $0x1b8] sm:$0xff]
    %v2603 = vld [vmem:[#allocation10 + $0x1c0] sm:$0xff]
    %v2604 = vld [vmem:[#allocation10 + $0x1c8] sm:$0xff]
    %v2605 = vld [vmem:[#allocation10 + $0x1d0] sm:$0xff]
    %v2606 = vld [vmem:[#allocation10 + $0x1d8] sm:$0xff]
    %v2607 = vld [vmem:[#allocation10 + $0x1e0] sm:$0xff]
    %v2608 = vld [vmem:[#allocation10 + $0x1e8] sm:$0xff]
    %v2609 = vld [vmem:[#allocation10 + $0x1f0] sm:$0xff]
    %v2610 = vld [vmem:[#allocation10 + $0x1f8] sm:$0xff]
    %v2611 = vld [vmem:[#allocation11] sm:$0xff]
    %v2613 = vperm.slane %v2611, 0
    %v2614 = vperm.slane %v2611, 1
    %v2615 = vperm.slane %v2611, 2
    %v2616 = vperm.slane %v2611, 3
    %v2617 = vperm.slane %v2611, 4
    %v2618 = vperm.slane %v2611, 5
    %v2619 = vperm.slane %v2611, 6
    %v2620 = vperm.slane %v2611, 7
    %v2693 = vunpack.c.l.b16 %v2547
    %v2694 = vunpack.c.h.b16 %v2547
    %v2695 = vunpack.c.l.b16 %v2548
    %v2696 = vunpack.c.h.b16 %v2548
    %v2697 = vunpack.c.l.b16 %v2549
    %v2698 = vunpack.c.h.b16 %v2549
    %v2699 = vunpack.c.l.b16 %v2550
    %v2700 = vunpack.c.h.b16 %v2550
    %v2701 = vunpack.c.l.b16 %v2551
    %v2702 = vunpack.c.h.b16 %v2551
    %v2703 = vunpack.c.l.b16 %v2552
    %v2704 = vunpack.c.h.b16 %v2552
    %v2705 = vunpack.c.l.b16 %v2553
    %v2706 = vunpack.c.h.b16 %v2553
    %v2707 = vunpack.c.l.b16 %v2554
    %v2708 = vunpack.c.h.b16 %v2554
    %v2709 = vunpack.c.l.b16 %v2555
    %v2710 = vunpack.c.h.b16 %v2555
    %v2711 = vunpack.c.l.b16 %v2556
    %v2712 = vunpack.c.h.b16 %v2556
    %v2713 = vunpack.c.l.b16 %v2557
    %v2714 = vunpack.c.h.b16 %v2557
    %v2715 = vunpack.c.l.b16 %v2558
    %v2716 = vunpack.c.h.b16 %v2558
    %v2717 = vunpack.c.l.b16 %v2559
    %v2718 = vunpack.c.h.b16 %v2559
    %v2719 = vunpack.c.l.b16 %v2560
    %v2720 = vunpack.c.h.b16 %v2560
    %v2721 = vunpack.c.l.b16 %v2561
    %v2722 = vunpack.c.h.b16 %v2561
    %v2723 = vunpack.c.l.b16 %v2562
    %v2724 = vunpack.c.h.b16 %v2562
    %v2725 = vunpack.c.l.b16 %v2563
    %v2726 = vunpack.c.h.b16 %v2563
    %v2727 = vunpack.c.l.b16 %v2564
    %v2728 = vunpack.c.h.b16 %v2564
    %v2729 = vunpack.c.l.b16 %v2565
    %v2730 = vunpack.c.h.b16 %v2565
    %v2731 = vunpack.c.l.b16 %v2566
    %v2732 = vunpack.c.h.b16 %v2566
    %v2733 = vunpack.c.l.b16 %v2567
    %v2734 = vunpack.c.h.b16 %v2567
    %v2735 = vunpack.c.l.b16 %v2568
    %v2736 = vunpack.c.h.b16 %v2568
    %v2737 = vunpack.c.l.b16 %v2569
    %v2738 = vunpack.c.h.b16 %v2569
    %v2739 = vunpack.c.l.b16 %v2570
    %v2740 = vunpack.c.h.b16 %v2570
    %v2741 = vunpack.c.l.b16 %v2571
    %v2742 = vunpack.c.h.b16 %v2571
    %v2743 = vunpack.c.l.b16 %v2572
    %v2744 = vunpack.c.h.b16 %v2572
    %v2745 = vunpack.c.l.b16 %v2573
    %v2746 = vunpack.c.h.b16 %v2573
    %v2747 = vunpack.c.l.b16 %v2574
    %v2748 = vunpack.c.h.b16 %v2574
    %v2749 = vunpack.c.l.b16 %v2575
    %v2750 = vunpack.c.h.b16 %v2575
    %v2751 = vunpack.c.l.b16 %v2576
    %v2752 = vunpack.c.h.b16 %v2576
    %v2753 = vunpack.c.l.b16 %v2577
    %v2754 = vunpack.c.h.b16 %v2577
    %v2755 = vunpack.c.l.b16 %v2578
    %v2756 = vunpack.c.h.b16 %v2578
    %v2757 = vunpack.c.l.b16 %v2579
    %v2758 = vunpack.c.h.b16 %v2579
    %v2759 = vunpack.c.l.b16 %v2580
    %v2760 = vunpack.c.h.b16 %v2580
    %v2761 = vunpack.c.l.b16 %v2581
    %v2762 = vunpack.c.h.b16 %v2581
    %v2763 = vunpack.c.l.b16 %v2582
    %v2764 = vunpack.c.h.b16 %v2582
    %v2765 = vunpack.c.l.b16 %v2583
    %v2766 = vunpack.c.h.b16 %v2583
    %v2767 = vunpack.c.l.b16 %v2584
    %v2768 = vunpack.c.h.b16 %v2584
    %v2769 = vunpack.c.l.b16 %v2585
    %v2770 = vunpack.c.h.b16 %v2585
    %v2771 = vunpack.c.l.b16 %v2586
    %v2772 = vunpack.c.h.b16 %v2586
    %v2773 = vunpack.c.l.b16 %v2587
    %v2774 = vunpack.c.h.b16 %v2587
    %v2775 = vunpack.c.l.b16 %v2588
    %v2776 = vunpack.c.h.b16 %v2588
    %v2777 = vunpack.c.l.b16 %v2589
    %v2778 = vunpack.c.h.b16 %v2589
    %v2779 = vunpack.c.l.b16 %v2590
    %v2780 = vunpack.c.h.b16 %v2590
    %v2781 = vunpack.c.l.b16 %v2591
    %v2782 = vunpack.c.h.b16 %v2591
    %v2783 = vunpack.c.l.b16 %v2592
    %v2784 = vunpack.c.h.b16 %v2592
    %v2785 = vunpack.c.l.b16 %v2593
    %v2786 = vunpack.c.h.b16 %v2593
    %v2787 = vunpack.c.l.b16 %v2594
    %v2788 = vunpack.c.h.b16 %v2594
    %v2789 = vunpack.c.l.b16 %v2595
    %v2790 = vunpack.c.h.b16 %v2595
    %v2791 = vunpack.c.l.b16 %v2596
    %v2792 = vunpack.c.h.b16 %v2596
    %v2793 = vunpack.c.l.b16 %v2597
    %v2794 = vunpack.c.h.b16 %v2597
    %v2795 = vunpack.c.l.b16 %v2598
    %v2796 = vunpack.c.h.b16 %v2598
    %v2797 = vunpack.c.l.b16 %v2599
    %v2798 = vunpack.c.h.b16 %v2599
    %v2799 = vunpack.c.l.b16 %v2600
    %v2800 = vunpack.c.h.b16 %v2600
    %v2801 = vunpack.c.l.b16 %v2601
    %v2802 = vunpack.c.h.b16 %v2601
    %v2803 = vunpack.c.l.b16 %v2602
    %v2804 = vunpack.c.h.b16 %v2602
    %v2805 = vunpack.c.l.b16 %v2603
    %v2806 = vunpack.c.h.b16 %v2603
    %v2807 = vunpack.c.l.b16 %v2604
    %v2808 = vunpack.c.h.b16 %v2604
    %v2809 = vunpack.c.l.b16 %v2605
    %v2810 = vunpack.c.h.b16 %v2605
    %v2811 = vunpack.c.l.b16 %v2606
    %v2812 = vunpack.c.h.b16 %v2606
    %v2813 = vunpack.c.l.b16 %v2607
    %v2814 = vunpack.c.h.b16 %v2607
    %v2815 = vunpack.c.l.b16 %v2608
    %v2816 = vunpack.c.h.b16 %v2608
    %v2817 = vunpack.c.l.b16 %v2609
    %v2818 = vunpack.c.h.b16 %v2609
    %v2819 = vunpack.c.l.b16 %v2610
    %v2820 = vunpack.c.h.b16 %v2610
    %v2821 = vpack.c.b16 %v2701, %v2693
    %v2822 = vpack.c.b16 %v2702, %v2694
    %v2823 = vpack.c.b16 %v2703, %v2695
    %v2824 = vpack.c.b16 %v2704, %v2696
    %v2825 = vpack.c.b16 %v2705, %v2697
    %v2826 = vpack.c.b16 %v2706, %v2698
    %v2827 = vpack.c.b16 %v2707, %v2699
    %v2828 = vpack.c.b16 %v2708, %v2700
    %v2829 = vpack.c.b16 %v2717, %v2709
    %v2830 = vpack.c.b16 %v2718, %v2710
    %v2831 = vpack.c.b16 %v2719, %v2711
    %v2832 = vpack.c.b16 %v2720, %v2712
    %v2833 = vpack.c.b16 %v2721, %v2713
    %v2834 = vpack.c.b16 %v2722, %v2714
    %v2835 = vpack.c.b16 %v2723, %v2715
    %v2836 = vpack.c.b16 %v2724, %v2716
    %v2837 = vpack.c.b16 %v2733, %v2725
    %v2838 = vpack.c.b16 %v2734, %v2726
    %v2839 = vpack.c.b16 %v2735, %v2727
    %v2840 = vpack.c.b16 %v2736, %v2728
    %v2841 = vpack.c.b16 %v2737, %v2729
    %v2842 = vpack.c.b16 %v2738, %v2730
    %v2843 = vpack.c.b16 %v2739, %v2731
    %v2844 = vpack.c.b16 %v2740, %v2732
    %v2845 = vpack.c.b16 %v2749, %v2741
    %v2846 = vpack.c.b16 %v2750, %v2742
    %v2847 = vpack.c.b16 %v2751, %v2743
    %v2848 = vpack.c.b16 %v2752, %v2744
    %v2849 = vpack.c.b16 %v2753, %v2745
    %v2850 = vpack.c.b16 %v2754, %v2746
    %v2851 = vpack.c.b16 %v2755, %v2747
    %v2852 = vpack.c.b16 %v2756, %v2748
    %v2853 = vpack.c.b16 %v2765, %v2757
    %v2854 = vpack.c.b16 %v2766, %v2758
    %v2855 = vpack.c.b16 %v2767, %v2759
    %v2856 = vpack.c.b16 %v2768, %v2760
    %v2857 = vpack.c.b16 %v2769, %v2761
    %v2858 = vpack.c.b16 %v2770, %v2762
    %v2859 = vpack.c.b16 %v2771, %v2763
    %v2860 = vpack.c.b16 %v2772, %v2764
    %v2861 = vpack.c.b16 %v2781, %v2773
    %v2862 = vpack.c.b16 %v2782, %v2774
    %v2863 = vpack.c.b16 %v2783, %v2775
    %v2864 = vpack.c.b16 %v2784, %v2776
    %v2865 = vpack.c.b16 %v2785, %v2777
    %v2866 = vpack.c.b16 %v2786, %v2778
    %v2867 = vpack.c.b16 %v2787, %v2779
    %v2868 = vpack.c.b16 %v2788, %v2780
    %v2869 = vpack.c.b16 %v2797, %v2789
    %v2870 = vpack.c.b16 %v2798, %v2790
    %v2871 = vpack.c.b16 %v2799, %v2791
    %v2872 = vpack.c.b16 %v2800, %v2792
    %v2873 = vpack.c.b16 %v2801, %v2793
    %v2874 = vpack.c.b16 %v2802, %v2794
    %v2875 = vpack.c.b16 %v2803, %v2795
    %v2876 = vpack.c.b16 %v2804, %v2796
    %v2877 = vpack.c.b16 %v2813, %v2805
    %v2878 = vpack.c.b16 %v2814, %v2806
    %v2879 = vpack.c.b16 %v2815, %v2807
    %v2880 = vpack.c.b16 %v2816, %v2808
    %v2881 = vpack.c.b16 %v2817, %v2809
    %v2882 = vpack.c.b16 %v2818, %v2810
    %v2883 = vpack.c.b16 %v2819, %v2811
    %v2884 = vpack.c.b16 %v2820, %v2812
    %2949 = vmatpush.bf16.msra.mxu0 %v2877
    %2950 = vmatpush.bf16.msra.mxu0 %v2869
    %2951 = vmatpush.bf16.msra.mxu0 %v2861
    %2952 = vmatpush.bf16.msra.mxu0 %v2853
    %2953 = vmatpush.bf16.msra.mxu0 %v2845
    %2954 = vmatpush.bf16.msra.mxu0 %v2837
    %2955 = vmatpush.bf16.msra.mxu0 %v2829
    %2956 = vmatpush.bf16.msra.mxu0 %v2821
    %2957 = vmatmul.bf16.gmra.mxu0 %v2531
    %v2958 = vpop.f32.mrf.mxu0
    %v2959 = vadd.f32 %v2613, %v2958
    %v2960 = vpop.f32.mrf.mxu0
    %v2961 = vadd.f32 %v2613, %v2960
    %2962 = vmatmul.bf16.gmra.mxu0 %v2532
    %v2963 = vpop.f32.mrf.mxu0
    %v2964 = vadd.f32 %v2613, %v2963
    %v2965 = vpop.f32.mrf.mxu0
    %v2966 = vadd.f32 %v2613, %v2965
    %2967 = vmatmul.bf16.gmra.mxu0 %v2533
    %v2968 = vpop.f32.mrf.mxu0
    %v2969 = vadd.f32 %v2613, %v2968
    %v2970 = vpop.f32.mrf.mxu0
    %v2971 = vadd.f32 %v2613, %v2970
    %2972 = vmatmul.bf16.gmra.mxu0 %v2534
    %v2973 = vpop.f32.mrf.mxu0
    %v2974 = vadd.f32 %v2613, %v2973
    %v2975 = vpop.f32.mrf.mxu0
    %v2976 = vadd.f32 %v2613, %v2975
    %2977 = vmatmul.bf16.gmra.mxu0 %v2535
    %v2978 = vpop.f32.mrf.mxu0
    %v2979 = vadd.f32 %v2613, %v2978
    %v2980 = vpop.f32.mrf.mxu0
    %v2981 = vadd.f32 %v2613, %v2980
    %2982 = vmatmul.bf16.gmra.mxu0 %v2536
    %v2983 = vpop.f32.mrf.mxu0
    %v2984 = vadd.f32 %v2613, %v2983
    %v2985 = vpop.f32.mrf.mxu0
    %v2986 = vadd.f32 %v2613, %v2985
    %2987 = vmatmul.bf16.gmra.mxu0 %v2537
    %v2988 = vpop.f32.mrf.mxu0
    %v2989 = vadd.f32 %v2613, %v2988
    %v2990 = vpop.f32.mrf.mxu0
    %v2991 = vadd.f32 %v2613, %v2990
    %2992 = vmatmul.bf16.gmra.mxu0 %v2538
    %v2993 = vpop.f32.mrf.mxu0
    %v2994 = vadd.f32 %v2613, %v2993
    %v2995 = vpop.f32.mrf.mxu0
    %v2996 = vadd.f32 %v2613, %v2995
    %2997 = vmatmul.bf16.gmra.mxu0 %v2539
    %v2998 = vpop.f32.mrf.mxu0
    %v2999 = vadd.f32 %v2613, %v2998
    %v3000 = vpop.f32.mrf.mxu0
    %v3001 = vadd.f32 %v2613, %v3000
    %3002 = vmatmul.bf16.gmra.mxu0 %v2540
    %v3003 = vpop.f32.mrf.mxu0
    %v3004 = vadd.f32 %v2613, %v3003
    %v3005 = vpop.f32.mrf.mxu0
    %v3006 = vadd.f32 %v2613, %v3005
    %3007 = vmatmul.bf16.gmra.mxu0 %v2541
    %v3008 = vpop.f32.mrf.mxu0
    %v3009 = vadd.f32 %v2613, %v3008
    %v3010 = vpop.f32.mrf.mxu0
    %v3011 = vadd.f32 %v2613, %v3010
    %3012 = vmatmul.bf16.gmra.mxu0 %v2542
    %v3013 = vpop.f32.mrf.mxu0
    %v3014 = vadd.f32 %v2613, %v3013
    %v3015 = vpop.f32.mrf.mxu0
    %v3016 = vadd.f32 %v2613, %v3015
    %3017 = vmatmul.bf16.gmra.mxu0 %v2543
    %v3018 = vpop.f32.mrf.mxu0
    %v3019 = vadd.f32 %v2613, %v3018
    %v3020 = vpop.f32.mrf.mxu0
    %v3021 = vadd.f32 %v2613, %v3020
    %3022 = vmatmul.bf16.gmra.mxu0 %v2544
    %v3023 = vpop.f32.mrf.mxu0
    %v3024 = vadd.f32 %v2613, %v3023
    %v3025 = vpop.f32.mrf.mxu0
    %v3026 = vadd.f32 %v2613, %v3025
    %3027 = vmatmul.bf16.gmra.mxu0 %v2545
    %v3028 = vpop.f32.mrf.mxu0
    %v3029 = vadd.f32 %v2613, %v3028
    %v3030 = vpop.f32.mrf.mxu0
    %v3031 = vadd.f32 %v2613, %v3030
    %3032 = vmatmul.bf16.gmra.mxu0 %v2546
    %v3033 = vpop.f32.mrf.mxu0
    %v3034 = vadd.f32 %v2613, %v3033
    %v3035 = vpop.f32.mrf.mxu0
    %v3036 = vadd.f32 %v2613, %v3035
    %3037 = vdwg.mxu0
    %3038 = vmatpush.bf16.msra.mxu0 %v2878
    %3039 = vmatpush.bf16.msra.mxu0 %v2870
    %3040 = vmatpush.bf16.msra.mxu0 %v2862
    %3041 = vmatpush.bf16.msra.mxu0 %v2854
    %3042 = vmatpush.bf16.msra.mxu0 %v2846
    %3043 = vmatpush.bf16.msra.mxu0 %v2838
    %3044 = vmatpush.bf16.msra.mxu0 %v2830
    %3045 = vmatpush.bf16.msra.mxu0 %v2822
    %3046 = vmatmul.bf16.gmra.mxu0 %v2531
    %v3047 = vpop.f32.mrf.mxu0
    %v3048 = vadd.f32 %v2614, %v3047
    %v3049 = vpop.f32.mrf.mxu0
    %v3050 = vadd.f32 %v2614, %v3049
    %3051 = vmatmul.bf16.gmra.mxu0 %v2532
    %v3052 = vpop.f32.mrf.mxu0
    %v3053 = vadd.f32 %v2614, %v3052
    %v3054 = vpop.f32.mrf.mxu0
    %v3055 = vadd.f32 %v2614, %v3054
    %3056 = vmatmul.bf16.gmra.mxu0 %v2533
    %v3057 = vpop.f32.mrf.mxu0
    %v3058 = vadd.f32 %v2614, %v3057
    %v3059 = vpop.f32.mrf.mxu0
    %v3060 = vadd.f32 %v2614, %v3059
    %3061 = vmatmul.bf16.gmra.mxu0 %v2534
    %v3062 = vpop.f32.mrf.mxu0
    %v3063 = vadd.f32 %v2614, %v3062
    %v3064 = vpop.f32.mrf.mxu0
    %v3065 = vadd.f32 %v2614, %v3064
    %3066 = vmatmul.bf16.gmra.mxu0 %v2535
    %v3067 = vpop.f32.mrf.mxu0
    %v3068 = vadd.f32 %v2614, %v3067
    %v3069 = vpop.f32.mrf.mxu0
    %v3070 = vadd.f32 %v2614, %v3069
    %3071 = vmatmul.bf16.gmra.mxu0 %v2536
    %v3072 = vpop.f32.mrf.mxu0
    %v3073 = vadd.f32 %v2614, %v3072
    %v3074 = vpop.f32.mrf.mxu0
    %v3075 = vadd.f32 %v2614, %v3074
    %3076 = vmatmul.bf16.gmra.mxu0 %v2537
    %v3077 = vpop.f32.mrf.mxu0
    %v3078 = vadd.f32 %v2614, %v3077
    %v3079 = vpop.f32.mrf.mxu0
    %v3080 = vadd.f32 %v2614, %v3079
    %3081 = vmatmul.bf16.gmra.mxu0 %v2538
    %v3082 = vpop.f32.mrf.mxu0
    %v3083 = vadd.f32 %v2614, %v3082
    %v3084 = vpop.f32.mrf.mxu0
    %v3085 = vadd.f32 %v2614, %v3084
    %3086 = vmatmul.bf16.gmra.mxu0 %v2539
    %v3087 = vpop.f32.mrf.mxu0
    %v3088 = vadd.f32 %v2614, %v3087
    %v3089 = vpop.f32.mrf.mxu0
    %v3090 = vadd.f32 %v2614, %v3089
    %3091 = vmatmul.bf16.gmra.mxu0 %v2540
    %v3092 = vpop.f32.mrf.mxu0
    %v3093 = vadd.f32 %v2614, %v3092
    %v3094 = vpop.f32.mrf.mxu0
    %v3095 = vadd.f32 %v2614, %v3094
    %3096 = vmatmul.bf16.gmra.mxu0 %v2541
    %v3097 = vpop.f32.mrf.mxu0
    %v3098 = vadd.f32 %v2614, %v3097
    %v3099 = vpop.f32.mrf.mxu0
    %v3100 = vadd.f32 %v2614, %v3099
    %3101 = vmatmul.bf16.gmra.mxu0 %v2542
    %v3102 = vpop.f32.mrf.mxu0
    %v3103 = vadd.f32 %v2614, %v3102
    %v3104 = vpop.f32.mrf.mxu0
    %v3105 = vadd.f32 %v2614, %v3104
    %3106 = vmatmul.bf16.gmra.mxu0 %v2543
    %v3107 = vpop.f32.mrf.mxu0
    %v3108 = vadd.f32 %v2614, %v3107
    %v3109 = vpop.f32.mrf.mxu0
    %v3110 = vadd.f32 %v2614, %v3109
    %3111 = vmatmul.bf16.gmra.mxu0 %v2544
    %v3112 = vpop.f32.mrf.mxu0
    %v3113 = vadd.f32 %v2614, %v3112
    %v3114 = vpop.f32.mrf.mxu0
    %v3115 = vadd.f32 %v2614, %v3114
    %3116 = vmatmul.bf16.gmra.mxu0 %v2545
    %v3117 = vpop.f32.mrf.mxu0
    %v3118 = vadd.f32 %v2614, %v3117
    %v3119 = vpop.f32.mrf.mxu0
    %v3120 = vadd.f32 %v2614, %v3119
    %3121 = vmatmul.bf16.gmra.mxu0 %v2546
    %v3122 = vpop.f32.mrf.mxu0
    %v3123 = vadd.f32 %v2614, %v3122
    %v3124 = vpop.f32.mrf.mxu0
    %v3125 = vadd.f32 %v2614, %v3124
    %3126 = vdwg.mxu0
    %3127 = vmatpush.bf16.msra.mxu0 %v2879
    %3128 = vmatpush.bf16.msra.mxu0 %v2871
    %3129 = vmatpush.bf16.msra.mxu0 %v2863
    %3130 = vmatpush.bf16.msra.mxu0 %v2855
    %3131 = vmatpush.bf16.msra.mxu0 %v2847
    %3132 = vmatpush.bf16.msra.mxu0 %v2839
    %3133 = vmatpush.bf16.msra.mxu0 %v2831
    %3134 = vmatpush.bf16.msra.mxu0 %v2823
    %3135 = vmatmul.bf16.gmra.mxu0 %v2531
    %v3136 = vpop.f32.mrf.mxu0
    %v3137 = vadd.f32 %v2615, %v3136
    %v3138 = vpop.f32.mrf.mxu0
    %v3139 = vadd.f32 %v2615, %v3138
    %3140 = vmatmul.bf16.gmra.mxu0 %v2532
    %v3141 = vpop.f32.mrf.mxu0
    %v3142 = vadd.f32 %v2615, %v3141
    %v3143 = vpop.f32.mrf.mxu0
    %v3144 = vadd.f32 %v2615, %v3143
    %3145 = vmatmul.bf16.gmra.mxu0 %v2533
    %v3146 = vpop.f32.mrf.mxu0
    %v3147 = vadd.f32 %v2615, %v3146
    %v3148 = vpop.f32.mrf.mxu0
    %v3149 = vadd.f32 %v2615, %v3148
    %3150 = vmatmul.bf16.gmra.mxu0 %v2534
    %v3151 = vpop.f32.mrf.mxu0
    %v3152 = vadd.f32 %v2615, %v3151
    %v3153 = vpop.f32.mrf.mxu0
    %v3154 = vadd.f32 %v2615, %v3153
    %3155 = vmatmul.bf16.gmra.mxu0 %v2535
    %v3156 = vpop.f32.mrf.mxu0
    %v3157 = vadd.f32 %v2615, %v3156
    %v3158 = vpop.f32.mrf.mxu0
    %v3159 = vadd.f32 %v2615, %v3158
    %3160 = vmatmul.bf16.gmra.mxu0 %v2536
    %v3161 = vpop.f32.mrf.mxu0
    %v3162 = vadd.f32 %v2615, %v3161
    %v3163 = vpop.f32.mrf.mxu0
    %v3164 = vadd.f32 %v2615, %v3163
    %3165 = vmatmul.bf16.gmra.mxu0 %v2537
    %v3166 = vpop.f32.mrf.mxu0
    %v3167 = vadd.f32 %v2615, %v3166
    %v3168 = vpop.f32.mrf.mxu0
    %v3169 = vadd.f32 %v2615, %v3168
    %3170 = vmatmul.bf16.gmra.mxu0 %v2538
    %v3171 = vpop.f32.mrf.mxu0
    %v3172 = vadd.f32 %v2615, %v3171
    %v3173 = vpop.f32.mrf.mxu0
    %v3174 = vadd.f32 %v2615, %v3173
    %3175 = vmatmul.bf16.gmra.mxu0 %v2539
    %v3176 = vpop.f32.mrf.mxu0
    %v3177 = vadd.f32 %v2615, %v3176
    %v3178 = vpop.f32.mrf.mxu0
    %v3179 = vadd.f32 %v2615, %v3178
    %3180 = vmatmul.bf16.gmra.mxu0 %v2540
    %v3181 = vpop.f32.mrf.mxu0
    %v3182 = vadd.f32 %v2615, %v3181
    %v3183 = vpop.f32.mrf.mxu0
    %v3184 = vadd.f32 %v2615, %v3183
    %3185 = vmatmul.bf16.gmra.mxu0 %v2541
    %v3186 = vpop.f32.mrf.mxu0
    %v3187 = vadd.f32 %v2615, %v3186
    %v3188 = vpop.f32.mrf.mxu0
    %v3189 = vadd.f32 %v2615, %v3188
    %3190 = vmatmul.bf16.gmra.mxu0 %v2542
    %v3191 = vpop.f32.mrf.mxu0
    %v3192 = vadd.f32 %v2615, %v3191
    %v3193 = vpop.f32.mrf.mxu0
    %v3194 = vadd.f32 %v2615, %v3193
    %3195 = vmatmul.bf16.gmra.mxu0 %v2543
    %v3196 = vpop.f32.mrf.mxu0
    %v3197 = vadd.f32 %v2615, %v3196
    %v3198 = vpop.f32.mrf.mxu0
    %v3199 = vadd.f32 %v2615, %v3198
    %3200 = vmatmul.bf16.gmra.mxu0 %v2544
    %v3201 = vpop.f32.mrf.mxu0
    %v3202 = vadd.f32 %v2615, %v3201
    %v3203 = vpop.f32.mrf.mxu0
    %v3204 = vadd.f32 %v2615, %v3203
    %3205 = vmatmul.bf16.gmra.mxu0 %v2545
    %v3206 = vpop.f32.mrf.mxu0
    %v3207 = vadd.f32 %v2615, %v3206
    %v3208 = vpop.f32.mrf.mxu0
    %v3209 = vadd.f32 %v2615, %v3208
    %3210 = vmatmul.bf16.gmra.mxu0 %v2546
    %v3211 = vpop.f32.mrf.mxu0
    %v3212 = vadd.f32 %v2615, %v3211
    %v3213 = vpop.f32.mrf.mxu0
    %v3214 = vadd.f32 %v2615, %v3213
    %3215 = vdwg.mxu0
    %3216 = vmatpush.bf16.msra.mxu0 %v2880
    %3217 = vmatpush.bf16.msra.mxu0 %v2872
    %3218 = vmatpush.bf16.msra.mxu0 %v2864
    %3219 = vmatpush.bf16.msra.mxu0 %v2856
    %3220 = vmatpush.bf16.msra.mxu0 %v2848
    %3221 = vmatpush.bf16.msra.mxu0 %v2840
    %3222 = vmatpush.bf16.msra.mxu0 %v2832
    %3223 = vmatpush.bf16.msra.mxu0 %v2824
    %3224 = vmatmul.bf16.gmra.mxu0 %v2531
    %v3225 = vpop.f32.mrf.mxu0
    %v3226 = vadd.f32 %v2616, %v3225
    %v3227 = vpop.f32.mrf.mxu0
    %v3228 = vadd.f32 %v2616, %v3227
    %3229 = vmatmul.bf16.gmra.mxu0 %v2532
    %v3230 = vpop.f32.mrf.mxu0
    %v3231 = vadd.f32 %v2616, %v3230
    %v3232 = vpop.f32.mrf.mxu0
    %v3233 = vadd.f32 %v2616, %v3232
    %3234 = vmatmul.bf16.gmra.mxu0 %v2533
    %v3235 = vpop.f32.mrf.mxu0
    %v3236 = vadd.f32 %v2616, %v3235
    %v3237 = vpop.f32.mrf.mxu0
    %v3238 = vadd.f32 %v2616, %v3237
    %3239 = vmatmul.bf16.gmra.mxu0 %v2534
    %v3240 = vpop.f32.mrf.mxu0
    %v3241 = vadd.f32 %v2616, %v3240
    %v3242 = vpop.f32.mrf.mxu0
    %v3243 = vadd.f32 %v2616, %v3242
    %3244 = vmatmul.bf16.gmra.mxu0 %v2535
    %v3245 = vpop.f32.mrf.mxu0
    %v3246 = vadd.f32 %v2616, %v3245
    %v3247 = vpop.f32.mrf.mxu0
    %v3248 = vadd.f32 %v2616, %v3247
    %3249 = vmatmul.bf16.gmra.mxu0 %v2536
    %v3250 = vpop.f32.mrf.mxu0
    %v3251 = vadd.f32 %v2616, %v3250
    %v3252 = vpop.f32.mrf.mxu0
    %v3253 = vadd.f32 %v2616, %v3252
    %3254 = vmatmul.bf16.gmra.mxu0 %v2537
    %v3255 = vpop.f32.mrf.mxu0
    %v3256 = vadd.f32 %v2616, %v3255
    %v3257 = vpop.f32.mrf.mxu0
    %v3258 = vadd.f32 %v2616, %v3257
    %3259 = vmatmul.bf16.gmra.mxu0 %v2538
    %v3260 = vpop.f32.mrf.mxu0
    %v3261 = vadd.f32 %v2616, %v3260
    %v3262 = vpop.f32.mrf.mxu0
    %v3263 = vadd.f32 %v2616, %v3262
    %3264 = vmatmul.bf16.gmra.mxu0 %v2539
    %v3265 = vpop.f32.mrf.mxu0
    %v3266 = vadd.f32 %v2616, %v3265
    %v3267 = vpop.f32.mrf.mxu0
    %v3268 = vadd.f32 %v2616, %v3267
    %3269 = vmatmul.bf16.gmra.mxu0 %v2540
    %v3270 = vpop.f32.mrf.mxu0
    %v3271 = vadd.f32 %v2616, %v3270
    %v3272 = vpop.f32.mrf.mxu0
    %v3273 = vadd.f32 %v2616, %v3272
    %3274 = vmatmul.bf16.gmra.mxu0 %v2541
    %v3275 = vpop.f32.mrf.mxu0
    %v3276 = vadd.f32 %v2616, %v3275
    %v3277 = vpop.f32.mrf.mxu0
    %v3278 = vadd.f32 %v2616, %v3277
    %3279 = vmatmul.bf16.gmra.mxu0 %v2542
    %v3280 = vpop.f32.mrf.mxu0
    %v3281 = vadd.f32 %v2616, %v3280
    %v3282 = vpop.f32.mrf.mxu0
    %v3283 = vadd.f32 %v2616, %v3282
    %3284 = vmatmul.bf16.gmra.mxu0 %v2543
    %v3285 = vpop.f32.mrf.mxu0
    %v3286 = vadd.f32 %v2616, %v3285
    %v3287 = vpop.f32.mrf.mxu0
    %v3288 = vadd.f32 %v2616, %v3287
    %3289 = vmatmul.bf16.gmra.mxu0 %v2544
    %v3290 = vpop.f32.mrf.mxu0
    %v3291 = vadd.f32 %v2616, %v3290
    %v3292 = vpop.f32.mrf.mxu0
    %v3293 = vadd.f32 %v2616, %v3292
    %3294 = vmatmul.bf16.gmra.mxu0 %v2545
    %v3295 = vpop.f32.mrf.mxu0
    %v3296 = vadd.f32 %v2616, %v3295
    %v3297 = vpop.f32.mrf.mxu0
    %v3298 = vadd.f32 %v2616, %v3297
    %3299 = vmatmul.bf16.gmra.mxu0 %v2546
    %v3300 = vpop.f32.mrf.mxu0
    %v3301 = vadd.f32 %v2616, %v3300
    %v3302 = vpop.f32.mrf.mxu0
    %v3303 = vadd.f32 %v2616, %v3302
    %3304 = vdwg.mxu0
    %3305 = vmatpush.bf16.msra.mxu0 %v2881
    %3306 = vmatpush.bf16.msra.mxu0 %v2873
    %3307 = vmatpush.bf16.msra.mxu0 %v2865
    %3308 = vmatpush.bf16.msra.mxu0 %v2857
    %3309 = vmatpush.bf16.msra.mxu0 %v2849
    %3310 = vmatpush.bf16.msra.mxu0 %v2841
    %3311 = vmatpush.bf16.msra.mxu0 %v2833
    %3312 = vmatpush.bf16.msra.mxu0 %v2825
    %3313 = vmatmul.bf16.gmra.mxu0 %v2531
    %v3314 = vpop.f32.mrf.mxu0
    %v3315 = vadd.f32 %v2617, %v3314
    %v3316 = vpop.f32.mrf.mxu0
    %v3317 = vadd.f32 %v2617, %v3316
    %3318 = vmatmul.bf16.gmra.mxu0 %v2532
    %v3319 = vpop.f32.mrf.mxu0
    %v3320 = vadd.f32 %v2617, %v3319
    %v3321 = vpop.f32.mrf.mxu0
    %v3322 = vadd.f32 %v2617, %v3321
    %3323 = vmatmul.bf16.gmra.mxu0 %v2533
    %v3324 = vpop.f32.mrf.mxu0
    %v3325 = vadd.f32 %v2617, %v3324
    %v3326 = vpop.f32.mrf.mxu0
    %v3327 = vadd.f32 %v2617, %v3326
    %3328 = vmatmul.bf16.gmra.mxu0 %v2534
    %v3329 = vpop.f32.mrf.mxu0
    %v3330 = vadd.f32 %v2617, %v3329
    %v3331 = vpop.f32.mrf.mxu0
    %v3332 = vadd.f32 %v2617, %v3331
    %3333 = vmatmul.bf16.gmra.mxu0 %v2535
    %v3334 = vpop.f32.mrf.mxu0
    %v3335 = vadd.f32 %v2617, %v3334
    %v3336 = vpop.f32.mrf.mxu0
    %v3337 = vadd.f32 %v2617, %v3336
    %3338 = vmatmul.bf16.gmra.mxu0 %v2536
    %v3339 = vpop.f32.mrf.mxu0
    %v3340 = vadd.f32 %v2617, %v3339
    %v3341 = vpop.f32.mrf.mxu0
    %v3342 = vadd.f32 %v2617, %v3341
    %3343 = vmatmul.bf16.gmra.mxu0 %v2537
    %v3344 = vpop.f32.mrf.mxu0
    %v3345 = vadd.f32 %v2617, %v3344
    %v3346 = vpop.f32.mrf.mxu0
    %v3347 = vadd.f32 %v2617, %v3346
    %3348 = vmatmul.bf16.gmra.mxu0 %v2538
    %v3349 = vpop.f32.mrf.mxu0
    %v3350 = vadd.f32 %v2617, %v3349
    %v3351 = vpop.f32.mrf.mxu0
    %v3352 = vadd.f32 %v2617, %v3351
    %3353 = vmatmul.bf16.gmra.mxu0 %v2539
    %v3354 = vpop.f32.mrf.mxu0
    %v3355 = vadd.f32 %v2617, %v3354
    %v3356 = vpop.f32.mrf.mxu0
    %v3357 = vadd.f32 %v2617, %v3356
    %3358 = vmatmul.bf16.gmra.mxu0 %v2540
    %v3359 = vpop.f32.mrf.mxu0
    %v3360 = vadd.f32 %v2617, %v3359
    %v3361 = vpop.f32.mrf.mxu0
    %v3362 = vadd.f32 %v2617, %v3361
    %3363 = vmatmul.bf16.gmra.mxu0 %v2541
    %v3364 = vpop.f32.mrf.mxu0
    %v3365 = vadd.f32 %v2617, %v3364
    %v3366 = vpop.f32.mrf.mxu0
    %v3367 = vadd.f32 %v2617, %v3366
    %3368 = vmatmul.bf16.gmra.mxu0 %v2542
    %v3369 = vpop.f32.mrf.mxu0
    %v3370 = vadd.f32 %v2617, %v3369
    %v3371 = vpop.f32.mrf.mxu0
    %v3372 = vadd.f32 %v2617, %v3371
    %3373 = vmatmul.bf16.gmra.mxu0 %v2543
    %v3374 = vpop.f32.mrf.mxu0
    %v3375 = vadd.f32 %v2617, %v3374
    %v3376 = vpop.f32.mrf.mxu0
    %v3377 = vadd.f32 %v2617, %v3376
    %3378 = vmatmul.bf16.gmra.mxu0 %v2544
    %v3379 = vpop.f32.mrf.mxu0
    %v3380 = vadd.f32 %v2617, %v3379
    %v3381 = vpop.f32.mrf.mxu0
    %v3382 = vadd.f32 %v2617, %v3381
    %3383 = vmatmul.bf16.gmra.mxu0 %v2545
    %v3384 = vpop.f32.mrf.mxu0
    %v3385 = vadd.f32 %v2617, %v3384
    %v3386 = vpop.f32.mrf.mxu0
    %v3387 = vadd.f32 %v2617, %v3386
    %3388 = vmatmul.bf16.gmra.mxu0 %v2546
    %v3389 = vpop.f32.mrf.mxu0
    %v3390 = vadd.f32 %v2617, %v3389
    %v3391 = vpop.f32.mrf.mxu0
    %v3392 = vadd.f32 %v2617, %v3391
    %3393 = vdwg.mxu0
    %3394 = vmatpush.bf16.msra.mxu0 %v2882
    %3395 = vmatpush.bf16.msra.mxu0 %v2874
    %3396 = vmatpush.bf16.msra.mxu0 %v2866
    %3397 = vmatpush.bf16.msra.mxu0 %v2858
    %3398 = vmatpush.bf16.msra.mxu0 %v2850
    %3399 = vmatpush.bf16.msra.mxu0 %v2842
    %3400 = vmatpush.bf16.msra.mxu0 %v2834
    %3401 = vmatpush.bf16.msra.mxu0 %v2826
    %3402 = vmatmul.bf16.gmra.mxu0 %v2531
    %v3403 = vpop.f32.mrf.mxu0
    %v3404 = vadd.f32 %v2618, %v3403
    %v3405 = vpop.f32.mrf.mxu0
    %v3406 = vadd.f32 %v2618, %v3405
    %3407 = vmatmul.bf16.gmra.mxu0 %v2532
    %v3408 = vpop.f32.mrf.mxu0
    %v3409 = vadd.f32 %v2618, %v3408
    %v3410 = vpop.f32.mrf.mxu0
    %v3411 = vadd.f32 %v2618, %v3410
    %3412 = vmatmul.bf16.gmra.mxu0 %v2533
    %v3413 = vpop.f32.mrf.mxu0
    %v3414 = vadd.f32 %v2618, %v3413
    %v3415 = vpop.f32.mrf.mxu0
    %v3416 = vadd.f32 %v2618, %v3415
    %3417 = vmatmul.bf16.gmra.mxu0 %v2534
    %v3418 = vpop.f32.mrf.mxu0
    %v3419 = vadd.f32 %v2618, %v3418
    %v3420 = vpop.f32.mrf.mxu0
    %v3421 = vadd.f32 %v2618, %v3420
    %3422 = vmatmul.bf16.gmra.mxu0 %v2535
    %v3423 = vpop.f32.mrf.mxu0
    %v3424 = vadd.f32 %v2618, %v3423
    %v3425 = vpop.f32.mrf.mxu0
    %v3426 = vadd.f32 %v2618, %v3425
    %3427 = vmatmul.bf16.gmra.mxu0 %v2536
    %v3428 = vpop.f32.mrf.mxu0
    %v3429 = vadd.f32 %v2618, %v3428
    %v3430 = vpop.f32.mrf.mxu0
    %v3431 = vadd.f32 %v2618, %v3430
    %3432 = vmatmul.bf16.gmra.mxu0 %v2537
    %v3433 = vpop.f32.mrf.mxu0
    %v3434 = vadd.f32 %v2618, %v3433
    %v3435 = vpop.f32.mrf.mxu0
    %v3436 = vadd.f32 %v2618, %v3435
    %3437 = vmatmul.bf16.gmra.mxu0 %v2538
    %v3438 = vpop.f32.mrf.mxu0
    %v3439 = vadd.f32 %v2618, %v3438
    %v3440 = vpop.f32.mrf.mxu0
    %v3441 = vadd.f32 %v2618, %v3440
    %3442 = vmatmul.bf16.gmra.mxu0 %v2539
    %v3443 = vpop.f32.mrf.mxu0
    %v3444 = vadd.f32 %v2618, %v3443
    %v3445 = vpop.f32.mrf.mxu0
    %v3446 = vadd.f32 %v2618, %v3445
    %3447 = vmatmul.bf16.gmra.mxu0 %v2540
    %v3448 = vpop.f32.mrf.mxu0
    %v3449 = vadd.f32 %v2618, %v3448
    %v3450 = vpop.f32.mrf.mxu0
    %v3451 = vadd.f32 %v2618, %v3450
    %3452 = vmatmul.bf16.gmra.mxu0 %v2541
    %v3453 = vpop.f32.mrf.mxu0
    %v3454 = vadd.f32 %v2618, %v3453
    %v3455 = vpop.f32.mrf.mxu0
    %v3456 = vadd.f32 %v2618, %v3455
    %3457 = vmatmul.bf16.gmra.mxu0 %v2542
    %v3458 = vpop.f32.mrf.mxu0
    %v3459 = vadd.f32 %v2618, %v3458
    %v3460 = vpop.f32.mrf.mxu0
    %v3461 = vadd.f32 %v2618, %v3460
    %3462 = vmatmul.bf16.gmra.mxu0 %v2543
    %v3463 = vpop.f32.mrf.mxu0
    %v3464 = vadd.f32 %v2618, %v3463
    %v3465 = vpop.f32.mrf.mxu0
    %v3466 = vadd.f32 %v2618, %v3465
    %3467 = vmatmul.bf16.gmra.mxu0 %v2544
    %v3468 = vpop.f32.mrf.mxu0
    %v3469 = vadd.f32 %v2618, %v3468
    %v3470 = vpop.f32.mrf.mxu0
    %v3471 = vadd.f32 %v2618, %v3470
    %3472 = vmatmul.bf16.gmra.mxu0 %v2545
    %v3473 = vpop.f32.mrf.mxu0
    %v3474 = vadd.f32 %v2618, %v3473
    %v3475 = vpop.f32.mrf.mxu0
    %v3476 = vadd.f32 %v2618, %v3475
    %3477 = vmatmul.bf16.gmra.mxu0 %v2546
    %v3478 = vpop.f32.mrf.mxu0
    %v3479 = vadd.f32 %v2618, %v3478
    %v3480 = vpop.f32.mrf.mxu0
    %v3481 = vadd.f32 %v2618, %v3480
    %3482 = vdwg.mxu0
    %3483 = vmatpush.bf16.msra.mxu0 %v2883
    %3484 = vmatpush.bf16.msra.mxu0 %v2875
    %3485 = vmatpush.bf16.msra.mxu0 %v2867
    %3486 = vmatpush.bf16.msra.mxu0 %v2859
    %3487 = vmatpush.bf16.msra.mxu0 %v2851
    %3488 = vmatpush.bf16.msra.mxu0 %v2843
    %3489 = vmatpush.bf16.msra.mxu0 %v2835
    %3490 = vmatpush.bf16.msra.mxu0 %v2827
    %3491 = vmatmul.bf16.gmra.mxu0 %v2531
    %v3492 = vpop.f32.mrf.mxu0
    %v3493 = vadd.f32 %v2619, %v3492
    %v3494 = vpop.f32.mrf.mxu0
    %v3495 = vadd.f32 %v2619, %v3494
    %3496 = vmatmul.bf16.gmra.mxu0 %v2532
    %v3497 = vpop.f32.mrf.mxu0
    %v3498 = vadd.f32 %v2619, %v3497
    %v3499 = vpop.f32.mrf.mxu0
    %v3500 = vadd.f32 %v2619, %v3499
    %3501 = vmatmul.bf16.gmra.mxu0 %v2533
    %v3502 = vpop.f32.mrf.mxu0
    %v3503 = vadd.f32 %v2619, %v3502
    %v3504 = vpop.f32.mrf.mxu0
    %v3505 = vadd.f32 %v2619, %v3504
    %3506 = vmatmul.bf16.gmra.mxu0 %v2534
    %v3507 = vpop.f32.mrf.mxu0
    %v3508 = vadd.f32 %v2619, %v3507
    %v3509 = vpop.f32.mrf.mxu0
    %v3510 = vadd.f32 %v2619, %v3509
    %3511 = vmatmul.bf16.gmra.mxu0 %v2535
    %v3512 = vpop.f32.mrf.mxu0
    %v3513 = vadd.f32 %v2619, %v3512
    %v3514 = vpop.f32.mrf.mxu0
    %v3515 = vadd.f32 %v2619, %v3514
    %3516 = vmatmul.bf16.gmra.mxu0 %v2536
    %v3517 = vpop.f32.mrf.mxu0
    %v3518 = vadd.f32 %v2619, %v3517
    %v3519 = vpop.f32.mrf.mxu0
    %v3520 = vadd.f32 %v2619, %v3519
    %3521 = vmatmul.bf16.gmra.mxu0 %v2537
    %v3522 = vpop.f32.mrf.mxu0
    %v3523 = vadd.f32 %v2619, %v3522
    %v3524 = vpop.f32.mrf.mxu0
    %v3525 = vadd.f32 %v2619, %v3524
    %3526 = vmatmul.bf16.gmra.mxu0 %v2538
    %v3527 = vpop.f32.mrf.mxu0
    %v3528 = vadd.f32 %v2619, %v3527
    %v3529 = vpop.f32.mrf.mxu0
    %v3530 = vadd.f32 %v2619, %v3529
    %3531 = vmatmul.bf16.gmra.mxu0 %v2539
    %v3532 = vpop.f32.mrf.mxu0
    %v3533 = vadd.f32 %v2619, %v3532
    %v3534 = vpop.f32.mrf.mxu0
    %v3535 = vadd.f32 %v2619, %v3534
    %3536 = vmatmul.bf16.gmra.mxu0 %v2540
    %v3537 = vpop.f32.mrf.mxu0
    %v3538 = vadd.f32 %v2619, %v3537
    %v3539 = vpop.f32.mrf.mxu0
    %v3540 = vadd.f32 %v2619, %v3539
    %3541 = vmatmul.bf16.gmra.mxu0 %v2541
    %v3542 = vpop.f32.mrf.mxu0
    %v3543 = vadd.f32 %v2619, %v3542
    %v3544 = vpop.f32.mrf.mxu0
    %v3545 = vadd.f32 %v2619, %v3544
    %3546 = vmatmul.bf16.gmra.mxu0 %v2542
    %v3547 = vpop.f32.mrf.mxu0
    %v3548 = vadd.f32 %v2619, %v3547
    %v3549 = vpop.f32.mrf.mxu0
    %v3550 = vadd.f32 %v2619, %v3549
    %3551 = vmatmul.bf16.gmra.mxu0 %v2543
    %v3552 = vpop.f32.mrf.mxu0
    %v3553 = vadd.f32 %v2619, %v3552
    %v3554 = vpop.f32.mrf.mxu0
    %v3555 = vadd.f32 %v2619, %v3554
    %3556 = vmatmul.bf16.gmra.mxu0 %v2544
    %v3557 = vpop.f32.mrf.mxu0
    %v3558 = vadd.f32 %v2619, %v3557
    %v3559 = vpop.f32.mrf.mxu0
    %v3560 = vadd.f32 %v2619, %v3559
    %3561 = vmatmul.bf16.gmra.mxu0 %v2545
    %v3562 = vpop.f32.mrf.mxu0
    %v3563 = vadd.f32 %v2619, %v3562
    %v3564 = vpop.f32.mrf.mxu0
    %v3565 = vadd.f32 %v2619, %v3564
    %3566 = vmatmul.bf16.gmra.mxu0 %v2546
    %v3567 = vpop.f32.mrf.mxu0
    %v3568 = vadd.f32 %v2619, %v3567
    %v3569 = vpop.f32.mrf.mxu0
    %v3570 = vadd.f32 %v2619, %v3569
    %3571 = vdwg.mxu0
    %3572 = vmatpush.bf16.msra.mxu0 %v2884
    %3573 = vmatpush.bf16.msra.mxu0 %v2876
    %3574 = vmatpush.bf16.msra.mxu0 %v2868
    %3575 = vmatpush.bf16.msra.mxu0 %v2860
    %3576 = vmatpush.bf16.msra.mxu0 %v2852
    %3577 = vmatpush.bf16.msra.mxu0 %v2844
    %3578 = vmatpush.bf16.msra.mxu0 %v2836
    %3579 = vmatpush.bf16.msra.mxu0 %v2828
    %3580 = vmatmul.bf16.gmra.mxu0 %v2531
    %v3581 = vpop.f32.mrf.mxu0
    %v3582 = vadd.f32 %v2620, %v3581
    %v3583 = vpop.f32.mrf.mxu0
    %v3584 = vadd.f32 %v2620, %v3583
    %3585 = vmatmul.bf16.gmra.mxu0 %v2532
    %v3586 = vpop.f32.mrf.mxu0
    %v3587 = vadd.f32 %v2620, %v3586
    %v3588 = vpop.f32.mrf.mxu0
    %v3589 = vadd.f32 %v2620, %v3588
    %3590 = vmatmul.bf16.gmra.mxu0 %v2533
    %v3591 = vpop.f32.mrf.mxu0
    %v3592 = vadd.f32 %v2620, %v3591
    %v3593 = vpop.f32.mrf.mxu0
    %v3594 = vadd.f32 %v2620, %v3593
    %3595 = vmatmul.bf16.gmra.mxu0 %v2534
    %v3596 = vpop.f32.mrf.mxu0
    %v3597 = vadd.f32 %v2620, %v3596
    %v3598 = vpop.f32.mrf.mxu0
    %v3599 = vadd.f32 %v2620, %v3598
    %3600 = vmatmul.bf16.gmra.mxu0 %v2535
    %v3601 = vpop.f32.mrf.mxu0
    %v3602 = vadd.f32 %v2620, %v3601
    %v3603 = vpop.f32.mrf.mxu0
    %v3604 = vadd.f32 %v2620, %v3603
    %3605 = vmatmul.bf16.gmra.mxu0 %v2536
    %v3606 = vpop.f32.mrf.mxu0
    %v3607 = vadd.f32 %v2620, %v3606
    %v3608 = vpop.f32.mrf.mxu0
    %v3609 = vadd.f32 %v2620, %v3608
    %3610 = vmatmul.bf16.gmra.mxu0 %v2537
    %v3611 = vpop.f32.mrf.mxu0
    %v3612 = vadd.f32 %v2620, %v3611
    %v3613 = vpop.f32.mrf.mxu0
    %v3614 = vadd.f32 %v2620, %v3613
    %3615 = vmatmul.bf16.gmra.mxu0 %v2538
    %v3616 = vpop.f32.mrf.mxu0
    %v3617 = vadd.f32 %v2620, %v3616
    %v3618 = vpop.f32.mrf.mxu0
    %v3619 = vadd.f32 %v2620, %v3618
    %3620 = vmatmul.bf16.gmra.mxu0 %v2539
    %v3621 = vpop.f32.mrf.mxu0
    %v3622 = vadd.f32 %v2620, %v3621
    %v3623 = vpop.f32.mrf.mxu0
    %v3624 = vadd.f32 %v2620, %v3623
    %3625 = vmatmul.bf16.gmra.mxu0 %v2540
    %v3626 = vpop.f32.mrf.mxu0
    %v3627 = vadd.f32 %v2620, %v3626
    %v3628 = vpop.f32.mrf.mxu0
    %v3629 = vadd.f32 %v2620, %v3628
    %3630 = vmatmul.bf16.gmra.mxu0 %v2541
    %v3631 = vpop.f32.mrf.mxu0
    %v3632 = vadd.f32 %v2620, %v3631
    %v3633 = vpop.f32.mrf.mxu0
    %v3634 = vadd.f32 %v2620, %v3633
    %3635 = vmatmul.bf16.gmra.mxu0 %v2542
    %v3636 = vpop.f32.mrf.mxu0
    %v3637 = vadd.f32 %v2620, %v3636
    %v3638 = vpop.f32.mrf.mxu0
    %v3639 = vadd.f32 %v2620, %v3638
    %3640 = vmatmul.bf16.gmra.mxu0 %v2543
    %v3641 = vpop.f32.mrf.mxu0
    %v3642 = vadd.f32 %v2620, %v3641
    %v3643 = vpop.f32.mrf.mxu0
    %v3644 = vadd.f32 %v2620, %v3643
    %3645 = vmatmul.bf16.gmra.mxu0 %v2544
    %v3646 = vpop.f32.mrf.mxu0
    %v3647 = vadd.f32 %v2620, %v3646
    %v3648 = vpop.f32.mrf.mxu0
    %v3649 = vadd.f32 %v2620, %v3648
    %3650 = vmatmul.bf16.gmra.mxu0 %v2545
    %v3651 = vpop.f32.mrf.mxu0
    %v3652 = vadd.f32 %v2620, %v3651
    %v3653 = vpop.f32.mrf.mxu0
    %v3654 = vadd.f32 %v2620, %v3653
    %3655 = vmatmul.bf16.gmra.mxu0 %v2546
    %v3656 = vpop.f32.mrf.mxu0
    %v3657 = vadd.f32 %v2620, %v3656
    %v3658 = vpop.f32.mrf.mxu0
    %v3659 = vadd.f32 %v2620, %v3658
    %3660 = vdwg.mxu0
    %3661 = vst [vmem:[#allocation13] sm:$0xff] %v2959
    %3662 = vst [vmem:[#allocation13 + $0x8] sm:$0xff] %v3048
    %3663 = vst [vmem:[#allocation13 + $0x10] sm:$0xff] %v3137
    %3664 = vst [vmem:[#allocation13 + $0x18] sm:$0xff] %v3226
    %3665 = vst [vmem:[#allocation13 + $0x20] sm:$0xff] %v3315
    %3666 = vst [vmem:[#allocation13 + $0x28] sm:$0xff] %v3404
    %3667 = vst [vmem:[#allocation13 + $0x30] sm:$0xff] %v3493
    %3668 = vst [vmem:[#allocation13 + $0x38] sm:$0xff] %v3582
    %3669 = vst [vmem:[#allocation13 + $0x40] sm:$0xff] %v2961
    %3670 = vst [vmem:[#allocation13 + $0x48] sm:$0xff] %v3050
    %3671 = vst [vmem:[#allocation13 + $0x50] sm:$0xff] %v3139
    %3672 = vst [vmem:[#allocation13 + $0x58] sm:$0xff] %v3228
    %3673 = vst [vmem:[#allocation13 + $0x60] sm:$0xff] %v3317
    %3674 = vst [vmem:[#allocation13 + $0x68] sm:$0xff] %v3406
    %3675 = vst [vmem:[#allocation13 + $0x70] sm:$0xff] %v3495
    %3676 = vst [vmem:[#allocation13 + $0x78] sm:$0xff] %v3584
    %3677 = vst [vmem:[#allocation13 + $0x80] sm:$0xff] %v2964
    %3678 = vst [vmem:[#allocation13 + $0x88] sm:$0xff] %v3053
    %3679 = vst [vmem:[#allocation13 + $0x90] sm:$0xff] %v3142
    %3680 = vst [vmem:[#allocation13 + $0x98] sm:$0xff] %v3231
    %3681 = vst [vmem:[#allocation13 + $0xa0] sm:$0xff] %v3320
    %3682 = vst [vmem:[#allocation13 + $0xa8] sm:$0xff] %v3409
    %3683 = vst [vmem:[#allocation13 + $0xb0] sm:$0xff] %v3498
    %3684 = vst [vmem:[#allocation13 + $0xb8] sm:$0xff] %v3587
    %3685 = vst [vmem:[#allocation13 + $0xc0] sm:$0xff] %v2966
    %3686 = vst [vmem:[#allocation13 + $0xc8] sm:$0xff] %v3055
    %3687 = vst [vmem:[#allocation13 + $0xd0] sm:$0xff] %v3144
    %3688 = vst [vmem:[#allocation13 + $0xd8] sm:$0xff] %v3233
    %3689 = vst [vmem:[#allocation13 + $0xe0] sm:$0xff] %v3322
    %3690 = vst [vmem:[#allocation13 + $0xe8] sm:$0xff] %v3411
    %3691 = vst [vmem:[#allocation13 + $0xf0] sm:$0xff] %v3500
    %3692 = vst [vmem:[#allocation13 + $0xf8] sm:$0xff] %v3589
    %3693 = vst [vmem:[#allocation13 + $0x100] sm:$0xff] %v2969
    %3694 = vst [vmem:[#allocation13 + $0x108] sm:$0xff] %v3058
    %3695 = vst [vmem:[#allocation13 + $0x110] sm:$0xff] %v3147
    %3696 = vst [vmem:[#allocation13 + $0x118] sm:$0xff] %v3236
    %3697 = vst [vmem:[#allocation13 + $0x120] sm:$0xff] %v3325
    %3698 = vst [vmem:[#allocation13 + $0x128] sm:$0xff] %v3414
    %3699 = vst [vmem:[#allocation13 + $0x130] sm:$0xff] %v3503
    %3700 = vst [vmem:[#allocation13 + $0x138] sm:$0xff] %v3592
    %3701 = vst [vmem:[#allocation13 + $0x140] sm:$0xff] %v2971
    %3702 = vst [vmem:[#allocation13 + $0x148] sm:$0xff] %v3060
    %3703 = vst [vmem:[#allocation13 + $0x150] sm:$0xff] %v3149
    %3704 = vst [vmem:[#allocation13 + $0x158] sm:$0xff] %v3238
    %3705 = vst [vmem:[#allocation13 + $0x160] sm:$0xff] %v3327
    %3706 = vst [vmem:[#allocation13 + $0x168] sm:$0xff] %v3416
    %3707 = vst [vmem:[#allocation13 + $0x170] sm:$0xff] %v3505
    %3708 = vst [vmem:[#allocation13 + $0x178] sm:$0xff] %v3594
    %3709 = vst [vmem:[#allocation13 + $0x180] sm:$0xff] %v2974
    %3710 = vst [vmem:[#allocation13 + $0x188] sm:$0xff] %v3063
    %3711 = vst [vmem:[#allocation13 + $0x190] sm:$0xff] %v3152
    %3712 = vst [vmem:[#allocation13 + $0x198] sm:$0xff] %v3241
    %3713 = vst [vmem:[#allocation13 + $0x1a0] sm:$0xff] %v3330
    %3714 = vst [vmem:[#allocation13 + $0x1a8] sm:$0xff] %v3419
    %3715 = vst [vmem:[#allocation13 + $0x1b0] sm:$0xff] %v3508
    %3716 = vst [vmem:[#allocation13 + $0x1b8] sm:$0xff] %v3597
    %3717 = vst [vmem:[#allocation13 + $0x1c0] sm:$0xff] %v2976
    %3718 = vst [vmem:[#allocation13 + $0x1c8] sm:$0xff] %v3065
    %3719 = vst [vmem:[#allocation13 + $0x1d0] sm:$0xff] %v3154
    %3720 = vst [vmem:[#allocation13 + $0x1d8] sm:$0xff] %v3243
    %3721 = vst [vmem:[#allocation13 + $0x1e0] sm:$0xff] %v3332
    %3722 = vst [vmem:[#allocation13 + $0x1e8] sm:$0xff] %v3421
    %3723 = vst [vmem:[#allocation13 + $0x1f0] sm:$0xff] %v3510
    %3724 = vst [vmem:[#allocation13 + $0x1f8] sm:$0xff] %v3599
    %3725 = vst [vmem:[#allocation13 + $0x200] sm:$0xff] %v2979
    %3726 = vst [vmem:[#allocation13 + $0x208] sm:$0xff] %v3068
    %3727 = vst [vmem:[#allocation13 + $0x210] sm:$0xff] %v3157
    %3728 = vst [vmem:[#allocation13 + $0x218] sm:$0xff] %v3246
    %3729 = vst [vmem:[#allocation13 + $0x220] sm:$0xff] %v3335
    %3730 = vst [vmem:[#allocation13 + $0x228] sm:$0xff] %v3424
    %3731 = vst [vmem:[#allocation13 + $0x230] sm:$0xff] %v3513
    %3732 = vst [vmem:[#allocation13 + $0x238] sm:$0xff] %v3602
    %3733 = vst [vmem:[#allocation13 + $0x240] sm:$0xff] %v2981
    %3734 = vst [vmem:[#allocation13 + $0x248] sm:$0xff] %v3070
    %3735 = vst [vmem:[#allocation13 + $0x250] sm:$0xff] %v3159
    %3736 = vst [vmem:[#allocation13 + $0x258] sm:$0xff] %v3248
    %3737 = vst [vmem:[#allocation13 + $0x260] sm:$0xff] %v3337
    %3738 = vst [vmem:[#allocation13 + $0x268] sm:$0xff] %v3426
    %3739 = vst [vmem:[#allocation13 + $0x270] sm:$0xff] %v3515
    %3740 = vst [vmem:[#allocation13 + $0x278] sm:$0xff] %v3604
    %3741 = vst [vmem:[#allocation13 + $0x280] sm:$0xff] %v2984
    %3742 = vst [vmem:[#allocation13 + $0x288] sm:$0xff] %v3073
    %3743 = vst [vmem:[#allocation13 + $0x290] sm:$0xff] %v3162
    %3744 = vst [vmem:[#allocation13 + $0x298] sm:$0xff] %v3251
    %3745 = vst [vmem:[#allocation13 + $0x2a0] sm:$0xff] %v3340
    %3746 = vst [vmem:[#allocation13 + $0x2a8] sm:$0xff] %v3429
    %3747 = vst [vmem:[#allocation13 + $0x2b0] sm:$0xff] %v3518
    %3748 = vst [vmem:[#allocation13 + $0x2b8] sm:$0xff] %v3607
    %3749 = vst [vmem:[#allocation13 + $0x2c0] sm:$0xff] %v2986
    %3750 = vst [vmem:[#allocation13 + $0x2c8] sm:$0xff] %v3075
    %3751 = vst [vmem:[#allocation13 + $0x2d0] sm:$0xff] %v3164
    %3752 = vst [vmem:[#allocation13 + $0x2d8] sm:$0xff] %v3253
    %3753 = vst [vmem:[#allocation13 + $0x2e0] sm:$0xff] %v3342
    %3754 = vst [vmem:[#allocation13 + $0x2e8] sm:$0xff] %v3431
    %3755 = vst [vmem:[#allocation13 + $0x2f0] sm:$0xff] %v3520
    %3756 = vst [vmem:[#allocation13 + $0x2f8] sm:$0xff] %v3609
    %3757 = vst [vmem:[#allocation13 + $0x300] sm:$0xff] %v2989
    %3758 = vst [vmem:[#allocation13 + $0x308] sm:$0xff] %v3078
    %3759 = vst [vmem:[#allocation13 + $0x310] sm:$0xff] %v3167
    %3760 = vst [vmem:[#allocation13 + $0x318] sm:$0xff] %v3256
    %3761 = vst [vmem:[#allocation13 + $0x320] sm:$0xff] %v3345
    %3762 = vst [vmem:[#allocation13 + $0x328] sm:$0xff] %v3434
    %3763 = vst [vmem:[#allocation13 + $0x330] sm:$0xff] %v3523
    %3764 = vst [vmem:[#allocation13 + $0x338] sm:$0xff] %v3612
    %3765 = vst [vmem:[#allocation13 + $0x340] sm:$0xff] %v2991
    %3766 = vst [vmem:[#allocation13 + $0x348] sm:$0xff] %v3080
    %3767 = vst [vmem:[#allocation13 + $0x350] sm:$0xff] %v3169
    %3768 = vst [vmem:[#allocation13 + $0x358] sm:$0xff] %v3258
    %3769 = vst [vmem:[#allocation13 + $0x360] sm:$0xff] %v3347
    %3770 = vst [vmem:[#allocation13 + $0x368] sm:$0xff] %v3436
    %3771 = vst [vmem:[#allocation13 + $0x370] sm:$0xff] %v3525
    %3772 = vst [vmem:[#allocation13 + $0x378] sm:$0xff] %v3614
    %3773 = vst [vmem:[#allocation13 + $0x380] sm:$0xff] %v2994
    %3774 = vst [vmem:[#allocation13 + $0x388] sm:$0xff] %v3083
    %3775 = vst [vmem:[#allocation13 + $0x390] sm:$0xff] %v3172
    %3776 = vst [vmem:[#allocation13 + $0x398] sm:$0xff] %v3261
    %3777 = vst [vmem:[#allocation13 + $0x3a0] sm:$0xff] %v3350
    %3778 = vst [vmem:[#allocation13 + $0x3a8] sm:$0xff] %v3439
    %3779 = vst [vmem:[#allocation13 + $0x3b0] sm:$0xff] %v3528
    %3780 = vst [vmem:[#allocation13 + $0x3b8] sm:$0xff] %v3617
    %3781 = vst [vmem:[#allocation13 + $0x3c0] sm:$0xff] %v2996
    %3782 = vst [vmem:[#allocation13 + $0x3c8] sm:$0xff] %v3085
    %3783 = vst [vmem:[#allocation13 + $0x3d0] sm:$0xff] %v3174
    %3784 = vst [vmem:[#allocation13 + $0x3d8] sm:$0xff] %v3263
    %3785 = vst [vmem:[#allocation13 + $0x3e0] sm:$0xff] %v3352
    %3786 = vst [vmem:[#allocation13 + $0x3e8] sm:$0xff] %v3441
    %3787 = vst [vmem:[#allocation13 + $0x3f0] sm:$0xff] %v3530
    %3788 = vst [vmem:[#allocation13 + $0x3f8] sm:$0xff] %v3619
    %3789 = vst [vmem:[#allocation13 + $0x400] sm:$0xff] %v2999
    %3790 = vst [vmem:[#allocation13 + $0x408] sm:$0xff] %v3088
    %3791 = vst [vmem:[#allocation13 + $0x410] sm:$0xff] %v3177
    %3792 = vst [vmem:[#allocation13 + $0x418] sm:$0xff] %v3266
    %3793 = vst [vmem:[#allocation13 + $0x420] sm:$0xff] %v3355
    %3794 = vst [vmem:[#allocation13 + $0x428] sm:$0xff] %v3444
    %3795 = vst [vmem:[#allocation13 + $0x430] sm:$0xff] %v3533
    %3796 = vst [vmem:[#allocation13 + $0x438] sm:$0xff] %v3622
    %3797 = vst [vmem:[#allocation13 + $0x440] sm:$0xff] %v3001
    %3798 = vst [vmem:[#allocation13 + $0x448] sm:$0xff] %v3090
    %3799 = vst [vmem:[#allocation13 + $0x450] sm:$0xff] %v3179
    %3800 = vst [vmem:[#allocation13 + $0x458] sm:$0xff] %v3268
    %3801 = vst [vmem:[#allocation13 + $0x460] sm:$0xff] %v3357
    %3802 = vst [vmem:[#allocation13 + $0x468] sm:$0xff] %v3446
    %3803 = vst [vmem:[#allocation13 + $0x470] sm:$0xff] %v3535
    %3804 = vst [vmem:[#allocation13 + $0x478] sm:$0xff] %v3624
    %3805 = vst [vmem:[#allocation13 + $0x480] sm:$0xff] %v3004
    %3806 = vst [vmem:[#allocation13 + $0x488] sm:$0xff] %v3093
    %3807 = vst [vmem:[#allocation13 + $0x490] sm:$0xff] %v3182
    %3808 = vst [vmem:[#allocation13 + $0x498] sm:$0xff] %v3271
    %3809 = vst [vmem:[#allocation13 + $0x4a0] sm:$0xff] %v3360
    %3810 = vst [vmem:[#allocation13 + $0x4a8] sm:$0xff] %v3449
    %3811 = vst [vmem:[#allocation13 + $0x4b0] sm:$0xff] %v3538
    %3812 = vst [vmem:[#allocation13 + $0x4b8] sm:$0xff] %v3627
    %3813 = vst [vmem:[#allocation13 + $0x4c0] sm:$0xff] %v3006
    %3814 = vst [vmem:[#allocation13 + $0x4c8] sm:$0xff] %v3095
    %3815 = vst [vmem:[#allocation13 + $0x4d0] sm:$0xff] %v3184
    %3816 = vst [vmem:[#allocation13 + $0x4d8] sm:$0xff] %v3273
    %3817 = vst [vmem:[#allocation13 + $0x4e0] sm:$0xff] %v3362
    %3818 = vst [vmem:[#allocation13 + $0x4e8] sm:$0xff] %v3451
    %3819 = vst [vmem:[#allocation13 + $0x4f0] sm:$0xff] %v3540
    %3820 = vst [vmem:[#allocation13 + $0x4f8] sm:$0xff] %v3629
    %3821 = vst [vmem:[#allocation13 + $0x500] sm:$0xff] %v3009
    %3822 = vst [vmem:[#allocation13 + $0x508] sm:$0xff] %v3098
    %3823 = vst [vmem:[#allocation13 + $0x510] sm:$0xff] %v3187
    %3824 = vst [vmem:[#allocation13 + $0x518] sm:$0xff] %v3276
    %3825 = vst [vmem:[#allocation13 + $0x520] sm:$0xff] %v3365
    %3826 = vst [vmem:[#allocation13 + $0x528] sm:$0xff] %v3454
    %3827 = vst [vmem:[#allocation13 + $0x530] sm:$0xff] %v3543
    %3828 = vst [vmem:[#allocation13 + $0x538] sm:$0xff] %v3632
    %3829 = vst [vmem:[#allocation13 + $0x540] sm:$0xff] %v3011
    %3830 = vst [vmem:[#allocation13 + $0x548] sm:$0xff] %v3100
    %3831 = vst [vmem:[#allocation13 + $0x550] sm:$0xff] %v3189
    %3832 = vst [vmem:[#allocation13 + $0x558] sm:$0xff] %v3278
    %3833 = vst [vmem:[#allocation13 + $0x560] sm:$0xff] %v3367
    %3834 = vst [vmem:[#allocation13 + $0x568] sm:$0xff] %v3456
    %3835 = vst [vmem:[#allocation13 + $0x570] sm:$0xff] %v3545
    %3836 = vst [vmem:[#allocation13 + $0x578] sm:$0xff] %v3634
    %3837 = vst [vmem:[#allocation13 + $0x580] sm:$0xff] %v3014
    %3838 = vst [vmem:[#allocation13 + $0x588] sm:$0xff] %v3103
    %3839 = vst [vmem:[#allocation13 + $0x590] sm:$0xff] %v3192
    %3840 = vst [vmem:[#allocation13 + $0x598] sm:$0xff] %v3281
    %3841 = vst [vmem:[#allocation13 + $0x5a0] sm:$0xff] %v3370
    %3842 = vst [vmem:[#allocation13 + $0x5a8] sm:$0xff] %v3459
    %3843 = vst [vmem:[#allocation13 + $0x5b0] sm:$0xff] %v3548
    %3844 = vst [vmem:[#allocation13 + $0x5b8] sm:$0xff] %v3637
    %3845 = vst [vmem:[#allocation13 + $0x5c0] sm:$0xff] %v3016
    %3846 = vst [vmem:[#allocation13 + $0x5c8] sm:$0xff] %v3105
    %3847 = vst [vmem:[#allocation13 + $0x5d0] sm:$0xff] %v3194
    %3848 = vst [vmem:[#allocation13 + $0x5d8] sm:$0xff] %v3283
    %3849 = vst [vmem:[#allocation13 + $0x5e0] sm:$0xff] %v3372
    %3850 = vst [vmem:[#allocation13 + $0x5e8] sm:$0xff] %v3461
    %3851 = vst [vmem:[#allocation13 + $0x5f0] sm:$0xff] %v3550
    %3852 = vst [vmem:[#allocation13 + $0x5f8] sm:$0xff] %v3639
    %3853 = vst [vmem:[#allocation13 + $0x600] sm:$0xff] %v3019
    %3854 = vst [vmem:[#allocation13 + $0x608] sm:$0xff] %v3108
    %3855 = vst [vmem:[#allocation13 + $0x610] sm:$0xff] %v3197
    %3856 = vst [vmem:[#allocation13 + $0x618] sm:$0xff] %v3286
    %3857 = vst [vmem:[#allocation13 + $0x620] sm:$0xff] %v3375
    %3858 = vst [vmem:[#allocation13 + $0x628] sm:$0xff] %v3464
    %3859 = vst [vmem:[#allocation13 + $0x630] sm:$0xff] %v3553
    %3860 = vst [vmem:[#allocation13 + $0x638] sm:$0xff] %v3642
    %3861 = vst [vmem:[#allocation13 + $0x640] sm:$0xff] %v3021
    %3862 = vst [vmem:[#allocation13 + $0x648] sm:$0xff] %v3110
    %3863 = vst [vmem:[#allocation13 + $0x650] sm:$0xff] %v3199
    %3864 = vst [vmem:[#allocation13 + $0x658] sm:$0xff] %v3288
    %3865 = vst [vmem:[#allocation13 + $0x660] sm:$0xff] %v3377
    %3866 = vst [vmem:[#allocation13 + $0x668] sm:$0xff] %v3466
    %3867 = vst [vmem:[#allocation13 + $0x670] sm:$0xff] %v3555
    %3868 = vst [vmem:[#allocation13 + $0x678] sm:$0xff] %v3644
    %3869 = vst [vmem:[#allocation13 + $0x680] sm:$0xff] %v3024
    %3870 = vst [vmem:[#allocation13 + $0x688] sm:$0xff] %v3113
    %3871 = vst [vmem:[#allocation13 + $0x690] sm:$0xff] %v3202
    %3872 = vst [vmem:[#allocation13 + $0x698] sm:$0xff] %v3291
    %3873 = vst [vmem:[#allocation13 + $0x6a0] sm:$0xff] %v3380
    %3874 = vst [vmem:[#allocation13 + $0x6a8] sm:$0xff] %v3469
    %3875 = vst [vmem:[#allocation13 + $0x6b0] sm:$0xff] %v3558
    %3876 = vst [vmem:[#allocation13 + $0x6b8] sm:$0xff] %v3647
    %3877 = vst [vmem:[#allocation13 + $0x6c0] sm:$0xff] %v3026
    %3878 = vst [vmem:[#allocation13 + $0x6c8] sm:$0xff] %v3115
    %3879 = vst [vmem:[#allocation13 + $0x6d0] sm:$0xff] %v3204
    %3880 = vst [vmem:[#allocation13 + $0x6d8] sm:$0xff] %v3293
    %3881 = vst [vmem:[#allocation13 + $0x6e0] sm:$0xff] %v3382
    %3882 = vst [vmem:[#allocation13 + $0x6e8] sm:$0xff] %v3471
    %3883 = vst [vmem:[#allocation13 + $0x6f0] sm:$0xff] %v3560
    %3884 = vst [vmem:[#allocation13 + $0x6f8] sm:$0xff] %v3649
    %3885 = vst [vmem:[#allocation13 + $0x700] sm:$0xff] %v3029
    %3886 = vst [vmem:[#allocation13 + $0x708] sm:$0xff] %v3118
    %3887 = vst [vmem:[#allocation13 + $0x710] sm:$0xff] %v3207
    %3888 = vst [vmem:[#allocation13 + $0x718] sm:$0xff] %v3296
    %3889 = vst [vmem:[#allocation13 + $0x720] sm:$0xff] %v3385
    %3890 = vst [vmem:[#allocation13 + $0x728] sm:$0xff] %v3474
    %3891 = vst [vmem:[#allocation13 + $0x730] sm:$0xff] %v3563
    %3892 = vst [vmem:[#allocation13 + $0x738] sm:$0xff] %v3652
    %3893 = vst [vmem:[#allocation13 + $0x740] sm:$0xff] %v3031
    %3894 = vst [vmem:[#allocation13 + $0x748] sm:$0xff] %v3120
    %3895 = vst [vmem:[#allocation13 + $0x750] sm:$0xff] %v3209
    %3896 = vst [vmem:[#allocation13 + $0x758] sm:$0xff] %v3298
    %3897 = vst [vmem:[#allocation13 + $0x760] sm:$0xff] %v3387
    %3898 = vst [vmem:[#allocation13 + $0x768] sm:$0xff] %v3476
    %3899 = vst [vmem:[#allocation13 + $0x770] sm:$0xff] %v3565
    %3900 = vst [vmem:[#allocation13 + $0x778] sm:$0xff] %v3654
    %3901 = vst [vmem:[#allocation13 + $0x780] sm:$0xff] %v3034
    %3902 = vst [vmem:[#allocation13 + $0x788] sm:$0xff] %v3123
    %3903 = vst [vmem:[#allocation13 + $0x790] sm:$0xff] %v3212
    %3904 = vst [vmem:[#allocation13 + $0x798] sm:$0xff] %v3301
    %3905 = vst [vmem:[#allocation13 + $0x7a0] sm:$0xff] %v3390
    %3906 = vst [vmem:[#allocation13 + $0x7a8] sm:$0xff] %v3479
    %3907 = vst [vmem:[#allocation13 + $0x7b0] sm:$0xff] %v3568
    %3908 = vst [vmem:[#allocation13 + $0x7b8] sm:$0xff] %v3657
    %3909 = vst [vmem:[#allocation13 + $0x7c0] sm:$0xff] %v3036
    %3910 = vst [vmem:[#allocation13 + $0x7c8] sm:$0xff] %v3125
    %3911 = vst [vmem:[#allocation13 + $0x7d0] sm:$0xff] %v3214
    %3912 = vst [vmem:[#allocation13 + $0x7d8] sm:$0xff] %v3303
    %3913 = vst [vmem:[#allocation13 + $0x7e0] sm:$0xff] %v3392
    %3914 = vst [vmem:[#allocation13 + $0x7e8] sm:$0xff] %v3481
    %3915 = vst [vmem:[#allocation13 + $0x7f0] sm:$0xff] %v3570
    %3916 = vst [vmem:[#allocation13 + $0x7f8] sm:$0xff] %v3659
    // Predicated region
    $region62: #{tpu_custom_call.1} parent=1 // pred_check
      _
    $region63: #{tpu_custom_call.1} parent=1 // pred_check_branch
      %3918 = sbr.rel (0) target = $region65
    $region64: #{tpu_custom_call.1} parent=1 // pred_region
      %3920 = vsyncadd [#allocation4], 0
      %s3921 = sshll.u32 [#allocation13], 4
      %s3922 = int_to_ptr.vmem [resolvable:$true] %s3921
      %s3923 = sshll.u32 %s9, 4
      %s3924 = int_to_ptr.hbm [resolvable:$true] %s3923
      %3929 = dma.vmem_to_hbm [thread:$0]  %s3922, 32768, %s3924, [#allocation4], 1024, 1024, 64
    $region65: #{tpu_custom_call.1} parent=1 // pred_fallthru
      _
    // Predicated region
    $region66: #{tpu_custom_call.1} parent=1 // pred_check
      _
    $region67: #{tpu_custom_call.1} parent=1 // pred_check_branch
      %3931 = sbr.rel (0) target = $region69
    $region68: #{tpu_custom_call.1} parent=1 // pred_region
      %3933 = dma.done [#allocation4], 32768
    $region69: #{tpu_custom_call.1} parent=1 // pred_fallthru
      _
    %3934 = vsyncpa [#allocation3], 1
    %3935 = vsyncpa [#allocation6], 1
    %3936 = vsyncpa [#allocation9], 1
    %3937 = vsyncpa [#allocation12], 1
    %3938 = vsyncpa [#allocation4], 1

</llo_original>
